<compile_context>
chip_gen: v6e
topology: v6e:2x2x1
jax: 0.10.0
libtpu: 0.0.40
codegen_flags: <defaults>
</compile_context>

<pallas_src>
import functools
from typing import Any, Callable

import jax
import jax.numpy as jnp
from jax.experimental import pallas as pl
from jax.experimental.pallas import tpu as pltpu

_LANE_CANDIDATES = (1024, 512, 256, 128)   # lane-dense output widths (multiples of 128)
_TILE_BYTES_TARGET = 2 * 1024 * 1024       # ~2 MiB per buffer -> ~85%+ of HBM roofline
_MIN_BLOCK_ROWS = 32                       # packs cleanly for f32 / bf16 / int8 / fp8
_SMALL_FALLBACK_ELEMS = 1 << 16            # below this, plain XLA elementwise is faster


def _elementwise_kernel(x_ref, o_ref, *, fn, bound_kwargs):
    # Hot path: apply the wrapped fn elementwise on the VMEM tile.
    o_ref[...] = fn(x_ref[...], **bound_kwargs).astype(o_ref.dtype)


def _pallas_elementwise(fn: Callable, bound_kwargs: dict[str, Any],
                        x: jax.Array, out_dtype) -> jax.Array:
    orig_shape = x.shape
    n = x.size

    # Widest lane width that divides n (keeps the lane dim exact -> no padding
    # there); fall back to 128 lanes + a tiny tail pad for odd sizes.
    lanes = next((w for w in _LANE_CANDIDATES if n % w == 0), 128)
    pad = (-n) % lanes
    x_flat = jnp.reshape(x, (n,))
    if pad:  # rare: only when n is not a multiple of 128
        x_flat = jnp.pad(x_flat, (0, pad))
    padded_n = n + pad
    rows = padded_n // lanes

    # Row-block sized to ~_TILE_BYTES_TARGET per buffer, rounded to a multiple
    # of 32 (legal/efficient for all packed dtypes).  If the whole slab is
    # smaller than one tile, use the full dim (always legal).
    itemsize = max(jnp.dtype(x.dtype).itemsize, jnp.dtype(out_dtype).itemsize)
    target_rows = max(
        _MIN_BLOCK_ROWS,
        (_TILE_BYTES_TARGET // (lanes * itemsize)) // _MIN_BLOCK_ROWS * _MIN_BLOCK_ROWS,
    )
    block_rows = rows if rows <= target_rows else target_rows
    grid = (pl.cdiv(rows, block_rows),)   # partial last block handled by Pallas masking

    x2d = jnp.reshape(x_flat, (rows, lanes))
    kernel = functools.partial(_elementwise_kernel, fn=fn, bound_kwargs=bound_kwargs)

    bytes_accessed = n * jnp.dtype(x.dtype).itemsize + n * jnp.dtype(out_dtype).itemsize
    out2d = pl.pallas_call(
        kernel,
        out_shape=jax.ShapeDtypeStruct((rows, lanes), out_dtype),
        grid_spec=pltpu.PrefetchScalarGridSpec(
            num_scalar_prefetch=0,
            grid=grid,
            in_specs=[pl.BlockSpec((block_rows, lanes), lambda i: (i, 0))],
            out_specs=pl.BlockSpec((block_rows, lanes), lambda i: (i, 0)),
        ),
        compiler_params=pltpu.CompilerParams(dimension_semantics=("parallel",)),
        cost_estimate=pl.CostEstimate(
            flops=n, transcendentals=0, bytes_accessed=bytes_accessed),
    )(x2d)

    out_flat = jnp.reshape(out2d, (padded_n,))
    if pad:
        out_flat = out_flat[:n]
    return jnp.reshape(out_flat, orig_shape)


class PallasLambda:
    """JAX/Pallas analogue of torch `Lambda`."""

    def __init__(self, fn: Callable, kwargs: dict[str, Any] | None = None,
                 name: str | None = None) -> None:
        self.fn = fn
        self.name = name
        # (name kept identical to the PyTorch module, typo and all)
        self.addictional_kwargs = {} if kwargs is None else dict(kwargs)

    def __call__(self, *args: Any, **kwargs: Any) -> Any:
        # Lower the common case (single array, elementwise, reasonably large)
        # to the Pallas kernel; otherwise behave exactly like Lambda.forward.
        if len(args) == 1 and not kwargs and isinstance(args[0], jax.Array):
            x = args[0]
            out_aval = None
            try:
                out_aval = jax.eval_shape(
                    lambda a: self.fn(a, **self.addictional_kwargs),
                    jax.ShapeDtypeStruct(x.shape, x.dtype))
            except Exception:
                out_aval = None
            if (out_aval is not None
                    and hasattr(out_aval, "shape")
                    and tuple(out_aval.shape) == tuple(x.shape)
                    and x.size >= _SMALL_FALLBACK_ELEMS):
                return _pallas_elementwise(
                    self.fn, self.addictional_kwargs, x, out_aval.dtype)
        # TODO(synk): non-elementwise / multi-arg callables have no single
        # Pallas kernel; they run as plain JAX here (same semantics).
        return self.fn(*args, **kwargs, **self.addictional_kwargs)

    def extra_repr(self) -> str:
        name = self.name if self.name is not None else self.fn.__name__
        if self.addictional_kwargs:
            additional = ", ".join(
                f"{k}={v}" for k, v in self.addictional_kwargs.items())
            return f"fn={name}(..., {additional})"
        return f"fn={name}"


if __name__ == "__main__":
    key = jax.random.PRNGKey(0)

    # Example wrapped callable (mirrors Lambda(fn=..., kwargs=...)).
    def scaled_leaky(x, negative_slope, scale):
        return jnp.where(x >= 0, x, negative_slope * x) * scale

    lam = PallasLambda(
        scaled_leaky,
        kwargs={"negative_slope": 0.1, "scale": 2.0},
        name="scaled_leaky",
    )

    k1, k2, k3 = jax.random.split(key, 3)

    # 1) Small NCHW input -> plain-JAX fallback path (launch not worth it).
    x_small = jax.random.normal(k1, (2, 4, 16, 16), dtype=jnp.float32)
    out_small = lam(x_small)
    jax.block_until_ready(out_small)
    ref_small = scaled_leaky(x_small, negative_slope=0.1, scale=2.0)
    assert out_small.shape == x_small.shape and out_small.dtype == x_small.dtype
    assert jnp.allclose(out_small, ref_small, atol=1e-6), "small-input mismatch"

    # 2) Larger f32 input -> Pallas path (multi-block grid, partial last block).
    x_big = jax.random.normal(k2, (2, 4, 300, 320), dtype=jnp.float32)
    out_big = lam(x_big)
    jax.block_until_ready(out_big)
    ref_big = scaled_leaky(x_big, negative_slope=0.1, scale=2.0)
    assert out_big.shape == x_big.shape and out_big.dtype == x_big.dtype
    assert jnp.allclose(out_big, ref_big, atol=1e-6), "f32 Pallas mismatch"

    # 3) bf16 input -> Pallas path with packed dtype (32-multiple row blocks).
    x_bf16 = jax.random.normal(k3, (4, 4, 320, 320), dtype=jnp.bfloat16)
    out_bf16 = lam(x_bf16)
    jax.block_until_ready(out_bf16)
    ref_bf16 = scaled_leaky(x_bf16, negative_slope=0.1, scale=2.0)
    assert out_bf16.shape == x_bf16.shape and out_bf16.dtype == x_bf16.dtype
    assert jnp.allclose(out_bf16.astype(jnp.float32), ref_bf16.astype(jnp.float32),
                        atol=1e-2, rtol=1e-2), "bf16 Pallas mismatch"

    print("KERNEL_OK")
</pallas_src>

<mosaic_0001>
module attributes {stable_mosaic.version = 11 : i64} {
  func.func @_elementwise_kernel(%arg0: i32, %arg1: memref<512x1024xf32, #tpu.memory_space<vmem>>, %arg2: memref<512x1024xf32, #tpu.memory_space<vmem>>) attributes {dimension_semantics = [#tpu.dimension_semantics<parallel>], iteration_bounds = array<i64: 2>, scalar_prefetch = 0 : i64, scratch_operands = 0 : i64, tpu.core_type = #tpu.core_type<tc>, window_params = [{transform_indices = @transform_0, window_bounds = array<i64: 512, 1024>}, {transform_indices = @transform_1, window_bounds = array<i64: 512, 1024>}]} {
    %c0 = arith.constant 0 : index
    %c0_0 = arith.constant 0 : index
    %0 = vector.load %arg1[%c0, %c0_0] : memref<512x1024xf32, #tpu.memory_space<vmem>>, vector<512x1024xf32>
    %cst = arith.constant 0.000000e+00 : f32
    %1 = vector.broadcast %cst : f32 to vector<512x1024xf32>
    %2 = arith.cmpf oge, %0, %1 : vector<512x1024xf32>
    %cst_1 = arith.constant 1.000000e-01 : f32
    %3 = vector.broadcast %cst_1 : f32 to vector<512x1024xf32>
    %4 = arith.mulf %3, %0 : vector<512x1024xf32>
    %5 = arith.select %2, %0, %4 : vector<512x1024xi1>, vector<512x1024xf32>
    %cst_2 = arith.constant 2.000000e+00 : f32
    %6 = vector.broadcast %cst_2 : f32 to vector<512x1024xf32>
    %7 = arith.mulf %5, %6 : vector<512x1024xf32>
    %c0_3 = arith.constant 0 : index
    %c0_4 = arith.constant 0 : index
    %8 = vector.load %arg2[%c0_3, %c0_4] : memref<512x1024xf32, #tpu.memory_space<vmem>>, vector<512x1024xf32>
    tpu.vector_store %arg2[%c0_3, %c0_4], %7 {strides = array<i32>} : memref<512x1024xf32, #tpu.memory_space<vmem>>, vector<512x1024xf32>,
    return
  }
  func.func @transform_0(%arg0: i32) -> (i32, i32) {
    %c0_i32 = arith.constant 0 : i32
    %c0_i32_0 = arith.constant 0 : i32
    return %arg0, %c0_i32 : i32, i32
  }
  func.func @transform_1(%arg0: i32) -> (i32, i32) {
    %c0_i32 = arith.constant 0 : i32
    %c0_i32_0 = arith.constant 0 : i32
    return %arg0, %c0_i32 : i32, i32
  }
}

</mosaic_0001>

<llo_original>
// kernel: tpu_custom_call.1
$region0: #{tpu_custom_call.1}
  #allocation0 [shape = 'u32[]', space=smem, size = 0x4, offset = 0x4, fixed_abs, tag = 'smem constant byte address 0x4 - core index']
  #allocation1 [shape = 'u32[144,128]{1,0:T(1,128)}', space=vmem, size = 0x12000, scoped, tag = 'internal scratch']
  %s0 = inlined_call_operand.hbm [shape: f32[750,1024], index: 0, kind: input, shape index: {}]
  %s1 = inlined_call_operand.hbm [shape: f32[750,1024], index: 1, kind: output, shape index: {}]
  %s2 = sld [smem:[#allocation0]]
  $region41: #{tpu_custom_call.1} parent=0
    _
  %s4 = ssub.s32 1, %s2
  %s5 = scalar_select 0, %s4, %s2
  $region1: #{tpu_custom_call.1} parent=0
    #allocation2 [shape = 'u8[4194304]{0}', space=vmem, size = 0x400000, scoped, tag = 'input window, operand 0']
    #allocation3 [shape = 's32[2]{0}', space=sflag, size = 0x8, scoped, tag = 'scoped memory for tpu_custom_call.1']
    #allocation4 [shape = 's32[2]{0}', space=sflag, size = 0x8, scoped, tag = 'scoped memory for tpu_custom_call.1']
    #allocation5 [shape = 'u8[4194304]{0}', space=vmem, size = 0x400000, scoped, tag = 'output window, operand 0']
    %6 = vsyncpa [#allocation3], 0
    %s7 = scalar_lea.sflag [#allocation3], 1
    %8 = vsyncpa %s7, 0
    %9 = vsyncpa [#allocation4], 0
    %s10 = scalar_lea.sflag [#allocation4], 1
    %11 = vsyncpa %s10, 0
    loop: start=0, step=1, limit=4
    $region2: #{tpu_custom_call.1} parent=1 // loop_pre_header
      _
    $region3: #{tpu_custom_call.1} parent=1 // loop_header
      %s13 = sphi 0, %s17
      %p14 = scmp.ge.s32.totalorder %s13, 4
      %s23 = sphi 0, %s25
      %s26 = sphi 0, %s23
      %s27 = sphi 0, %s26
      %s43 = sphi 0, %s27
      %s49 = sphi 0, %s51
      %s52 = sphi 0, %s49
      %s53 = sphi 0, %s52
      %s69 = sphi 0, %s53
    $region4: #{tpu_custom_call.1} parent=1 // loop_header_branch
      %16 = sbr.rel (%p14) target = $region8
    $region5: #{tpu_custom_call.1} parent=1 // loop_body
      %s18 = ssub.s32 %s13, 1
      %s19 = ssub.s32 %s13, 2
      %s20 = sadd.s32 %s13, 1
      %s21 = ssub.s32 %s13, %s20
      %p22 = scmp.eq.s32.totalorder %s21, 0
      %s24 = sadd.s32 %s23, 1
      %s25 = scalar_select %p22, %s23, %s24
      %p28 = pneg %p22
      %p29 = scmp.eq.s32.totalorder %s13, 1
      %p30 = por %p28, %p29
      %p31 = scmp.ne.s32.totalorder %s23, %s26
      %p32 = scmp.eq.s32.totalorder %s13, 0
      %p33 = por %p31, %p32
      %p34 = scmp.ne.s32.totalorder %s23, %s26
      %p35 = scmp.eq.s32.totalorder %s18, 1
      %p36 = por %p34, %p35
      %p37 = scmp.ne.s32.totalorder %s26, %s27
      %p38 = scmp.eq.s32.totalorder %s18, 0
      %p39 = por %p37, %p38
      %p40 = scmp.ne.s32.totalorder %s26, %s27
      %p41 = scmp.eq.s32.totalorder %s19, 1
      %p42 = por %p40, %p41
      %p44 = scmp.ne.s32.totalorder %s27, %s43
      %p45 = scmp.eq.s32.totalorder %s19, 0
      %p46 = por %p44, %p45
      %s47 = ssub.s32 %s13, %s20
      %p48 = scmp.eq.s32.totalorder %s47, 0
      %s50 = sadd.s32 %s49, 1
      %s51 = scalar_select %p48, %s49, %s50
      %p54 = pneg %p48
      %p55 = scmp.eq.s32.totalorder %s13, 1
      %p56 = por %p54, %p55
      %p57 = scmp.ne.s32.totalorder %s49, %s52
      %p58 = scmp.eq.s32.totalorder %s13, 0
      %p59 = por %p57, %p58
      %p60 = scmp.ne.s32.totalorder %s49, %s52
      %p61 = scmp.eq.s32.totalorder %s18, 1
      %p62 = por %p60, %p61
      %p63 = scmp.ne.s32.totalorder %s52, %s53
      %p64 = scmp.eq.s32.totalorder %s18, 0
      %p65 = por %p63, %p64
      %p66 = scmp.ne.s32.totalorder %s52, %s53
      %p67 = scmp.eq.s32.totalorder %s19, 1
      %p68 = por %p66, %p67
      %p70 = scmp.ne.s32.totalorder %s53, %s69
      %p71 = scmp.eq.s32.totalorder %s19, 0
      %p72 = por %p70, %p71
      %p73 = scmp.le.s32.totalorder 1, %s13
      %p74 = scmp.lt.s32.totalorder %s13, 3
      %p75 = pnand %p73, %p74
      %p76 = pneg %p75
      // Predicated region
      $region9: #{tpu_custom_call.1} parent=5 // pred_check
        _
      $region10: #{tpu_custom_call.1} parent=5 // pred_check_branch
        %78 = sbr.rel (%p75) target = $region12
      $region11: #{tpu_custom_call.1} parent=5 // pred_region
        %s79 = ssub.s32 %s13, 1
      $region12: #{tpu_custom_call.1} parent=5 // pred_fallthru
        _
      %p80 = scmp.lt.s32.totalorder %s13, 2
      // Predicated region
      $region13: #{tpu_custom_call.1} parent=5 // pred_check
        %p81 = pneg %p80
      $region14: #{tpu_custom_call.1} parent=5 // pred_check_branch
        %83 = sbr.rel (%p81) target = $region16
      $region15: #{tpu_custom_call.1} parent=5 // pred_region
        // Predicated region
        $region17: #{tpu_custom_call.1} parent=15 // pred_check
          %p84 = pneg %p33
        $region18: #{tpu_custom_call.1} parent=15 // pred_check_branch
          %86 = sbr.rel (%p84) target = $region20
        $region19: #{tpu_custom_call.1} parent=15 // pred_region
          %s87 = sand.u32 %s23, 1
          %s88 = scalar_lea.sflag [#allocation3], %s87
          %s89 = sand.u32 %s23, 1
          %s90 = smul.addr %s89, 4096
          %s91 = scalar_lea.vmem [#allocation2], %s90
          %s92 = smul.u32 64, %s13
          %s93 = ssub.s32 94, %s92
          %p94 = scmp.lt.s32.totalorder %s93, 64
          %s95 = scalar_select %p94, %s93, 64
          %s96 = smul.u32 128, %s95
          %s97 = smul.u32 %s96, 8
          %s99 = ssub.s32 65536, %s97
          %100 = vsyncadd %s88, %s99
          %p101 = scmp.ne.s32.totalorder 0, %s97
          %s102 = smul.addr %s92, 8
          %s103 = smul.addr %s102, 128
          %s104 = scalar_lea.hbm %s0, %s103
          %s105 = smul.u32 64, %s95
          %s106 = sshll.u32 %s91, 4
          %s107 = int_to_ptr.vmem [resolvable:$true] %s106
          %s108 = sshll.u32 %s105, 4
          %112 = dma.hbm_to_vmem [thread:$0]  (%p101), %s104, %s108, %s107, %s88, 1024, 1024, 64
        $region20: #{tpu_custom_call.1} parent=15 // pred_fallthru
          _
      $region16: #{tpu_custom_call.1} parent=5 // pred_fallthru
        _
      %p113 = scmp.le.s32.totalorder 1, %s13
      %p114 = scmp.lt.s32.totalorder %s13, 3
      %p115 = pnand %p113, %p114
      %p116 = pneg %p115
      // Predicated region
      $region21: #{tpu_custom_call.1} parent=5 // pred_check
        _
      $region22: #{tpu_custom_call.1} parent=5 // pred_check_branch
        %118 = sbr.rel (%p115) target = $region24
      $region23: #{tpu_custom_call.1} parent=5 // pred_region
        %s119 = ssub.s32 %s13, 1
        %s120 = sand.u32 %s26, 1
        %s121 = scalar_lea.sflag [#allocation3], %s120
        %s122 = sand.u32 %s26, 1
        %s123 = smul.addr %s122, 4096
        %s124 = scalar_lea.vmem [#allocation2], %s123
        // Predicated region
        $region25: #{tpu_custom_call.1} parent=23 // pred_check
          %p125 = pneg %p39
        $region26: #{tpu_custom_call.1} parent=23 // pred_check_branch
          %127 = sbr.rel (%p125) target = $region28
        $region27: #{tpu_custom_call.1} parent=23 // pred_region
          %128 = dma.done %s121, 65536
        $region28: #{tpu_custom_call.1} parent=23 // pred_fallthru
          _
        %s129 = sand.u32 %s26, 1
        %s130 = scalar_lea.sflag [#allocation3], %s129
        %s131 = sand.u32 %s26, 1
        %s132 = smul.addr %s131, 4096
        %s133 = scalar_lea.vmem [#allocation2], %s132
        %p134 = pneg %p39
        %p135 = pneg %p36
        %p136 = pneg %p65
        %p137 = pneg %p62
        %s138 = sand.u32 %s52, 1
        %s139 = scalar_lea.sflag [#allocation4], %s138
        %s140 = sand.u32 %s52, 1
        %s141 = smul.addr %s140, 4096
        %s142 = scalar_lea.vmem [#allocation5], %s141
        %s143 = smul.u32 64, %s18
        %s144 = ssub.s32 94, %s143
        %p145 = scmp.lt.s32.totalorder %s144, 64
        %s146 = scalar_select %p145, %s144, 64
        %s147 = smul.u32 128, %s146
        %s148 = smul.u32 %s147, 8
        %s149 = smul.u32 64, %s18
        %s150 = ssub.s32 94, %s149
        %p151 = scmp.lt.s32.totalorder %s150, 64
        %s152 = scalar_select %p151, %s150, 64
        %s153 = smul.u32 128, %s152
        %s154 = smul.u32 %s153, 8
        %v155 = vld [vmem:[%s124] sm:$0xff]
        %v156 = vld [vmem:[%s124 + $0x8] sm:$0xff]
        %v157 = vld [vmem:[%s124 + $0x10] sm:$0xff]
        %v158 = vld [vmem:[%s124 + $0x18] sm:$0xff]
        %v159 = vld [vmem:[%s124 + $0x20] sm:$0xff]
        %v160 = vld [vmem:[%s124 + $0x28] sm:$0xff]
        %v161 = vld [vmem:[%s124 + $0x30] sm:$0xff]
        %v162 = vld [vmem:[%s124 + $0x38] sm:$0xff]
        %v163 = vld [vmem:[%s124 + $0x40] sm:$0xff]
        %v164 = vld [vmem:[%s124 + $0x48] sm:$0xff]
        %v165 = vld [vmem:[%s124 + $0x50] sm:$0xff]
        %v166 = vld [vmem:[%s124 + $0x58] sm:$0xff]
        %v167 = vld [vmem:[%s124 + $0x60] sm:$0xff]
        %v168 = vld [vmem:[%s124 + $0x68] sm:$0xff]
        %v169 = vld [vmem:[%s124 + $0x70] sm:$0xff]
        %v170 = vld [vmem:[%s124 + $0x78] sm:$0xff]
        %v171 = vld [vmem:[%s124 + $0x80] sm:$0xff]
        %v172 = vld [vmem:[%s124 + $0x88] sm:$0xff]
        %v173 = vld [vmem:[%s124 + $0x90] sm:$0xff]
        %v174 = vld [vmem:[%s124 + $0x98] sm:$0xff]
        %v175 = vld [vmem:[%s124 + $0xa0] sm:$0xff]
        %v176 = vld [vmem:[%s124 + $0xa8] sm:$0xff]
        %v177 = vld [vmem:[%s124 + $0xb0] sm:$0xff]
        %v178 = vld [vmem:[%s124 + $0xb8] sm:$0xff]
        %v179 = vld [vmem:[%s124 + $0xc0] sm:$0xff]
        %v180 = vld [vmem:[%s124 + $0xc8] sm:$0xff]
        %v181 = vld [vmem:[%s124 + $0xd0] sm:$0xff]
        %v182 = vld [vmem:[%s124 + $0xd8] sm:$0xff]
        %v183 = vld [vmem:[%s124 + $0xe0] sm:$0xff]
        %v184 = vld [vmem:[%s124 + $0xe8] sm:$0xff]
        %v185 = vld [vmem:[%s124 + $0xf0] sm:$0xff]
        %v186 = vld [vmem:[%s124 + $0xf8] sm:$0xff]
        %v187 = vld [vmem:[%s124 + $0x100] sm:$0xff]
        %v188 = vld [vmem:[%s124 + $0x108] sm:$0xff]
        %v189 = vld [vmem:[%s124 + $0x110] sm:$0xff]
        %v190 = vld [vmem:[%s124 + $0x118] sm:$0xff]
        %v191 = vld [vmem:[%s124 + $0x120] sm:$0xff]
        %v192 = vld [vmem:[%s124 + $0x128] sm:$0xff]
        %v193 = vld [vmem:[%s124 + $0x130] sm:$0xff]
        %v194 = vld [vmem:[%s124 + $0x138] sm:$0xff]
        %v195 = vld [vmem:[%s124 + $0x140] sm:$0xff]
        %v196 = vld [vmem:[%s124 + $0x148] sm:$0xff]
        %v197 = vld [vmem:[%s124 + $0x150] sm:$0xff]
        %v198 = vld [vmem:[%s124 + $0x158] sm:$0xff]
        %v199 = vld [vmem:[%s124 + $0x160] sm:$0xff]
        %v200 = vld [vmem:[%s124 + $0x168] sm:$0xff]
        %v201 = vld [vmem:[%s124 + $0x170] sm:$0xff]
        %v202 = vld [vmem:[%s124 + $0x178] sm:$0xff]
        %v203 = vld [vmem:[%s124 + $0x180] sm:$0xff]
        %v204 = vld [vmem:[%s124 + $0x188] sm:$0xff]
        %v205 = vld [vmem:[%s124 + $0x190] sm:$0xff]
        %v206 = vld [vmem:[%s124 + $0x198] sm:$0xff]
        %v207 = vld [vmem:[%s124 + $0x1a0] sm:$0xff]
        %v208 = vld [vmem:[%s124 + $0x1a8] sm:$0xff]
        %v209 = vld [vmem:[%s124 + $0x1b0] sm:$0xff]
        %v210 = vld [vmem:[%s124 + $0x1b8] sm:$0xff]
        %v211 = vld [vmem:[%s124 + $0x1c0] sm:$0xff]
        %v212 = vld [vmem:[%s124 + $0x1c8] sm:$0xff]
        %v213 = vld [vmem:[%s124 + $0x1d0] sm:$0xff]
        %v214 = vld [vmem:[%s124 + $0x1d8] sm:$0xff]
        %v215 = vld [vmem:[%s124 + $0x1e0] sm:$0xff]
        %v216 = vld [vmem:[%s124 + $0x1e8] sm:$0xff]
        %v217 = vld [vmem:[%s124 + $0x1f0] sm:$0xff]
        %v218 = vld [vmem:[%s124 + $0x1f8] sm:$0xff]
        %v219 = vld [vmem:[%s124 + $0x200] sm:$0xff]
        %v220 = vld [vmem:[%s124 + $0x208] sm:$0xff]
        %v221 = vld [vmem:[%s124 + $0x210] sm:$0xff]
        %v222 = vld [vmem:[%s124 + $0x218] sm:$0xff]
        %v223 = vld [vmem:[%s124 + $0x220] sm:$0xff]
        %v224 = vld [vmem:[%s124 + $0x228] sm:$0xff]
        %v225 = vld [vmem:[%s124 + $0x230] sm:$0xff]
        %v226 = vld [vmem:[%s124 + $0x238] sm:$0xff]
        %v227 = vld [vmem:[%s124 + $0x240] sm:$0xff]
        %v228 = vld [vmem:[%s124 + $0x248] sm:$0xff]
        %v229 = vld [vmem:[%s124 + $0x250] sm:$0xff]
        %v230 = vld [vmem:[%s124 + $0x258] sm:$0xff]
        %v231 = vld [vmem:[%s124 + $0x260] sm:$0xff]
        %v232 = vld [vmem:[%s124 + $0x268] sm:$0xff]
        %v233 = vld [vmem:[%s124 + $0x270] sm:$0xff]
        %v234 = vld [vmem:[%s124 + $0x278] sm:$0xff]
        %v235 = vld [vmem:[%s124 + $0x280] sm:$0xff]
        %v236 = vld [vmem:[%s124 + $0x288] sm:$0xff]
        %v237 = vld [vmem:[%s124 + $0x290] sm:$0xff]
        %v238 = vld [vmem:[%s124 + $0x298] sm:$0xff]
        %v239 = vld [vmem:[%s124 + $0x2a0] sm:$0xff]
        %v240 = vld [vmem:[%s124 + $0x2a8] sm:$0xff]
        %v241 = vld [vmem:[%s124 + $0x2b0] sm:$0xff]
        %v242 = vld [vmem:[%s124 + $0x2b8] sm:$0xff]
        %v243 = vld [vmem:[%s124 + $0x2c0] sm:$0xff]
        %v244 = vld [vmem:[%s124 + $0x2c8] sm:$0xff]
        %v245 = vld [vmem:[%s124 + $0x2d0] sm:$0xff]
        %v246 = vld [vmem:[%s124 + $0x2d8] sm:$0xff]
        %v247 = vld [vmem:[%s124 + $0x2e0] sm:$0xff]
        %v248 = vld [vmem:[%s124 + $0x2e8] sm:$0xff]
        %v249 = vld [vmem:[%s124 + $0x2f0] sm:$0xff]
        %v250 = vld [vmem:[%s124 + $0x2f8] sm:$0xff]
        %v251 = vld [vmem:[%s124 + $0x300] sm:$0xff]
        %v252 = vld [vmem:[%s124 + $0x308] sm:$0xff]
        %v253 = vld [vmem:[%s124 + $0x310] sm:$0xff]
        %v254 = vld [vmem:[%s124 + $0x318] sm:$0xff]
        %v255 = vld [vmem:[%s124 + $0x320] sm:$0xff]
        %v256 = vld [vmem:[%s124 + $0x328] sm:$0xff]
        %v257 = vld [vmem:[%s124 + $0x330] sm:$0xff]
        %v258 = vld [vmem:[%s124 + $0x338] sm:$0xff]
        %v259 = vld [vmem:[%s124 + $0x340] sm:$0xff]
        %v260 = vld [vmem:[%s124 + $0x348] sm:$0xff]
        %v261 = vld [vmem:[%s124 + $0x350] sm:$0xff]
        %v262 = vld [vmem:[%s124 + $0x358] sm:$0xff]
        %v263 = vld [vmem:[%s124 + $0x360] sm:$0xff]
        %v264 = vld [vmem:[%s124 + $0x368] sm:$0xff]
        %v265 = vld [vmem:[%s124 + $0x370] sm:$0xff]
        %v266 = vld [vmem:[%s124 + $0x378] sm:$0xff]
        %v267 = vld [vmem:[%s124 + $0x380] sm:$0xff]
        %v268 = vld [vmem:[%s124 + $0x388] sm:$0xff]
        %v269 = vld [vmem:[%s124 + $0x390] sm:$0xff]
        %v270 = vld [vmem:[%s124 + $0x398] sm:$0xff]
        %v271 = vld [vmem:[%s124 + $0x3a0] sm:$0xff]
        %v272 = vld [vmem:[%s124 + $0x3a8] sm:$0xff]
        %v273 = vld [vmem:[%s124 + $0x3b0] sm:$0xff]
        %v274 = vld [vmem:[%s124 + $0x3b8] sm:$0xff]
        %v275 = vld [vmem:[%s124 + $0x3c0] sm:$0xff]
        %v276 = vld [vmem:[%s124 + $0x3c8] sm:$0xff]
        %v277 = vld [vmem:[%s124 + $0x3d0] sm:$0xff]
        %v278 = vld [vmem:[%s124 + $0x3d8] sm:$0xff]
        %v279 = vld [vmem:[%s124 + $0x3e0] sm:$0xff]
        %v280 = vld [vmem:[%s124 + $0x3e8] sm:$0xff]
        %v281 = vld [vmem:[%s124 + $0x3f0] sm:$0xff]
        %v282 = vld [vmem:[%s124 + $0x3f8] sm:$0xff]
        %v283 = vld [vmem:[%s124 + $0x400] sm:$0xff]
        %v284 = vld [vmem:[%s124 + $0x408] sm:$0xff]
        %v285 = vld [vmem:[%s124 + $0x410] sm:$0xff]
        %v286 = vld [vmem:[%s124 + $0x418] sm:$0xff]
        %v287 = vld [vmem:[%s124 + $0x420] sm:$0xff]
        %v288 = vld [vmem:[%s124 + $0x428] sm:$0xff]
        %v289 = vld [vmem:[%s124 + $0x430] sm:$0xff]
        %v290 = vld [vmem:[%s124 + $0x438] sm:$0xff]
        %v291 = vld [vmem:[%s124 + $0x440] sm:$0xff]
        %v292 = vld [vmem:[%s124 + $0x448] sm:$0xff]
        %v293 = vld [vmem:[%s124 + $0x450] sm:$0xff]
        %v294 = vld [vmem:[%s124 + $0x458] sm:$0xff]
        %v295 = vld [vmem:[%s124 + $0x460] sm:$0xff]
        %v296 = vld [vmem:[%s124 + $0x468] sm:$0xff]
        %v297 = vld [vmem:[%s124 + $0x470] sm:$0xff]
        %v298 = vld [vmem:[%s124 + $0x478] sm:$0xff]
        %v299 = vld [vmem:[%s124 + $0x480] sm:$0xff]
        %v300 = vld [vmem:[%s124 + $0x488] sm:$0xff]
        %v301 = vld [vmem:[%s124 + $0x490] sm:$0xff]
        %v302 = vld [vmem:[%s124 + $0x498] sm:$0xff]
        %v303 = vld [vmem:[%s124 + $0x4a0] sm:$0xff]
        %v304 = vld [vmem:[%s124 + $0x4a8] sm:$0xff]
        %v305 = vld [vmem:[%s124 + $0x4b0] sm:$0xff]
        %v306 = vld [vmem:[%s124 + $0x4b8] sm:$0xff]
        %v307 = vld [vmem:[%s124 + $0x4c0] sm:$0xff]
        %v308 = vld [vmem:[%s124 + $0x4c8] sm:$0xff]
        %v309 = vld [vmem:[%s124 + $0x4d0] sm:$0xff]
        %v310 = vld [vmem:[%s124 + $0x4d8] sm:$0xff]
        %v311 = vld [vmem:[%s124 + $0x4e0] sm:$0xff]
        %v312 = vld [vmem:[%s124 + $0x4e8] sm:$0xff]
        %v313 = vld [vmem:[%s124 + $0x4f0] sm:$0xff]
        %v314 = vld [vmem:[%s124 + $0x4f8] sm:$0xff]
        %v315 = vld [vmem:[%s124 + $0x500] sm:$0xff]
        %v316 = vld [vmem:[%s124 + $0x508] sm:$0xff]
        %v317 = vld [vmem:[%s124 + $0x510] sm:$0xff]
        %v318 = vld [vmem:[%s124 + $0x518] sm:$0xff]
        %v319 = vld [vmem:[%s124 + $0x520] sm:$0xff]
        %v320 = vld [vmem:[%s124 + $0x528] sm:$0xff]
        %v321 = vld [vmem:[%s124 + $0x530] sm:$0xff]
        %v322 = vld [vmem:[%s124 + $0x538] sm:$0xff]
        %v323 = vld [vmem:[%s124 + $0x540] sm:$0xff]
        %v324 = vld [vmem:[%s124 + $0x548] sm:$0xff]
        %v325 = vld [vmem:[%s124 + $0x550] sm:$0xff]
        %v326 = vld [vmem:[%s124 + $0x558] sm:$0xff]
        %v327 = vld [vmem:[%s124 + $0x560] sm:$0xff]
        %v328 = vld [vmem:[%s124 + $0x568] sm:$0xff]
        %v329 = vld [vmem:[%s124 + $0x570] sm:$0xff]
        %v330 = vld [vmem:[%s124 + $0x578] sm:$0xff]
        %v331 = vld [vmem:[%s124 + $0x580] sm:$0xff]
        %v332 = vld [vmem:[%s124 + $0x588] sm:$0xff]
        %v333 = vld [vmem:[%s124 + $0x590] sm:$0xff]
        %v334 = vld [vmem:[%s124 + $0x598] sm:$0xff]
        %v335 = vld [vmem:[%s124 + $0x5a0] sm:$0xff]
        %v336 = vld [vmem:[%s124 + $0x5a8] sm:$0xff]
        %v337 = vld [vmem:[%s124 + $0x5b0] sm:$0xff]
        %v338 = vld [vmem:[%s124 + $0x5b8] sm:$0xff]
        %v339 = vld [vmem:[%s124 + $0x5c0] sm:$0xff]
        %v340 = vld [vmem:[%s124 + $0x5c8] sm:$0xff]
        %v341 = vld [vmem:[%s124 + $0x5d0] sm:$0xff]
        %v342 = vld [vmem:[%s124 + $0x5d8] sm:$0xff]
        %v343 = vld [vmem:[%s124 + $0x5e0] sm:$0xff]
        %v344 = vld [vmem:[%s124 + $0x5e8] sm:$0xff]
        %v345 = vld [vmem:[%s124 + $0x5f0] sm:$0xff]
        %v346 = vld [vmem:[%s124 + $0x5f8] sm:$0xff]
        %v347 = vld [vmem:[%s124 + $0x600] sm:$0xff]
        %v348 = vld [vmem:[%s124 + $0x608] sm:$0xff]
        %v349 = vld [vmem:[%s124 + $0x610] sm:$0xff]
        %v350 = vld [vmem:[%s124 + $0x618] sm:$0xff]
        %v351 = vld [vmem:[%s124 + $0x620] sm:$0xff]
        %v352 = vld [vmem:[%s124 + $0x628] sm:$0xff]
        %v353 = vld [vmem:[%s124 + $0x630] sm:$0xff]
        %v354 = vld [vmem:[%s124 + $0x638] sm:$0xff]
        %v355 = vld [vmem:[%s124 + $0x640] sm:$0xff]
        %v356 = vld [vmem:[%s124 + $0x648] sm:$0xff]
        %v357 = vld [vmem:[%s124 + $0x650] sm:$0xff]
        %v358 = vld [vmem:[%s124 + $0x658] sm:$0xff]
        %v359 = vld [vmem:[%s124 + $0x660] sm:$0xff]
        %v360 = vld [vmem:[%s124 + $0x668] sm:$0xff]
        %v361 = vld [vmem:[%s124 + $0x670] sm:$0xff]
        %v362 = vld [vmem:[%s124 + $0x678] sm:$0xff]
        %v363 = vld [vmem:[%s124 + $0x680] sm:$0xff]
        %v364 = vld [vmem:[%s124 + $0x688] sm:$0xff]
        %v365 = vld [vmem:[%s124 + $0x690] sm:$0xff]
        %v366 = vld [vmem:[%s124 + $0x698] sm:$0xff]
        %v367 = vld [vmem:[%s124 + $0x6a0] sm:$0xff]
        %v368 = vld [vmem:[%s124 + $0x6a8] sm:$0xff]
        %v369 = vld [vmem:[%s124 + $0x6b0] sm:$0xff]
        %v370 = vld [vmem:[%s124 + $0x6b8] sm:$0xff]
        %v371 = vld [vmem:[%s124 + $0x6c0] sm:$0xff]
        %v372 = vld [vmem:[%s124 + $0x6c8] sm:$0xff]
        %v373 = vld [vmem:[%s124 + $0x6d0] sm:$0xff]
        %v374 = vld [vmem:[%s124 + $0x6d8] sm:$0xff]
        %v375 = vld [vmem:[%s124 + $0x6e0] sm:$0xff]
        %v376 = vld [vmem:[%s124 + $0x6e8] sm:$0xff]
        %v377 = vld [vmem:[%s124 + $0x6f0] sm:$0xff]
        %v378 = vld [vmem:[%s124 + $0x6f8] sm:$0xff]
        %v379 = vld [vmem:[%s124 + $0x700] sm:$0xff]
        %v380 = vld [vmem:[%s124 + $0x708] sm:$0xff]
        %v381 = vld [vmem:[%s124 + $0x710] sm:$0xff]
        %v382 = vld [vmem:[%s124 + $0x718] sm:$0xff]
        %v383 = vld [vmem:[%s124 + $0x720] sm:$0xff]
        %v384 = vld [vmem:[%s124 + $0x728] sm:$0xff]
        %v385 = vld [vmem:[%s124 + $0x730] sm:$0xff]
        %v386 = vld [vmem:[%s124 + $0x738] sm:$0xff]
        %v387 = vld [vmem:[%s124 + $0x740] sm:$0xff]
        %v388 = vld [vmem:[%s124 + $0x748] sm:$0xff]
        %v389 = vld [vmem:[%s124 + $0x750] sm:$0xff]
        %v390 = vld [vmem:[%s124 + $0x758] sm:$0xff]
        %v391 = vld [vmem:[%s124 + $0x760] sm:$0xff]
        %v392 = vld [vmem:[%s124 + $0x768] sm:$0xff]
        %v393 = vld [vmem:[%s124 + $0x770] sm:$0xff]
        %v394 = vld [vmem:[%s124 + $0x778] sm:$0xff]
        %v395 = vld [vmem:[%s124 + $0x780] sm:$0xff]
        %v396 = vld [vmem:[%s124 + $0x788] sm:$0xff]
        %v397 = vld [vmem:[%s124 + $0x790] sm:$0xff]
        %v398 = vld [vmem:[%s124 + $0x798] sm:$0xff]
        %v399 = vld [vmem:[%s124 + $0x7a0] sm:$0xff]
        %v400 = vld [vmem:[%s124 + $0x7a8] sm:$0xff]
        %v401 = vld [vmem:[%s124 + $0x7b0] sm:$0xff]
        %v402 = vld [vmem:[%s124 + $0x7b8] sm:$0xff]
        %v403 = vld [vmem:[%s124 + $0x7c0] sm:$0xff]
        %v404 = vld [vmem:[%s124 + $0x7c8] sm:$0xff]
        %v405 = vld [vmem:[%s124 + $0x7d0] sm:$0xff]
        %v406 = vld [vmem:[%s124 + $0x7d8] sm:$0xff]
        %v407 = vld [vmem:[%s124 + $0x7e0] sm:$0xff]
        %v408 = vld [vmem:[%s124 + $0x7e8] sm:$0xff]
        %v409 = vld [vmem:[%s124 + $0x7f0] sm:$0xff]
        %v410 = vld [vmem:[%s124 + $0x7f8] sm:$0xff]
        %v411 = vld [vmem:[%s124 + $0x800] sm:$0xff]
        %v412 = vld [vmem:[%s124 + $0x808] sm:$0xff]
        %v413 = vld [vmem:[%s124 + $0x810] sm:$0xff]
        %v414 = vld [vmem:[%s124 + $0x818] sm:$0xff]
        %v415 = vld [vmem:[%s124 + $0x820] sm:$0xff]
        %v416 = vld [vmem:[%s124 + $0x828] sm:$0xff]
        %v417 = vld [vmem:[%s124 + $0x830] sm:$0xff]
        %v418 = vld [vmem:[%s124 + $0x838] sm:$0xff]
        %v419 = vld [vmem:[%s124 + $0x840] sm:$0xff]
        %v420 = vld [vmem:[%s124 + $0x848] sm:$0xff]
        %v421 = vld [vmem:[%s124 + $0x850] sm:$0xff]
        %v422 = vld [vmem:[%s124 + $0x858] sm:$0xff]
        %v423 = vld [vmem:[%s124 + $0x860] sm:$0xff]
        %v424 = vld [vmem:[%s124 + $0x868] sm:$0xff]
        %v425 = vld [vmem:[%s124 + $0x870] sm:$0xff]
        %v426 = vld [vmem:[%s124 + $0x878] sm:$0xff]
        %v427 = vld [vmem:[%s124 + $0x880] sm:$0xff]
        %v428 = vld [vmem:[%s124 + $0x888] sm:$0xff]
        %v429 = vld [vmem:[%s124 + $0x890] sm:$0xff]
        %v430 = vld [vmem:[%s124 + $0x898] sm:$0xff]
        %v431 = vld [vmem:[%s124 + $0x8a0] sm:$0xff]
        %v432 = vld [vmem:[%s124 + $0x8a8] sm:$0xff]
        %v433 = vld [vmem:[%s124 + $0x8b0] sm:$0xff]
        %v434 = vld [vmem:[%s124 + $0x8b8] sm:$0xff]
        %v435 = vld [vmem:[%s124 + $0x8c0] sm:$0xff]
        %v436 = vld [vmem:[%s124 + $0x8c8] sm:$0xff]
        %v437 = vld [vmem:[%s124 + $0x8d0] sm:$0xff]
        %v438 = vld [vmem:[%s124 + $0x8d8] sm:$0xff]
        %v439 = vld [vmem:[%s124 + $0x8e0] sm:$0xff]
        %v440 = vld [vmem:[%s124 + $0x8e8] sm:$0xff]
        %v441 = vld [vmem:[%s124 + $0x8f0] sm:$0xff]
        %v442 = vld [vmem:[%s124 + $0x8f8] sm:$0xff]
        %v443 = vld [vmem:[%s124 + $0x900] sm:$0xff]
        %v444 = vld [vmem:[%s124 + $0x908] sm:$0xff]
        %v445 = vld [vmem:[%s124 + $0x910] sm:$0xff]
        %v446 = vld [vmem:[%s124 + $0x918] sm:$0xff]
        %v447 = vld [vmem:[%s124 + $0x920] sm:$0xff]
        %v448 = vld [vmem:[%s124 + $0x928] sm:$0xff]
        %v449 = vld [vmem:[%s124 + $0x930] sm:$0xff]
        %v450 = vld [vmem:[%s124 + $0x938] sm:$0xff]
        %v451 = vld [vmem:[%s124 + $0x940] sm:$0xff]
        %v452 = vld [vmem:[%s124 + $0x948] sm:$0xff]
        %v453 = vld [vmem:[%s124 + $0x950] sm:$0xff]
        %v454 = vld [vmem:[%s124 + $0x958] sm:$0xff]
        %v455 = vld [vmem:[%s124 + $0x960] sm:$0xff]
        %v456 = vld [vmem:[%s124 + $0x968] sm:$0xff]
        %v457 = vld [vmem:[%s124 + $0x970] sm:$0xff]
        %v458 = vld [vmem:[%s124 + $0x978] sm:$0xff]
        %v459 = vld [vmem:[%s124 + $0x980] sm:$0xff]
        %v460 = vld [vmem:[%s124 + $0x988] sm:$0xff]
        %v461 = vld [vmem:[%s124 + $0x990] sm:$0xff]
        %v462 = vld [vmem:[%s124 + $0x998] sm:$0xff]
        %v463 = vld [vmem:[%s124 + $0x9a0] sm:$0xff]
        %v464 = vld [vmem:[%s124 + $0x9a8] sm:$0xff]
        %v465 = vld [vmem:[%s124 + $0x9b0] sm:$0xff]
        %v466 = vld [vmem:[%s124 + $0x9b8] sm:$0xff]
        %v467 = vld [vmem:[%s124 + $0x9c0] sm:$0xff]
        %v468 = vld [vmem:[%s124 + $0x9c8] sm:$0xff]
        %v469 = vld [vmem:[%s124 + $0x9d0] sm:$0xff]
        %v470 = vld [vmem:[%s124 + $0x9d8] sm:$0xff]
        %v471 = vld [vmem:[%s124 + $0x9e0] sm:$0xff]
        %v472 = vld [vmem:[%s124 + $0x9e8] sm:$0xff]
        %v473 = vld [vmem:[%s124 + $0x9f0] sm:$0xff]
        %v474 = vld [vmem:[%s124 + $0x9f8] sm:$0xff]
        %v475 = vld [vmem:[%s124 + $0xa00] sm:$0xff]
        %v476 = vld [vmem:[%s124 + $0xa08] sm:$0xff]
        %v477 = vld [vmem:[%s124 + $0xa10] sm:$0xff]
        %v478 = vld [vmem:[%s124 + $0xa18] sm:$0xff]
        %v479 = vld [vmem:[%s124 + $0xa20] sm:$0xff]
        %v480 = vld [vmem:[%s124 + $0xa28] sm:$0xff]
        %v481 = vld [vmem:[%s124 + $0xa30] sm:$0xff]
        %v482 = vld [vmem:[%s124 + $0xa38] sm:$0xff]
        %v483 = vld [vmem:[%s124 + $0xa40] sm:$0xff]
        %v484 = vld [vmem:[%s124 + $0xa48] sm:$0xff]
        %v485 = vld [vmem:[%s124 + $0xa50] sm:$0xff]
        %v486 = vld [vmem:[%s124 + $0xa58] sm:$0xff]
        %v487 = vld [vmem:[%s124 + $0xa60] sm:$0xff]
        %v488 = vld [vmem:[%s124 + $0xa68] sm:$0xff]
        %v489 = vld [vmem:[%s124 + $0xa70] sm:$0xff]
        %v490 = vld [vmem:[%s124 + $0xa78] sm:$0xff]
        %v491 = vld [vmem:[%s124 + $0xa80] sm:$0xff]
        %v492 = vld [vmem:[%s124 + $0xa88] sm:$0xff]
        %v493 = vld [vmem:[%s124 + $0xa90] sm:$0xff]
        %v494 = vld [vmem:[%s124 + $0xa98] sm:$0xff]
        %v495 = vld [vmem:[%s124 + $0xaa0] sm:$0xff]
        %v496 = vld [vmem:[%s124 + $0xaa8] sm:$0xff]
        %v497 = vld [vmem:[%s124 + $0xab0] sm:$0xff]
        %v498 = vld [vmem:[%s124 + $0xab8] sm:$0xff]
        %v499 = vld [vmem:[%s124 + $0xac0] sm:$0xff]
        %v500 = vld [vmem:[%s124 + $0xac8] sm:$0xff]
        %v501 = vld [vmem:[%s124 + $0xad0] sm:$0xff]
        %v502 = vld [vmem:[%s124 + $0xad8] sm:$0xff]
        %v503 = vld [vmem:[%s124 + $0xae0] sm:$0xff]
        %v504 = vld [vmem:[%s124 + $0xae8] sm:$0xff]
        %v505 = vld [vmem:[%s124 + $0xaf0] sm:$0xff]
        %v506 = vld [vmem:[%s124 + $0xaf8] sm:$0xff]
        %v507 = vld [vmem:[%s124 + $0xb00] sm:$0xff]
        %v508 = vld [vmem:[%s124 + $0xb08] sm:$0xff]
        %v509 = vld [vmem:[%s124 + $0xb10] sm:$0xff]
        %v510 = vld [vmem:[%s124 + $0xb18] sm:$0xff]
        %v511 = vld [vmem:[%s124 + $0xb20] sm:$0xff]
        %v512 = vld [vmem:[%s124 + $0xb28] sm:$0xff]
        %v513 = vld [vmem:[%s124 + $0xb30] sm:$0xff]
        %v514 = vld [vmem:[%s124 + $0xb38] sm:$0xff]
        %v515 = vld [vmem:[%s124 + $0xb40] sm:$0xff]
        %v516 = vld [vmem:[%s124 + $0xb48] sm:$0xff]
        %v517 = vld [vmem:[%s124 + $0xb50] sm:$0xff]
        %v518 = vld [vmem:[%s124 + $0xb58] sm:$0xff]
        %v519 = vld [vmem:[%s124 + $0xb60] sm:$0xff]
        %v520 = vld [vmem:[%s124 + $0xb68] sm:$0xff]
        %v521 = vld [vmem:[%s124 + $0xb70] sm:$0xff]
        %v522 = vld [vmem:[%s124 + $0xb78] sm:$0xff]
        %v523 = vld [vmem:[%s124 + $0xb80] sm:$0xff]
        %v524 = vld [vmem:[%s124 + $0xb88] sm:$0xff]
        %v525 = vld [vmem:[%s124 + $0xb90] sm:$0xff]
        %v526 = vld [vmem:[%s124 + $0xb98] sm:$0xff]
        %v527 = vld [vmem:[%s124 + $0xba0] sm:$0xff]
        %v528 = vld [vmem:[%s124 + $0xba8] sm:$0xff]
        %v529 = vld [vmem:[%s124 + $0xbb0] sm:$0xff]
        %v530 = vld [vmem:[%s124 + $0xbb8] sm:$0xff]
        %v531 = vld [vmem:[%s124 + $0xbc0] sm:$0xff]
        %v532 = vld [vmem:[%s124 + $0xbc8] sm:$0xff]
        %v533 = vld [vmem:[%s124 + $0xbd0] sm:$0xff]
        %v534 = vld [vmem:[%s124 + $0xbd8] sm:$0xff]
        %v535 = vld [vmem:[%s124 + $0xbe0] sm:$0xff]
        %v536 = vld [vmem:[%s124 + $0xbe8] sm:$0xff]
        %v537 = vld [vmem:[%s124 + $0xbf0] sm:$0xff]
        %v538 = vld [vmem:[%s124 + $0xbf8] sm:$0xff]
        %v539 = vld [vmem:[%s124 + $0xc00] sm:$0xff]
        %v540 = vld [vmem:[%s124 + $0xc08] sm:$0xff]
        %v541 = vld [vmem:[%s124 + $0xc10] sm:$0xff]
        %v542 = vld [vmem:[%s124 + $0xc18] sm:$0xff]
        %v543 = vld [vmem:[%s124 + $0xc20] sm:$0xff]
        %v544 = vld [vmem:[%s124 + $0xc28] sm:$0xff]
        %v545 = vld [vmem:[%s124 + $0xc30] sm:$0xff]
        %v546 = vld [vmem:[%s124 + $0xc38] sm:$0xff]
        %v547 = vld [vmem:[%s124 + $0xc40] sm:$0xff]
        %v548 = vld [vmem:[%s124 + $0xc48] sm:$0xff]
        %v549 = vld [vmem:[%s124 + $0xc50] sm:$0xff]
        %v550 = vld [vmem:[%s124 + $0xc58] sm:$0xff]
        %v551 = vld [vmem:[%s124 + $0xc60] sm:$0xff]
        %v552 = vld [vmem:[%s124 + $0xc68] sm:$0xff]
        %v553 = vld [vmem:[%s124 + $0xc70] sm:$0xff]
        %v554 = vld [vmem:[%s124 + $0xc78] sm:$0xff]
        %v555 = vld [vmem:[%s124 + $0xc80] sm:$0xff]
        %v556 = vld [vmem:[%s124 + $0xc88] sm:$0xff]
        %v557 = vld [vmem:[%s124 + $0xc90] sm:$0xff]
        %v558 = vld [vmem:[%s124 + $0xc98] sm:$0xff]
        %v559 = vld [vmem:[%s124 + $0xca0] sm:$0xff]
        %v560 = vld [vmem:[%s124 + $0xca8] sm:$0xff]
        %v561 = vld [vmem:[%s124 + $0xcb0] sm:$0xff]
        %v562 = vld [vmem:[%s124 + $0xcb8] sm:$0xff]
        %v563 = vld [vmem:[%s124 + $0xcc0] sm:$0xff]
        %v564 = vld [vmem:[%s124 + $0xcc8] sm:$0xff]
        %v565 = vld [vmem:[%s124 + $0xcd0] sm:$0xff]
        %v566 = vld [vmem:[%s124 + $0xcd8] sm:$0xff]
        %v567 = vld [vmem:[%s124 + $0xce0] sm:$0xff]
        %v568 = vld [vmem:[%s124 + $0xce8] sm:$0xff]
        %v569 = vld [vmem:[%s124 + $0xcf0] sm:$0xff]
        %v570 = vld [vmem:[%s124 + $0xcf8] sm:$0xff]
        %v571 = vld [vmem:[%s124 + $0xd00] sm:$0xff]
        %v572 = vld [vmem:[%s124 + $0xd08] sm:$0xff]
        %v573 = vld [vmem:[%s124 + $0xd10] sm:$0xff]
        %v574 = vld [vmem:[%s124 + $0xd18] sm:$0xff]
        %v575 = vld [vmem:[%s124 + $0xd20] sm:$0xff]
        %v576 = vld [vmem:[%s124 + $0xd28] sm:$0xff]
        %v577 = vld [vmem:[%s124 + $0xd30] sm:$0xff]
        %v578 = vld [vmem:[%s124 + $0xd38] sm:$0xff]
        %v579 = vld [vmem:[%s124 + $0xd40] sm:$0xff]
        %v580 = vld [vmem:[%s124 + $0xd48] sm:$0xff]
        %v581 = vld [vmem:[%s124 + $0xd50] sm:$0xff]
        %v582 = vld [vmem:[%s124 + $0xd58] sm:$0xff]
        %v583 = vld [vmem:[%s124 + $0xd60] sm:$0xff]
        %v584 = vld [vmem:[%s124 + $0xd68] sm:$0xff]
        %v585 = vld [vmem:[%s124 + $0xd70] sm:$0xff]
        %v586 = vld [vmem:[%s124 + $0xd78] sm:$0xff]
        %v587 = vld [vmem:[%s124 + $0xd80] sm:$0xff]
        %v588 = vld [vmem:[%s124 + $0xd88] sm:$0xff]
        %v589 = vld [vmem:[%s124 + $0xd90] sm:$0xff]
        %v590 = vld [vmem:[%s124 + $0xd98] sm:$0xff]
        %v591 = vld [vmem:[%s124 + $0xda0] sm:$0xff]
        %v592 = vld [vmem:[%s124 + $0xda8] sm:$0xff]
        %v593 = vld [vmem:[%s124 + $0xdb0] sm:$0xff]
        %v594 = vld [vmem:[%s124 + $0xdb8] sm:$0xff]
        %v595 = vld [vmem:[%s124 + $0xdc0] sm:$0xff]
        %v596 = vld [vmem:[%s124 + $0xdc8] sm:$0xff]
        %v597 = vld [vmem:[%s124 + $0xdd0] sm:$0xff]
        %v598 = vld [vmem:[%s124 + $0xdd8] sm:$0xff]
        %v599 = vld [vmem:[%s124 + $0xde0] sm:$0xff]
        %v600 = vld [vmem:[%s124 + $0xde8] sm:$0xff]
        %v601 = vld [vmem:[%s124 + $0xdf0] sm:$0xff]
        %v602 = vld [vmem:[%s124 + $0xdf8] sm:$0xff]
        %v603 = vld [vmem:[%s124 + $0xe00] sm:$0xff]
        %v604 = vld [vmem:[%s124 + $0xe08] sm:$0xff]
        %v605 = vld [vmem:[%s124 + $0xe10] sm:$0xff]
        %v606 = vld [vmem:[%s124 + $0xe18] sm:$0xff]
        %v607 = vld [vmem:[%s124 + $0xe20] sm:$0xff]
        %v608 = vld [vmem:[%s124 + $0xe28] sm:$0xff]
        %v609 = vld [vmem:[%s124 + $0xe30] sm:$0xff]
        %v610 = vld [vmem:[%s124 + $0xe38] sm:$0xff]
        %v611 = vld [vmem:[%s124 + $0xe40] sm:$0xff]
        %v612 = vld [vmem:[%s124 + $0xe48] sm:$0xff]
        %v613 = vld [vmem:[%s124 + $0xe50] sm:$0xff]
        %v614 = vld [vmem:[%s124 + $0xe58] sm:$0xff]
        %v615 = vld [vmem:[%s124 + $0xe60] sm:$0xff]
        %v616 = vld [vmem:[%s124 + $0xe68] sm:$0xff]
        %v617 = vld [vmem:[%s124 + $0xe70] sm:$0xff]
        %v618 = vld [vmem:[%s124 + $0xe78] sm:$0xff]
        %v619 = vld [vmem:[%s124 + $0xe80] sm:$0xff]
        %v620 = vld [vmem:[%s124 + $0xe88] sm:$0xff]
        %v621 = vld [vmem:[%s124 + $0xe90] sm:$0xff]
        %v622 = vld [vmem:[%s124 + $0xe98] sm:$0xff]
        %v623 = vld [vmem:[%s124 + $0xea0] sm:$0xff]
        %v624 = vld [vmem:[%s124 + $0xea8] sm:$0xff]
        %v625 = vld [vmem:[%s124 + $0xeb0] sm:$0xff]
        %v626 = vld [vmem:[%s124 + $0xeb8] sm:$0xff]
        %v627 = vld [vmem:[%s124 + $0xec0] sm:$0xff]
        %v628 = vld [vmem:[%s124 + $0xec8] sm:$0xff]
        %v629 = vld [vmem:[%s124 + $0xed0] sm:$0xff]
        %v630 = vld [vmem:[%s124 + $0xed8] sm:$0xff]
        %v631 = vld [vmem:[%s124 + $0xee0] sm:$0xff]
        %v632 = vld [vmem:[%s124 + $0xee8] sm:$0xff]
        %v633 = vld [vmem:[%s124 + $0xef0] sm:$0xff]
        %v634 = vld [vmem:[%s124 + $0xef8] sm:$0xff]
        %v635 = vld [vmem:[%s124 + $0xf00] sm:$0xff]
        %v636 = vld [vmem:[%s124 + $0xf08] sm:$0xff]
        %v637 = vld [vmem:[%s124 + $0xf10] sm:$0xff]
        %v638 = vld [vmem:[%s124 + $0xf18] sm:$0xff]
        %v639 = vld [vmem:[%s124 + $0xf20] sm:$0xff]
        %v640 = vld [vmem:[%s124 + $0xf28] sm:$0xff]
        %v641 = vld [vmem:[%s124 + $0xf30] sm:$0xff]
        %v642 = vld [vmem:[%s124 + $0xf38] sm:$0xff]
        %v643 = vld [vmem:[%s124 + $0xf40] sm:$0xff]
        %v644 = vld [vmem:[%s124 + $0xf48] sm:$0xff]
        %v645 = vld [vmem:[%s124 + $0xf50] sm:$0xff]
        %v646 = vld [vmem:[%s124 + $0xf58] sm:$0xff]
        %v647 = vld [vmem:[%s124 + $0xf60] sm:$0xff]
        %v648 = vld [vmem:[%s124 + $0xf68] sm:$0xff]
        %v649 = vld [vmem:[%s124 + $0xf70] sm:$0xff]
        %v650 = vld [vmem:[%s124 + $0xf78] sm:$0xff]
        %v651 = vld [vmem:[%s124 + $0xf80] sm:$0xff]
        %v652 = vld [vmem:[%s124 + $0xf88] sm:$0xff]
        %v653 = vld [vmem:[%s124 + $0xf90] sm:$0xff]
        %v654 = vld [vmem:[%s124 + $0xf98] sm:$0xff]
        %v655 = vld [vmem:[%s124 + $0xfa0] sm:$0xff]
        %v656 = vld [vmem:[%s124 + $0xfa8] sm:$0xff]
        %v657 = vld [vmem:[%s124 + $0xfb0] sm:$0xff]
        %v658 = vld [vmem:[%s124 + $0xfb8] sm:$0xff]
        %v659 = vld [vmem:[%s124 + $0xfc0] sm:$0xff]
        %v660 = vld [vmem:[%s124 + $0xfc8] sm:$0xff]
        %v661 = vld [vmem:[%s124 + $0xfd0] sm:$0xff]
        %v662 = vld [vmem:[%s124 + $0xfd8] sm:$0xff]
        %v663 = vld [vmem:[%s124 + $0xfe0] sm:$0xff]
        %v664 = vld [vmem:[%s124 + $0xfe8] sm:$0xff]
        %v665 = vld [vmem:[%s124 + $0xff0] sm:$0xff]
        %v666 = vld [vmem:[%s124 + $0xff8] sm:$0xff]
        %vm667 = vcmp.ge.f32.partialorder %v155, 0.0
        %vm668 = vcmp.ge.f32.partialorder %v156, 0.0
        %vm669 = vcmp.ge.f32.partialorder %v157, 0.0
        %vm670 = vcmp.ge.f32.partialorder %v158, 0.0
        %vm671 = vcmp.ge.f32.partialorder %v159, 0.0
        %vm672 = vcmp.ge.f32.partialorder %v160, 0.0
        %vm673 = vcmp.ge.f32.partialorder %v161, 0.0
        %vm674 = vcmp.ge.f32.partialorder %v162, 0.0
        %vm675 = vcmp.ge.f32.partialorder %v163, 0.0
        %vm676 = vcmp.ge.f32.partialorder %v164, 0.0
        %vm677 = vcmp.ge.f32.partialorder %v165, 0.0
        %vm678 = vcmp.ge.f32.partialorder %v166, 0.0
        %vm679 = vcmp.ge.f32.partialorder %v167, 0.0
        %vm680 = vcmp.ge.f32.partialorder %v168, 0.0
        %vm681 = vcmp.ge.f32.partialorder %v169, 0.0
        %vm682 = vcmp.ge.f32.partialorder %v170, 0.0
        %vm683 = vcmp.ge.f32.partialorder %v171, 0.0
        %vm684 = vcmp.ge.f32.partialorder %v172, 0.0
        %vm685 = vcmp.ge.f32.partialorder %v173, 0.0
        %vm686 = vcmp.ge.f32.partialorder %v174, 0.0
        %vm687 = vcmp.ge.f32.partialorder %v175, 0.0
        %vm688 = vcmp.ge.f32.partialorder %v176, 0.0
        %vm689 = vcmp.ge.f32.partialorder %v177, 0.0
        %vm690 = vcmp.ge.f32.partialorder %v178, 0.0
        %vm691 = vcmp.ge.f32.partialorder %v179, 0.0
        %vm692 = vcmp.ge.f32.partialorder %v180, 0.0
        %vm693 = vcmp.ge.f32.partialorder %v181, 0.0
        %vm694 = vcmp.ge.f32.partialorder %v182, 0.0
        %vm695 = vcmp.ge.f32.partialorder %v183, 0.0
        %vm696 = vcmp.ge.f32.partialorder %v184, 0.0
        %vm697 = vcmp.ge.f32.partialorder %v185, 0.0
        %vm698 = vcmp.ge.f32.partialorder %v186, 0.0
        %vm699 = vcmp.ge.f32.partialorder %v187, 0.0
        %vm700 = vcmp.ge.f32.partialorder %v188, 0.0
        %vm701 = vcmp.ge.f32.partialorder %v189, 0.0
        %vm702 = vcmp.ge.f32.partialorder %v190, 0.0
        %vm703 = vcmp.ge.f32.partialorder %v191, 0.0
        %vm704 = vcmp.ge.f32.partialorder %v192, 0.0
        %vm705 = vcmp.ge.f32.partialorder %v193, 0.0
        %vm706 = vcmp.ge.f32.partialorder %v194, 0.0
        %vm707 = vcmp.ge.f32.partialorder %v195, 0.0
        %vm708 = vcmp.ge.f32.partialorder %v196, 0.0
        %vm709 = vcmp.ge.f32.partialorder %v197, 0.0
        %vm710 = vcmp.ge.f32.partialorder %v198, 0.0
        %vm711 = vcmp.ge.f32.partialorder %v199, 0.0
        %vm712 = vcmp.ge.f32.partialorder %v200, 0.0
        %vm713 = vcmp.ge.f32.partialorder %v201, 0.0
        %vm714 = vcmp.ge.f32.partialorder %v202, 0.0
        %vm715 = vcmp.ge.f32.partialorder %v203, 0.0
        %vm716 = vcmp.ge.f32.partialorder %v204, 0.0
        %vm717 = vcmp.ge.f32.partialorder %v205, 0.0
        %vm718 = vcmp.ge.f32.partialorder %v206, 0.0
        %vm719 = vcmp.ge.f32.partialorder %v207, 0.0
        %vm720 = vcmp.ge.f32.partialorder %v208, 0.0
        %vm721 = vcmp.ge.f32.partialorder %v209, 0.0
        %vm722 = vcmp.ge.f32.partialorder %v210, 0.0
        %vm723 = vcmp.ge.f32.partialorder %v211, 0.0
        %vm724 = vcmp.ge.f32.partialorder %v212, 0.0
        %vm725 = vcmp.ge.f32.partialorder %v213, 0.0
        %vm726 = vcmp.ge.f32.partialorder %v214, 0.0
        %vm727 = vcmp.ge.f32.partialorder %v215, 0.0
        %vm728 = vcmp.ge.f32.partialorder %v216, 0.0
        %vm729 = vcmp.ge.f32.partialorder %v217, 0.0
        %vm730 = vcmp.ge.f32.partialorder %v218, 0.0
        %vm731 = vcmp.ge.f32.partialorder %v219, 0.0
        %vm732 = vcmp.ge.f32.partialorder %v220, 0.0
        %vm733 = vcmp.ge.f32.partialorder %v221, 0.0
        %vm734 = vcmp.ge.f32.partialorder %v222, 0.0
        %vm735 = vcmp.ge.f32.partialorder %v223, 0.0
        %vm736 = vcmp.ge.f32.partialorder %v224, 0.0
        %vm737 = vcmp.ge.f32.partialorder %v225, 0.0
        %vm738 = vcmp.ge.f32.partialorder %v226, 0.0
        %vm739 = vcmp.ge.f32.partialorder %v227, 0.0
        %vm740 = vcmp.ge.f32.partialorder %v228, 0.0
        %vm741 = vcmp.ge.f32.partialorder %v229, 0.0
        %vm742 = vcmp.ge.f32.partialorder %v230, 0.0
        %vm743 = vcmp.ge.f32.partialorder %v231, 0.0
        %vm744 = vcmp.ge.f32.partialorder %v232, 0.0
        %vm745 = vcmp.ge.f32.partialorder %v233, 0.0
        %vm746 = vcmp.ge.f32.partialorder %v234, 0.0
        %vm747 = vcmp.ge.f32.partialorder %v235, 0.0
        %vm748 = vcmp.ge.f32.partialorder %v236, 0.0
        %vm749 = vcmp.ge.f32.partialorder %v237, 0.0
        %vm750 = vcmp.ge.f32.partialorder %v238, 0.0
        %vm751 = vcmp.ge.f32.partialorder %v239, 0.0
        %vm752 = vcmp.ge.f32.partialorder %v240, 0.0
        %vm753 = vcmp.ge.f32.partialorder %v241, 0.0
        %vm754 = vcmp.ge.f32.partialorder %v242, 0.0
        %vm755 = vcmp.ge.f32.partialorder %v243, 0.0
        %vm756 = vcmp.ge.f32.partialorder %v244, 0.0
        %vm757 = vcmp.ge.f32.partialorder %v245, 0.0
        %vm758 = vcmp.ge.f32.partialorder %v246, 0.0
        %vm759 = vcmp.ge.f32.partialorder %v247, 0.0
        %vm760 = vcmp.ge.f32.partialorder %v248, 0.0
        %vm761 = vcmp.ge.f32.partialorder %v249, 0.0
        %vm762 = vcmp.ge.f32.partialorder %v250, 0.0
        %vm763 = vcmp.ge.f32.partialorder %v251, 0.0
        %vm764 = vcmp.ge.f32.partialorder %v252, 0.0
        %vm765 = vcmp.ge.f32.partialorder %v253, 0.0
        %vm766 = vcmp.ge.f32.partialorder %v254, 0.0
        %vm767 = vcmp.ge.f32.partialorder %v255, 0.0
        %vm768 = vcmp.ge.f32.partialorder %v256, 0.0
        %vm769 = vcmp.ge.f32.partialorder %v257, 0.0
        %vm770 = vcmp.ge.f32.partialorder %v258, 0.0
        %vm771 = vcmp.ge.f32.partialorder %v259, 0.0
        %vm772 = vcmp.ge.f32.partialorder %v260, 0.0
        %vm773 = vcmp.ge.f32.partialorder %v261, 0.0
        %vm774 = vcmp.ge.f32.partialorder %v262, 0.0
        %vm775 = vcmp.ge.f32.partialorder %v263, 0.0
        %vm776 = vcmp.ge.f32.partialorder %v264, 0.0
        %vm777 = vcmp.ge.f32.partialorder %v265, 0.0
        %vm778 = vcmp.ge.f32.partialorder %v266, 0.0
        %vm779 = vcmp.ge.f32.partialorder %v267, 0.0
        %vm780 = vcmp.ge.f32.partialorder %v268, 0.0
        %vm781 = vcmp.ge.f32.partialorder %v269, 0.0
        %vm782 = vcmp.ge.f32.partialorder %v270, 0.0
        %vm783 = vcmp.ge.f32.partialorder %v271, 0.0
        %vm784 = vcmp.ge.f32.partialorder %v272, 0.0
        %vm785 = vcmp.ge.f32.partialorder %v273, 0.0
        %vm786 = vcmp.ge.f32.partialorder %v274, 0.0
        %vm787 = vcmp.ge.f32.partialorder %v275, 0.0
        %vm788 = vcmp.ge.f32.partialorder %v276, 0.0
        %vm789 = vcmp.ge.f32.partialorder %v277, 0.0
        %vm790 = vcmp.ge.f32.partialorder %v278, 0.0
        %vm791 = vcmp.ge.f32.partialorder %v279, 0.0
        %vm792 = vcmp.ge.f32.partialorder %v280, 0.0
        %vm793 = vcmp.ge.f32.partialorder %v281, 0.0
        %vm794 = vcmp.ge.f32.partialorder %v282, 0.0
        %vm795 = vcmp.ge.f32.partialorder %v283, 0.0
        %vm796 = vcmp.ge.f32.partialorder %v284, 0.0
        %vm797 = vcmp.ge.f32.partialorder %v285, 0.0
        %vm798 = vcmp.ge.f32.partialorder %v286, 0.0
        %vm799 = vcmp.ge.f32.partialorder %v287, 0.0
        %vm800 = vcmp.ge.f32.partialorder %v288, 0.0
        %vm801 = vcmp.ge.f32.partialorder %v289, 0.0
        %vm802 = vcmp.ge.f32.partialorder %v290, 0.0
        %vm803 = vcmp.ge.f32.partialorder %v291, 0.0
        %vm804 = vcmp.ge.f32.partialorder %v292, 0.0
        %vm805 = vcmp.ge.f32.partialorder %v293, 0.0
        %vm806 = vcmp.ge.f32.partialorder %v294, 0.0
        %vm807 = vcmp.ge.f32.partialorder %v295, 0.0
        %vm808 = vcmp.ge.f32.partialorder %v296, 0.0
        %vm809 = vcmp.ge.f32.partialorder %v297, 0.0
        %vm810 = vcmp.ge.f32.partialorder %v298, 0.0
        %vm811 = vcmp.ge.f32.partialorder %v299, 0.0
        %vm812 = vcmp.ge.f32.partialorder %v300, 0.0
        %vm813 = vcmp.ge.f32.partialorder %v301, 0.0
        %vm814 = vcmp.ge.f32.partialorder %v302, 0.0
        %vm815 = vcmp.ge.f32.partialorder %v303, 0.0
        %vm816 = vcmp.ge.f32.partialorder %v304, 0.0
        %vm817 = vcmp.ge.f32.partialorder %v305, 0.0
        %vm818 = vcmp.ge.f32.partialorder %v306, 0.0
        %vm819 = vcmp.ge.f32.partialorder %v307, 0.0
        %vm820 = vcmp.ge.f32.partialorder %v308, 0.0
        %vm821 = vcmp.ge.f32.partialorder %v309, 0.0
        %vm822 = vcmp.ge.f32.partialorder %v310, 0.0
        %vm823 = vcmp.ge.f32.partialorder %v311, 0.0
        %vm824 = vcmp.ge.f32.partialorder %v312, 0.0
        %vm825 = vcmp.ge.f32.partialorder %v313, 0.0
        %vm826 = vcmp.ge.f32.partialorder %v314, 0.0
        %vm827 = vcmp.ge.f32.partialorder %v315, 0.0
        %vm828 = vcmp.ge.f32.partialorder %v316, 0.0
        %vm829 = vcmp.ge.f32.partialorder %v317, 0.0
        %vm830 = vcmp.ge.f32.partialorder %v318, 0.0
        %vm831 = vcmp.ge.f32.partialorder %v319, 0.0
        %vm832 = vcmp.ge.f32.partialorder %v320, 0.0
        %vm833 = vcmp.ge.f32.partialorder %v321, 0.0
        %vm834 = vcmp.ge.f32.partialorder %v322, 0.0
        %vm835 = vcmp.ge.f32.partialorder %v323, 0.0
        %vm836 = vcmp.ge.f32.partialorder %v324, 0.0
        %vm837 = vcmp.ge.f32.partialorder %v325, 0.0
        %vm838 = vcmp.ge.f32.partialorder %v326, 0.0
        %vm839 = vcmp.ge.f32.partialorder %v327, 0.0
        %vm840 = vcmp.ge.f32.partialorder %v328, 0.0
        %vm841 = vcmp.ge.f32.partialorder %v329, 0.0
        %vm842 = vcmp.ge.f32.partialorder %v330, 0.0
        %vm843 = vcmp.ge.f32.partialorder %v331, 0.0
        %vm844 = vcmp.ge.f32.partialorder %v332, 0.0
        %vm845 = vcmp.ge.f32.partialorder %v333, 0.0
        %vm846 = vcmp.ge.f32.partialorder %v334, 0.0
        %vm847 = vcmp.ge.f32.partialorder %v335, 0.0
        %vm848 = vcmp.ge.f32.partialorder %v336, 0.0
        %vm849 = vcmp.ge.f32.partialorder %v337, 0.0
        %vm850 = vcmp.ge.f32.partialorder %v338, 0.0
        %vm851 = vcmp.ge.f32.partialorder %v339, 0.0
        %vm852 = vcmp.ge.f32.partialorder %v340, 0.0
        %vm853 = vcmp.ge.f32.partialorder %v341, 0.0
        %vm854 = vcmp.ge.f32.partialorder %v342, 0.0
        %vm855 = vcmp.ge.f32.partialorder %v343, 0.0
        %vm856 = vcmp.ge.f32.partialorder %v344, 0.0
        %vm857 = vcmp.ge.f32.partialorder %v345, 0.0
        %vm858 = vcmp.ge.f32.partialorder %v346, 0.0
        %vm859 = vcmp.ge.f32.partialorder %v347, 0.0
        %vm860 = vcmp.ge.f32.partialorder %v348, 0.0
        %vm861 = vcmp.ge.f32.partialorder %v349, 0.0
        %vm862 = vcmp.ge.f32.partialorder %v350, 0.0
        %vm863 = vcmp.ge.f32.partialorder %v351, 0.0
        %vm864 = vcmp.ge.f32.partialorder %v352, 0.0
        %vm865 = vcmp.ge.f32.partialorder %v353, 0.0
        %vm866 = vcmp.ge.f32.partialorder %v354, 0.0
        %vm867 = vcmp.ge.f32.partialorder %v355, 0.0
        %vm868 = vcmp.ge.f32.partialorder %v356, 0.0
        %vm869 = vcmp.ge.f32.partialorder %v357, 0.0
        %vm870 = vcmp.ge.f32.partialorder %v358, 0.0
        %vm871 = vcmp.ge.f32.partialorder %v359, 0.0
        %vm872 = vcmp.ge.f32.partialorder %v360, 0.0
        %vm873 = vcmp.ge.f32.partialorder %v361, 0.0
        %vm874 = vcmp.ge.f32.partialorder %v362, 0.0
        %vm875 = vcmp.ge.f32.partialorder %v363, 0.0
        %vm876 = vcmp.ge.f32.partialorder %v364, 0.0
        %vm877 = vcmp.ge.f32.partialorder %v365, 0.0
        %vm878 = vcmp.ge.f32.partialorder %v366, 0.0
        %vm879 = vcmp.ge.f32.partialorder %v367, 0.0
        %vm880 = vcmp.ge.f32.partialorder %v368, 0.0
        %vm881 = vcmp.ge.f32.partialorder %v369, 0.0
        %vm882 = vcmp.ge.f32.partialorder %v370, 0.0
        %vm883 = vcmp.ge.f32.partialorder %v371, 0.0
        %vm884 = vcmp.ge.f32.partialorder %v372, 0.0
        %vm885 = vcmp.ge.f32.partialorder %v373, 0.0
        %vm886 = vcmp.ge.f32.partialorder %v374, 0.0
        %vm887 = vcmp.ge.f32.partialorder %v375, 0.0
        %vm888 = vcmp.ge.f32.partialorder %v376, 0.0
        %vm889 = vcmp.ge.f32.partialorder %v377, 0.0
        %vm890 = vcmp.ge.f32.partialorder %v378, 0.0
        %vm891 = vcmp.ge.f32.partialorder %v379, 0.0
        %vm892 = vcmp.ge.f32.partialorder %v380, 0.0
        %vm893 = vcmp.ge.f32.partialorder %v381, 0.0
        %vm894 = vcmp.ge.f32.partialorder %v382, 0.0
        %vm895 = vcmp.ge.f32.partialorder %v383, 0.0
        %vm896 = vcmp.ge.f32.partialorder %v384, 0.0
        %vm897 = vcmp.ge.f32.partialorder %v385, 0.0
        %vm898 = vcmp.ge.f32.partialorder %v386, 0.0
        %vm899 = vcmp.ge.f32.partialorder %v387, 0.0
        %vm900 = vcmp.ge.f32.partialorder %v388, 0.0
        %vm901 = vcmp.ge.f32.partialorder %v389, 0.0
        %vm902 = vcmp.ge.f32.partialorder %v390, 0.0
        %vm903 = vcmp.ge.f32.partialorder %v391, 0.0
        %vm904 = vcmp.ge.f32.partialorder %v392, 0.0
        %vm905 = vcmp.ge.f32.partialorder %v393, 0.0
        %vm906 = vcmp.ge.f32.partialorder %v394, 0.0
        %vm907 = vcmp.ge.f32.partialorder %v395, 0.0
        %vm908 = vcmp.ge.f32.partialorder %v396, 0.0
        %vm909 = vcmp.ge.f32.partialorder %v397, 0.0
        %vm910 = vcmp.ge.f32.partialorder %v398, 0.0
        %vm911 = vcmp.ge.f32.partialorder %v399, 0.0
        %vm912 = vcmp.ge.f32.partialorder %v400, 0.0
        %vm913 = vcmp.ge.f32.partialorder %v401, 0.0
        %vm914 = vcmp.ge.f32.partialorder %v402, 0.0
        %vm915 = vcmp.ge.f32.partialorder %v403, 0.0
        %vm916 = vcmp.ge.f32.partialorder %v404, 0.0
        %vm917 = vcmp.ge.f32.partialorder %v405, 0.0
        %vm918 = vcmp.ge.f32.partialorder %v406, 0.0
        %vm919 = vcmp.ge.f32.partialorder %v407, 0.0
        %vm920 = vcmp.ge.f32.partialorder %v408, 0.0
        %vm921 = vcmp.ge.f32.partialorder %v409, 0.0
        %vm922 = vcmp.ge.f32.partialorder %v410, 0.0
        %vm923 = vcmp.ge.f32.partialorder %v411, 0.0
        %vm924 = vcmp.ge.f32.partialorder %v412, 0.0
        %vm925 = vcmp.ge.f32.partialorder %v413, 0.0
        %vm926 = vcmp.ge.f32.partialorder %v414, 0.0
        %vm927 = vcmp.ge.f32.partialorder %v415, 0.0
        %vm928 = vcmp.ge.f32.partialorder %v416, 0.0
        %vm929 = vcmp.ge.f32.partialorder %v417, 0.0
        %vm930 = vcmp.ge.f32.partialorder %v418, 0.0
        %vm931 = vcmp.ge.f32.partialorder %v419, 0.0
        %vm932 = vcmp.ge.f32.partialorder %v420, 0.0
        %vm933 = vcmp.ge.f32.partialorder %v421, 0.0
        %vm934 = vcmp.ge.f32.partialorder %v422, 0.0
        %vm935 = vcmp.ge.f32.partialorder %v423, 0.0
        %vm936 = vcmp.ge.f32.partialorder %v424, 0.0
        %vm937 = vcmp.ge.f32.partialorder %v425, 0.0
        %vm938 = vcmp.ge.f32.partialorder %v426, 0.0
        %vm939 = vcmp.ge.f32.partialorder %v427, 0.0
        %vm940 = vcmp.ge.f32.partialorder %v428, 0.0
        %vm941 = vcmp.ge.f32.partialorder %v429, 0.0
        %vm942 = vcmp.ge.f32.partialorder %v430, 0.0
        %vm943 = vcmp.ge.f32.partialorder %v431, 0.0
        %vm944 = vcmp.ge.f32.partialorder %v432, 0.0
        %vm945 = vcmp.ge.f32.partialorder %v433, 0.0
        %vm946 = vcmp.ge.f32.partialorder %v434, 0.0
        %vm947 = vcmp.ge.f32.partialorder %v435, 0.0
        %vm948 = vcmp.ge.f32.partialorder %v436, 0.0
        %vm949 = vcmp.ge.f32.partialorder %v437, 0.0
        %vm950 = vcmp.ge.f32.partialorder %v438, 0.0
        %vm951 = vcmp.ge.f32.partialorder %v439, 0.0
        %vm952 = vcmp.ge.f32.partialorder %v440, 0.0
        %vm953 = vcmp.ge.f32.partialorder %v441, 0.0
        %vm954 = vcmp.ge.f32.partialorder %v442, 0.0
        %vm955 = vcmp.ge.f32.partialorder %v443, 0.0
        %vm956 = vcmp.ge.f32.partialorder %v444, 0.0
        %vm957 = vcmp.ge.f32.partialorder %v445, 0.0
        %vm958 = vcmp.ge.f32.partialorder %v446, 0.0
        %vm959 = vcmp.ge.f32.partialorder %v447, 0.0
        %vm960 = vcmp.ge.f32.partialorder %v448, 0.0
        %vm961 = vcmp.ge.f32.partialorder %v449, 0.0
        %vm962 = vcmp.ge.f32.partialorder %v450, 0.0
        %vm963 = vcmp.ge.f32.partialorder %v451, 0.0
        %vm964 = vcmp.ge.f32.partialorder %v452, 0.0
        %vm965 = vcmp.ge.f32.partialorder %v453, 0.0
        %vm966 = vcmp.ge.f32.partialorder %v454, 0.0
        %vm967 = vcmp.ge.f32.partialorder %v455, 0.0
        %vm968 = vcmp.ge.f32.partialorder %v456, 0.0
        %vm969 = vcmp.ge.f32.partialorder %v457, 0.0
        %vm970 = vcmp.ge.f32.partialorder %v458, 0.0
        %vm971 = vcmp.ge.f32.partialorder %v459, 0.0
        %vm972 = vcmp.ge.f32.partialorder %v460, 0.0
        %vm973 = vcmp.ge.f32.partialorder %v461, 0.0
        %vm974 = vcmp.ge.f32.partialorder %v462, 0.0
        %vm975 = vcmp.ge.f32.partialorder %v463, 0.0
        %vm976 = vcmp.ge.f32.partialorder %v464, 0.0
        %vm977 = vcmp.ge.f32.partialorder %v465, 0.0
        %vm978 = vcmp.ge.f32.partialorder %v466, 0.0
        %vm979 = vcmp.ge.f32.partialorder %v467, 0.0
        %vm980 = vcmp.ge.f32.partialorder %v468, 0.0
        %vm981 = vcmp.ge.f32.partialorder %v469, 0.0
        %vm982 = vcmp.ge.f32.partialorder %v470, 0.0
        %vm983 = vcmp.ge.f32.partialorder %v471, 0.0
        %vm984 = vcmp.ge.f32.partialorder %v472, 0.0
        %vm985 = vcmp.ge.f32.partialorder %v473, 0.0
        %vm986 = vcmp.ge.f32.partialorder %v474, 0.0
        %vm987 = vcmp.ge.f32.partialorder %v475, 0.0
        %vm988 = vcmp.ge.f32.partialorder %v476, 0.0
        %vm989 = vcmp.ge.f32.partialorder %v477, 0.0
        %vm990 = vcmp.ge.f32.partialorder %v478, 0.0
        %vm991 = vcmp.ge.f32.partialorder %v479, 0.0
        %vm992 = vcmp.ge.f32.partialorder %v480, 0.0
        %vm993 = vcmp.ge.f32.partialorder %v481, 0.0
        %vm994 = vcmp.ge.f32.partialorder %v482, 0.0
        %vm995 = vcmp.ge.f32.partialorder %v483, 0.0
        %vm996 = vcmp.ge.f32.partialorder %v484, 0.0
        %vm997 = vcmp.ge.f32.partialorder %v485, 0.0
        %vm998 = vcmp.ge.f32.partialorder %v486, 0.0
        %vm999 = vcmp.ge.f32.partialorder %v487, 0.0
        %vm1000 = vcmp.ge.f32.partialorder %v488, 0.0
        %vm1001 = vcmp.ge.f32.partialorder %v489, 0.0
        %vm1002 = vcmp.ge.f32.partialorder %v490, 0.0
        %vm1003 = vcmp.ge.f32.partialorder %v491, 0.0
        %vm1004 = vcmp.ge.f32.partialorder %v492, 0.0
        %vm1005 = vcmp.ge.f32.partialorder %v493, 0.0
        %vm1006 = vcmp.ge.f32.partialorder %v494, 0.0
        %vm1007 = vcmp.ge.f32.partialorder %v495, 0.0
        %vm1008 = vcmp.ge.f32.partialorder %v496, 0.0
        %vm1009 = vcmp.ge.f32.partialorder %v497, 0.0
        %vm1010 = vcmp.ge.f32.partialorder %v498, 0.0
        %vm1011 = vcmp.ge.f32.partialorder %v499, 0.0
        %vm1012 = vcmp.ge.f32.partialorder %v500, 0.0
        %vm1013 = vcmp.ge.f32.partialorder %v501, 0.0
        %vm1014 = vcmp.ge.f32.partialorder %v502, 0.0
        %vm1015 = vcmp.ge.f32.partialorder %v503, 0.0
        %vm1016 = vcmp.ge.f32.partialorder %v504, 0.0
        %vm1017 = vcmp.ge.f32.partialorder %v505, 0.0
        %vm1018 = vcmp.ge.f32.partialorder %v506, 0.0
        %vm1019 = vcmp.ge.f32.partialorder %v507, 0.0
        %vm1020 = vcmp.ge.f32.partialorder %v508, 0.0
        %vm1021 = vcmp.ge.f32.partialorder %v509, 0.0
        %vm1022 = vcmp.ge.f32.partialorder %v510, 0.0
        %vm1023 = vcmp.ge.f32.partialorder %v511, 0.0
        %vm1024 = vcmp.ge.f32.partialorder %v512, 0.0
        %vm1025 = vcmp.ge.f32.partialorder %v513, 0.0
        %vm1026 = vcmp.ge.f32.partialorder %v514, 0.0
        %vm1027 = vcmp.ge.f32.partialorder %v515, 0.0
        %vm1028 = vcmp.ge.f32.partialorder %v516, 0.0
        %vm1029 = vcmp.ge.f32.partialorder %v517, 0.0
        %vm1030 = vcmp.ge.f32.partialorder %v518, 0.0
        %vm1031 = vcmp.ge.f32.partialorder %v519, 0.0
        %vm1032 = vcmp.ge.f32.partialorder %v520, 0.0
        %vm1033 = vcmp.ge.f32.partialorder %v521, 0.0
        %vm1034 = vcmp.ge.f32.partialorder %v522, 0.0
        %vm1035 = vcmp.ge.f32.partialorder %v523, 0.0
        %vm1036 = vcmp.ge.f32.partialorder %v524, 0.0
        %vm1037 = vcmp.ge.f32.partialorder %v525, 0.0
        %vm1038 = vcmp.ge.f32.partialorder %v526, 0.0
        %vm1039 = vcmp.ge.f32.partialorder %v527, 0.0
        %vm1040 = vcmp.ge.f32.partialorder %v528, 0.0
        %vm1041 = vcmp.ge.f32.partialorder %v529, 0.0
        %vm1042 = vcmp.ge.f32.partialorder %v530, 0.0
        %vm1043 = vcmp.ge.f32.partialorder %v531, 0.0
        %vm1044 = vcmp.ge.f32.partialorder %v532, 0.0
        %vm1045 = vcmp.ge.f32.partialorder %v533, 0.0
        %vm1046 = vcmp.ge.f32.partialorder %v534, 0.0
        %vm1047 = vcmp.ge.f32.partialorder %v535, 0.0
        %vm1048 = vcmp.ge.f32.partialorder %v536, 0.0
        %vm1049 = vcmp.ge.f32.partialorder %v537, 0.0
        %vm1050 = vcmp.ge.f32.partialorder %v538, 0.0
        %vm1051 = vcmp.ge.f32.partialorder %v539, 0.0
        %vm1052 = vcmp.ge.f32.partialorder %v540, 0.0
        %vm1053 = vcmp.ge.f32.partialorder %v541, 0.0
        %vm1054 = vcmp.ge.f32.partialorder %v542, 0.0
        %vm1055 = vcmp.ge.f32.partialorder %v543, 0.0
        %vm1056 = vcmp.ge.f32.partialorder %v544, 0.0
        %vm1057 = vcmp.ge.f32.partialorder %v545, 0.0
        %vm1058 = vcmp.ge.f32.partialorder %v546, 0.0
        %vm1059 = vcmp.ge.f32.partialorder %v547, 0.0
        %vm1060 = vcmp.ge.f32.partialorder %v548, 0.0
        %vm1061 = vcmp.ge.f32.partialorder %v549, 0.0
        %vm1062 = vcmp.ge.f32.partialorder %v550, 0.0
        %vm1063 = vcmp.ge.f32.partialorder %v551, 0.0
        %vm1064 = vcmp.ge.f32.partialorder %v552, 0.0
        %vm1065 = vcmp.ge.f32.partialorder %v553, 0.0
        %vm1066 = vcmp.ge.f32.partialorder %v554, 0.0
        %vm1067 = vcmp.ge.f32.partialorder %v555, 0.0
        %vm1068 = vcmp.ge.f32.partialorder %v556, 0.0
        %vm1069 = vcmp.ge.f32.partialorder %v557, 0.0
        %vm1070 = vcmp.ge.f32.partialorder %v558, 0.0
        %vm1071 = vcmp.ge.f32.partialorder %v559, 0.0
        %vm1072 = vcmp.ge.f32.partialorder %v560, 0.0
        %vm1073 = vcmp.ge.f32.partialorder %v561, 0.0
        %vm1074 = vcmp.ge.f32.partialorder %v562, 0.0
        %vm1075 = vcmp.ge.f32.partialorder %v563, 0.0
        %vm1076 = vcmp.ge.f32.partialorder %v564, 0.0
        %vm1077 = vcmp.ge.f32.partialorder %v565, 0.0
        %vm1078 = vcmp.ge.f32.partialorder %v566, 0.0
        %vm1079 = vcmp.ge.f32.partialorder %v567, 0.0
        %vm1080 = vcmp.ge.f32.partialorder %v568, 0.0
        %vm1081 = vcmp.ge.f32.partialorder %v569, 0.0
        %vm1082 = vcmp.ge.f32.partialorder %v570, 0.0
        %vm1083 = vcmp.ge.f32.partialorder %v571, 0.0
        %vm1084 = vcmp.ge.f32.partialorder %v572, 0.0
        %vm1085 = vcmp.ge.f32.partialorder %v573, 0.0
        %vm1086 = vcmp.ge.f32.partialorder %v574, 0.0
        %vm1087 = vcmp.ge.f32.partialorder %v575, 0.0
        %vm1088 = vcmp.ge.f32.partialorder %v576, 0.0
        %vm1089 = vcmp.ge.f32.partialorder %v577, 0.0
        %vm1090 = vcmp.ge.f32.partialorder %v578, 0.0
        %vm1091 = vcmp.ge.f32.partialorder %v579, 0.0
        %vm1092 = vcmp.ge.f32.partialorder %v580, 0.0
        %vm1093 = vcmp.ge.f32.partialorder %v581, 0.0
        %vm1094 = vcmp.ge.f32.partialorder %v582, 0.0
        %vm1095 = vcmp.ge.f32.partialorder %v583, 0.0
        %vm1096 = vcmp.ge.f32.partialorder %v584, 0.0
        %vm1097 = vcmp.ge.f32.partialorder %v585, 0.0
        %vm1098 = vcmp.ge.f32.partialorder %v586, 0.0
        %vm1099 = vcmp.ge.f32.partialorder %v587, 0.0
        %vm1100 = vcmp.ge.f32.partialorder %v588, 0.0
        %vm1101 = vcmp.ge.f32.partialorder %v589, 0.0
        %vm1102 = vcmp.ge.f32.partialorder %v590, 0.0
        %vm1103 = vcmp.ge.f32.partialorder %v591, 0.0
        %vm1104 = vcmp.ge.f32.partialorder %v592, 0.0
        %vm1105 = vcmp.ge.f32.partialorder %v593, 0.0
        %vm1106 = vcmp.ge.f32.partialorder %v594, 0.0
        %vm1107 = vcmp.ge.f32.partialorder %v595, 0.0
        %vm1108 = vcmp.ge.f32.partialorder %v596, 0.0
        %vm1109 = vcmp.ge.f32.partialorder %v597, 0.0
        %vm1110 = vcmp.ge.f32.partialorder %v598, 0.0
        %vm1111 = vcmp.ge.f32.partialorder %v599, 0.0
        %vm1112 = vcmp.ge.f32.partialorder %v600, 0.0
        %vm1113 = vcmp.ge.f32.partialorder %v601, 0.0
        %vm1114 = vcmp.ge.f32.partialorder %v602, 0.0
        %vm1115 = vcmp.ge.f32.partialorder %v603, 0.0
        %vm1116 = vcmp.ge.f32.partialorder %v604, 0.0
        %vm1117 = vcmp.ge.f32.partialorder %v605, 0.0
        %vm1118 = vcmp.ge.f32.partialorder %v606, 0.0
        %vm1119 = vcmp.ge.f32.partialorder %v607, 0.0
        %vm1120 = vcmp.ge.f32.partialorder %v608, 0.0
        %vm1121 = vcmp.ge.f32.partialorder %v609, 0.0
        %vm1122 = vcmp.ge.f32.partialorder %v610, 0.0
        %vm1123 = vcmp.ge.f32.partialorder %v611, 0.0
        %vm1124 = vcmp.ge.f32.partialorder %v612, 0.0
        %vm1125 = vcmp.ge.f32.partialorder %v613, 0.0
        %vm1126 = vcmp.ge.f32.partialorder %v614, 0.0
        %vm1127 = vcmp.ge.f32.partialorder %v615, 0.0
        %vm1128 = vcmp.ge.f32.partialorder %v616, 0.0
        %vm1129 = vcmp.ge.f32.partialorder %v617, 0.0
        %vm1130 = vcmp.ge.f32.partialorder %v618, 0.0
        %vm1131 = vcmp.ge.f32.partialorder %v619, 0.0
        %vm1132 = vcmp.ge.f32.partialorder %v620, 0.0
        %vm1133 = vcmp.ge.f32.partialorder %v621, 0.0
        %vm1134 = vcmp.ge.f32.partialorder %v622, 0.0
        %vm1135 = vcmp.ge.f32.partialorder %v623, 0.0
        %vm1136 = vcmp.ge.f32.partialorder %v624, 0.0
        %vm1137 = vcmp.ge.f32.partialorder %v625, 0.0
        %vm1138 = vcmp.ge.f32.partialorder %v626, 0.0
        %vm1139 = vcmp.ge.f32.partialorder %v627, 0.0
        %vm1140 = vcmp.ge.f32.partialorder %v628, 0.0
        %vm1141 = vcmp.ge.f32.partialorder %v629, 0.0
        %vm1142 = vcmp.ge.f32.partialorder %v630, 0.0
        %vm1143 = vcmp.ge.f32.partialorder %v631, 0.0
        %vm1144 = vcmp.ge.f32.partialorder %v632, 0.0
        %vm1145 = vcmp.ge.f32.partialorder %v633, 0.0
        %vm1146 = vcmp.ge.f32.partialorder %v634, 0.0
        %vm1147 = vcmp.ge.f32.partialorder %v635, 0.0
        %vm1148 = vcmp.ge.f32.partialorder %v636, 0.0
        %vm1149 = vcmp.ge.f32.partialorder %v637, 0.0
        %vm1150 = vcmp.ge.f32.partialorder %v638, 0.0
        %vm1151 = vcmp.ge.f32.partialorder %v639, 0.0
        %vm1152 = vcmp.ge.f32.partialorder %v640, 0.0
        %vm1153 = vcmp.ge.f32.partialorder %v641, 0.0
        %vm1154 = vcmp.ge.f32.partialorder %v642, 0.0
        %vm1155 = vcmp.ge.f32.partialorder %v643, 0.0
        %vm1156 = vcmp.ge.f32.partialorder %v644, 0.0
        %vm1157 = vcmp.ge.f32.partialorder %v645, 0.0
        %vm1158 = vcmp.ge.f32.partialorder %v646, 0.0
        %vm1159 = vcmp.ge.f32.partialorder %v647, 0.0
        %vm1160 = vcmp.ge.f32.partialorder %v648, 0.0
        %vm1161 = vcmp.ge.f32.partialorder %v649, 0.0
        %vm1162 = vcmp.ge.f32.partialorder %v650, 0.0
        %vm1163 = vcmp.ge.f32.partialorder %v651, 0.0
        %vm1164 = vcmp.ge.f32.partialorder %v652, 0.0
        %vm1165 = vcmp.ge.f32.partialorder %v653, 0.0
        %vm1166 = vcmp.ge.f32.partialorder %v654, 0.0
        %vm1167 = vcmp.ge.f32.partialorder %v655, 0.0
        %vm1168 = vcmp.ge.f32.partialorder %v656, 0.0
        %vm1169 = vcmp.ge.f32.partialorder %v657, 0.0
        %vm1170 = vcmp.ge.f32.partialorder %v658, 0.0
        %vm1171 = vcmp.ge.f32.partialorder %v659, 0.0
        %vm1172 = vcmp.ge.f32.partialorder %v660, 0.0
        %vm1173 = vcmp.ge.f32.partialorder %v661, 0.0
        %vm1174 = vcmp.ge.f32.partialorder %v662, 0.0
        %vm1175 = vcmp.ge.f32.partialorder %v663, 0.0
        %vm1176 = vcmp.ge.f32.partialorder %v664, 0.0
        %vm1177 = vcmp.ge.f32.partialorder %v665, 0.0
        %vm1178 = vcmp.ge.f32.partialorder %v666, 0.0
        %v1179 = vmul.f32 %v155, 0.1
        %v1180 = vmul.f32 %v156, 0.1
        %v1181 = vmul.f32 %v157, 0.1
        %v1182 = vmul.f32 %v158, 0.1
        %v1183 = vmul.f32 %v159, 0.1
        %v1184 = vmul.f32 %v160, 0.1
        %v1185 = vmul.f32 %v161, 0.1
        %v1186 = vmul.f32 %v162, 0.1
        %v1187 = vmul.f32 %v163, 0.1
        %v1188 = vmul.f32 %v164, 0.1
        %v1189 = vmul.f32 %v165, 0.1
        %v1190 = vmul.f32 %v166, 0.1
        %v1191 = vmul.f32 %v167, 0.1
        %v1192 = vmul.f32 %v168, 0.1
        %v1193 = vmul.f32 %v169, 0.1
        %v1194 = vmul.f32 %v170, 0.1
        %v1195 = vmul.f32 %v171, 0.1
        %v1196 = vmul.f32 %v172, 0.1
        %v1197 = vmul.f32 %v173, 0.1
        %v1198 = vmul.f32 %v174, 0.1
        %v1199 = vmul.f32 %v175, 0.1
        %v1200 = vmul.f32 %v176, 0.1
        %v1201 = vmul.f32 %v177, 0.1
        %v1202 = vmul.f32 %v178, 0.1
        %v1203 = vmul.f32 %v179, 0.1
        %v1204 = vmul.f32 %v180, 0.1
        %v1205 = vmul.f32 %v181, 0.1
        %v1206 = vmul.f32 %v182, 0.1
        %v1207 = vmul.f32 %v183, 0.1
        %v1208 = vmul.f32 %v184, 0.1
        %v1209 = vmul.f32 %v185, 0.1
        %v1210 = vmul.f32 %v186, 0.1
        %v1211 = vmul.f32 %v187, 0.1
        %v1212 = vmul.f32 %v188, 0.1
        %v1213 = vmul.f32 %v189, 0.1
        %v1214 = vmul.f32 %v190, 0.1
        %v1215 = vmul.f32 %v191, 0.1
        %v1216 = vmul.f32 %v192, 0.1
        %v1217 = vmul.f32 %v193, 0.1
        %v1218 = vmul.f32 %v194, 0.1
        %v1219 = vmul.f32 %v195, 0.1
        %v1220 = vmul.f32 %v196, 0.1
        %v1221 = vmul.f32 %v197, 0.1
        %v1222 = vmul.f32 %v198, 0.1
        %v1223 = vmul.f32 %v199, 0.1
        %v1224 = vmul.f32 %v200, 0.1
        %v1225 = vmul.f32 %v201, 0.1
        %v1226 = vmul.f32 %v202, 0.1
        %v1227 = vmul.f32 %v203, 0.1
        %v1228 = vmul.f32 %v204, 0.1
        %v1229 = vmul.f32 %v205, 0.1
        %v1230 = vmul.f32 %v206, 0.1
        %v1231 = vmul.f32 %v207, 0.1
        %v1232 = vmul.f32 %v208, 0.1
        %v1233 = vmul.f32 %v209, 0.1
        %v1234 = vmul.f32 %v210, 0.1
        %v1235 = vmul.f32 %v211, 0.1
        %v1236 = vmul.f32 %v212, 0.1
        %v1237 = vmul.f32 %v213, 0.1
        %v1238 = vmul.f32 %v214, 0.1
        %v1239 = vmul.f32 %v215, 0.1
        %v1240 = vmul.f32 %v216, 0.1
        %v1241 = vmul.f32 %v217, 0.1
        %v1242 = vmul.f32 %v218, 0.1
        %v1243 = vmul.f32 %v219, 0.1
        %v1244 = vmul.f32 %v220, 0.1
        %v1245 = vmul.f32 %v221, 0.1
        %v1246 = vmul.f32 %v222, 0.1
        %v1247 = vmul.f32 %v223, 0.1
        %v1248 = vmul.f32 %v224, 0.1
        %v1249 = vmul.f32 %v225, 0.1
        %v1250 = vmul.f32 %v226, 0.1
        %v1251 = vmul.f32 %v227, 0.1
        %v1252 = vmul.f32 %v228, 0.1
        %v1253 = vmul.f32 %v229, 0.1
        %v1254 = vmul.f32 %v230, 0.1
        %v1255 = vmul.f32 %v231, 0.1
        %v1256 = vmul.f32 %v232, 0.1
        %v1257 = vmul.f32 %v233, 0.1
        %v1258 = vmul.f32 %v234, 0.1
        %v1259 = vmul.f32 %v235, 0.1
        %v1260 = vmul.f32 %v236, 0.1
        %v1261 = vmul.f32 %v237, 0.1
        %v1262 = vmul.f32 %v238, 0.1
        %v1263 = vmul.f32 %v239, 0.1
        %v1264 = vmul.f32 %v240, 0.1
        %v1265 = vmul.f32 %v241, 0.1
        %v1266 = vmul.f32 %v242, 0.1
        %v1267 = vmul.f32 %v243, 0.1
        %v1268 = vmul.f32 %v244, 0.1
        %v1269 = vmul.f32 %v245, 0.1
        %v1270 = vmul.f32 %v246, 0.1
        %v1271 = vmul.f32 %v247, 0.1
        %v1272 = vmul.f32 %v248, 0.1
        %v1273 = vmul.f32 %v249, 0.1
        %v1274 = vmul.f32 %v250, 0.1
        %v1275 = vmul.f32 %v251, 0.1
        %v1276 = vmul.f32 %v252, 0.1
        %v1277 = vmul.f32 %v253, 0.1
        %v1278 = vmul.f32 %v254, 0.1
        %v1279 = vmul.f32 %v255, 0.1
        %v1280 = vmul.f32 %v256, 0.1
        %v1281 = vmul.f32 %v257, 0.1
        %v1282 = vmul.f32 %v258, 0.1
        %v1283 = vmul.f32 %v259, 0.1
        %v1284 = vmul.f32 %v260, 0.1
        %v1285 = vmul.f32 %v261, 0.1
        %v1286 = vmul.f32 %v262, 0.1
        %v1287 = vmul.f32 %v263, 0.1
        %v1288 = vmul.f32 %v264, 0.1
        %v1289 = vmul.f32 %v265, 0.1
        %v1290 = vmul.f32 %v266, 0.1
        %v1291 = vmul.f32 %v267, 0.1
        %v1292 = vmul.f32 %v268, 0.1
        %v1293 = vmul.f32 %v269, 0.1
        %v1294 = vmul.f32 %v270, 0.1
        %v1295 = vmul.f32 %v271, 0.1
        %v1296 = vmul.f32 %v272, 0.1
        %v1297 = vmul.f32 %v273, 0.1
        %v1298 = vmul.f32 %v274, 0.1
        %v1299 = vmul.f32 %v275, 0.1
        %v1300 = vmul.f32 %v276, 0.1
        %v1301 = vmul.f32 %v277, 0.1
        %v1302 = vmul.f32 %v278, 0.1
        %v1303 = vmul.f32 %v279, 0.1
        %v1304 = vmul.f32 %v280, 0.1
        %v1305 = vmul.f32 %v281, 0.1
        %v1306 = vmul.f32 %v282, 0.1
        %v1307 = vmul.f32 %v283, 0.1
        %v1308 = vmul.f32 %v284, 0.1
        %v1309 = vmul.f32 %v285, 0.1
        %v1310 = vmul.f32 %v286, 0.1
        %v1311 = vmul.f32 %v287, 0.1
        %v1312 = vmul.f32 %v288, 0.1
        %v1313 = vmul.f32 %v289, 0.1
        %v1314 = vmul.f32 %v290, 0.1
        %v1315 = vmul.f32 %v291, 0.1
        %v1316 = vmul.f32 %v292, 0.1
        %v1317 = vmul.f32 %v293, 0.1
        %v1318 = vmul.f32 %v294, 0.1
        %v1319 = vmul.f32 %v295, 0.1
        %v1320 = vmul.f32 %v296, 0.1
        %v1321 = vmul.f32 %v297, 0.1
        %v1322 = vmul.f32 %v298, 0.1
        %v1323 = vmul.f32 %v299, 0.1
        %v1324 = vmul.f32 %v300, 0.1
        %v1325 = vmul.f32 %v301, 0.1
        %v1326 = vmul.f32 %v302, 0.1
        %v1327 = vmul.f32 %v303, 0.1
        %v1328 = vmul.f32 %v304, 0.1
        %v1329 = vmul.f32 %v305, 0.1
        %v1330 = vmul.f32 %v306, 0.1
        %v1331 = vmul.f32 %v307, 0.1
        %v1332 = vmul.f32 %v308, 0.1
        %v1333 = vmul.f32 %v309, 0.1
        %v1334 = vmul.f32 %v310, 0.1
        %v1335 = vmul.f32 %v311, 0.1
        %v1336 = vmul.f32 %v312, 0.1
        %v1337 = vmul.f32 %v313, 0.1
        %v1338 = vmul.f32 %v314, 0.1
        %v1339 = vmul.f32 %v315, 0.1
        %v1340 = vmul.f32 %v316, 0.1
        %v1341 = vmul.f32 %v317, 0.1
        %v1342 = vmul.f32 %v318, 0.1
        %v1343 = vmul.f32 %v319, 0.1
        %v1344 = vmul.f32 %v320, 0.1
        %v1345 = vmul.f32 %v321, 0.1
        %v1346 = vmul.f32 %v322, 0.1
        %v1347 = vmul.f32 %v323, 0.1
        %v1348 = vmul.f32 %v324, 0.1
        %v1349 = vmul.f32 %v325, 0.1
        %v1350 = vmul.f32 %v326, 0.1
        %v1351 = vmul.f32 %v327, 0.1
        %v1352 = vmul.f32 %v328, 0.1
        %v1353 = vmul.f32 %v329, 0.1
        %v1354 = vmul.f32 %v330, 0.1
        %v1355 = vmul.f32 %v331, 0.1
        %v1356 = vmul.f32 %v332, 0.1
        %v1357 = vmul.f32 %v333, 0.1
        %v1358 = vmul.f32 %v334, 0.1
        %v1359 = vmul.f32 %v335, 0.1
        %v1360 = vmul.f32 %v336, 0.1
        %v1361 = vmul.f32 %v337, 0.1
        %v1362 = vmul.f32 %v338, 0.1
        %v1363 = vmul.f32 %v339, 0.1
        %v1364 = vmul.f32 %v340, 0.1
        %v1365 = vmul.f32 %v341, 0.1
        %v1366 = vmul.f32 %v342, 0.1
        %v1367 = vmul.f32 %v343, 0.1
        %v1368 = vmul.f32 %v344, 0.1
        %v1369 = vmul.f32 %v345, 0.1
        %v1370 = vmul.f32 %v346, 0.1
        %v1371 = vmul.f32 %v347, 0.1
        %v1372 = vmul.f32 %v348, 0.1
        %v1373 = vmul.f32 %v349, 0.1
        %v1374 = vmul.f32 %v350, 0.1
        %v1375 = vmul.f32 %v351, 0.1
        %v1376 = vmul.f32 %v352, 0.1
        %v1377 = vmul.f32 %v353, 0.1
        %v1378 = vmul.f32 %v354, 0.1
        %v1379 = vmul.f32 %v355, 0.1
        %v1380 = vmul.f32 %v356, 0.1
        %v1381 = vmul.f32 %v357, 0.1
        %v1382 = vmul.f32 %v358, 0.1
        %v1383 = vmul.f32 %v359, 0.1
        %v1384 = vmul.f32 %v360, 0.1
        %v1385 = vmul.f32 %v361, 0.1
        %v1386 = vmul.f32 %v362, 0.1
        %v1387 = vmul.f32 %v363, 0.1
        %v1388 = vmul.f32 %v364, 0.1
        %v1389 = vmul.f32 %v365, 0.1
        %v1390 = vmul.f32 %v366, 0.1
        %v1391 = vmul.f32 %v367, 0.1
        %v1392 = vmul.f32 %v368, 0.1
        %v1393 = vmul.f32 %v369, 0.1
        %v1394 = vmul.f32 %v370, 0.1
        %v1395 = vmul.f32 %v371, 0.1
        %v1396 = vmul.f32 %v372, 0.1
        %v1397 = vmul.f32 %v373, 0.1
        %v1398 = vmul.f32 %v374, 0.1
        %v1399 = vmul.f32 %v375, 0.1
        %v1400 = vmul.f32 %v376, 0.1
        %v1401 = vmul.f32 %v377, 0.1
        %v1402 = vmul.f32 %v378, 0.1
        %v1403 = vmul.f32 %v379, 0.1
        %v1404 = vmul.f32 %v380, 0.1
        %v1405 = vmul.f32 %v381, 0.1
        %v1406 = vmul.f32 %v382, 0.1
        %v1407 = vmul.f32 %v383, 0.1
        %v1408 = vmul.f32 %v384, 0.1
        %v1409 = vmul.f32 %v385, 0.1
        %v1410 = vmul.f32 %v386, 0.1
        %v1411 = vmul.f32 %v387, 0.1
        %v1412 = vmul.f32 %v388, 0.1
        %v1413 = vmul.f32 %v389, 0.1
        %v1414 = vmul.f32 %v390, 0.1
        %v1415 = vmul.f32 %v391, 0.1
        %v1416 = vmul.f32 %v392, 0.1
        %v1417 = vmul.f32 %v393, 0.1
        %v1418 = vmul.f32 %v394, 0.1
        %v1419 = vmul.f32 %v395, 0.1
        %v1420 = vmul.f32 %v396, 0.1
        %v1421 = vmul.f32 %v397, 0.1
        %v1422 = vmul.f32 %v398, 0.1
        %v1423 = vmul.f32 %v399, 0.1
        %v1424 = vmul.f32 %v400, 0.1
        %v1425 = vmul.f32 %v401, 0.1
        %v1426 = vmul.f32 %v402, 0.1
        %v1427 = vmul.f32 %v403, 0.1
        %v1428 = vmul.f32 %v404, 0.1
        %v1429 = vmul.f32 %v405, 0.1
        %v1430 = vmul.f32 %v406, 0.1
        %v1431 = vmul.f32 %v407, 0.1
        %v1432 = vmul.f32 %v408, 0.1
        %v1433 = vmul.f32 %v409, 0.1
        %v1434 = vmul.f32 %v410, 0.1
        %v1435 = vmul.f32 %v411, 0.1
        %v1436 = vmul.f32 %v412, 0.1
        %v1437 = vmul.f32 %v413, 0.1
        %v1438 = vmul.f32 %v414, 0.1
        %v1439 = vmul.f32 %v415, 0.1
        %v1440 = vmul.f32 %v416, 0.1
        %v1441 = vmul.f32 %v417, 0.1
        %v1442 = vmul.f32 %v418, 0.1
        %v1443 = vmul.f32 %v419, 0.1
        %v1444 = vmul.f32 %v420, 0.1
        %v1445 = vmul.f32 %v421, 0.1
        %v1446 = vmul.f32 %v422, 0.1
        %v1447 = vmul.f32 %v423, 0.1
        %v1448 = vmul.f32 %v424, 0.1
        %v1449 = vmul.f32 %v425, 0.1
        %v1450 = vmul.f32 %v426, 0.1
        %v1451 = vmul.f32 %v427, 0.1
        %v1452 = vmul.f32 %v428, 0.1
        %v1453 = vmul.f32 %v429, 0.1
        %v1454 = vmul.f32 %v430, 0.1
        %v1455 = vmul.f32 %v431, 0.1
        %v1456 = vmul.f32 %v432, 0.1
        %v1457 = vmul.f32 %v433, 0.1
        %v1458 = vmul.f32 %v434, 0.1
        %v1459 = vmul.f32 %v435, 0.1
        %v1460 = vmul.f32 %v436, 0.1
        %v1461 = vmul.f32 %v437, 0.1
        %v1462 = vmul.f32 %v438, 0.1
        %v1463 = vmul.f32 %v439, 0.1
        %v1464 = vmul.f32 %v440, 0.1
        %v1465 = vmul.f32 %v441, 0.1
        %v1466 = vmul.f32 %v442, 0.1
        %v1467 = vmul.f32 %v443, 0.1
        %v1468 = vmul.f32 %v444, 0.1
        %v1469 = vmul.f32 %v445, 0.1
        %v1470 = vmul.f32 %v446, 0.1
        %v1471 = vmul.f32 %v447, 0.1
        %v1472 = vmul.f32 %v448, 0.1
        %v1473 = vmul.f32 %v449, 0.1
        %v1474 = vmul.f32 %v450, 0.1
        %v1475 = vmul.f32 %v451, 0.1
        %v1476 = vmul.f32 %v452, 0.1
        %v1477 = vmul.f32 %v453, 0.1
        %v1478 = vmul.f32 %v454, 0.1
        %v1479 = vmul.f32 %v455, 0.1
        %v1480 = vmul.f32 %v456, 0.1
        %v1481 = vmul.f32 %v457, 0.1
        %v1482 = vmul.f32 %v458, 0.1
        %v1483 = vmul.f32 %v459, 0.1
        %v1484 = vmul.f32 %v460, 0.1
        %v1485 = vmul.f32 %v461, 0.1
        %v1486 = vmul.f32 %v462, 0.1
        %v1487 = vmul.f32 %v463, 0.1
        %v1488 = vmul.f32 %v464, 0.1
        %v1489 = vmul.f32 %v465, 0.1
        %v1490 = vmul.f32 %v466, 0.1
        %v1491 = vmul.f32 %v467, 0.1
        %v1492 = vmul.f32 %v468, 0.1
        %v1493 = vmul.f32 %v469, 0.1
        %v1494 = vmul.f32 %v470, 0.1
        %v1495 = vmul.f32 %v471, 0.1
        %v1496 = vmul.f32 %v472, 0.1
        %v1497 = vmul.f32 %v473, 0.1
        %v1498 = vmul.f32 %v474, 0.1
        %v1499 = vmul.f32 %v475, 0.1
        %v1500 = vmul.f32 %v476, 0.1
        %v1501 = vmul.f32 %v477, 0.1
        %v1502 = vmul.f32 %v478, 0.1
        %v1503 = vmul.f32 %v479, 0.1
        %v1504 = vmul.f32 %v480, 0.1
        %v1505 = vmul.f32 %v481, 0.1
        %v1506 = vmul.f32 %v482, 0.1
        %v1507 = vmul.f32 %v483, 0.1
        %v1508 = vmul.f32 %v484, 0.1
        %v1509 = vmul.f32 %v485, 0.1
        %v1510 = vmul.f32 %v486, 0.1
        %v1511 = vmul.f32 %v487, 0.1
        %v1512 = vmul.f32 %v488, 0.1
        %v1513 = vmul.f32 %v489, 0.1
        %v1514 = vmul.f32 %v490, 0.1
        %v1515 = vmul.f32 %v491, 0.1
        %v1516 = vmul.f32 %v492, 0.1
        %v1517 = vmul.f32 %v493, 0.1
        %v1518 = vmul.f32 %v494, 0.1
        %v1519 = vmul.f32 %v495, 0.1
        %v1520 = vmul.f32 %v496, 0.1
        %v1521 = vmul.f32 %v497, 0.1
        %v1522 = vmul.f32 %v498, 0.1
        %v1523 = vmul.f32 %v499, 0.1
        %v1524 = vmul.f32 %v500, 0.1
        %v1525 = vmul.f32 %v501, 0.1
        %v1526 = vmul.f32 %v502, 0.1
        %v1527 = vmul.f32 %v503, 0.1
        %v1528 = vmul.f32 %v504, 0.1
        %v1529 = vmul.f32 %v505, 0.1
        %v1530 = vmul.f32 %v506, 0.1
        %v1531 = vmul.f32 %v507, 0.1
        %v1532 = vmul.f32 %v508, 0.1
        %v1533 = vmul.f32 %v509, 0.1
        %v1534 = vmul.f32 %v510, 0.1
        %v1535 = vmul.f32 %v511, 0.1
        %v1536 = vmul.f32 %v512, 0.1
        %v1537 = vmul.f32 %v513, 0.1
        %v1538 = vmul.f32 %v514, 0.1
        %v1539 = vmul.f32 %v515, 0.1
        %v1540 = vmul.f32 %v516, 0.1
        %v1541 = vmul.f32 %v517, 0.1
        %v1542 = vmul.f32 %v518, 0.1
        %v1543 = vmul.f32 %v519, 0.1
        %v1544 = vmul.f32 %v520, 0.1
        %v1545 = vmul.f32 %v521, 0.1
        %v1546 = vmul.f32 %v522, 0.1
        %v1547 = vmul.f32 %v523, 0.1
        %v1548 = vmul.f32 %v524, 0.1
        %v1549 = vmul.f32 %v525, 0.1
        %v1550 = vmul.f32 %v526, 0.1
        %v1551 = vmul.f32 %v527, 0.1
        %v1552 = vmul.f32 %v528, 0.1
        %v1553 = vmul.f32 %v529, 0.1
        %v1554 = vmul.f32 %v530, 0.1
        %v1555 = vmul.f32 %v531, 0.1
        %v1556 = vmul.f32 %v532, 0.1
        %v1557 = vmul.f32 %v533, 0.1
        %v1558 = vmul.f32 %v534, 0.1
        %v1559 = vmul.f32 %v535, 0.1
        %v1560 = vmul.f32 %v536, 0.1
        %v1561 = vmul.f32 %v537, 0.1
        %v1562 = vmul.f32 %v538, 0.1
        %v1563 = vmul.f32 %v539, 0.1
        %v1564 = vmul.f32 %v540, 0.1
        %v1565 = vmul.f32 %v541, 0.1
        %v1566 = vmul.f32 %v542, 0.1
        %v1567 = vmul.f32 %v543, 0.1
        %v1568 = vmul.f32 %v544, 0.1
        %v1569 = vmul.f32 %v545, 0.1
        %v1570 = vmul.f32 %v546, 0.1
        %v1571 = vmul.f32 %v547, 0.1
        %v1572 = vmul.f32 %v548, 0.1
        %v1573 = vmul.f32 %v549, 0.1
        %v1574 = vmul.f32 %v550, 0.1
        %v1575 = vmul.f32 %v551, 0.1
        %v1576 = vmul.f32 %v552, 0.1
        %v1577 = vmul.f32 %v553, 0.1
        %v1578 = vmul.f32 %v554, 0.1
        %v1579 = vmul.f32 %v555, 0.1
        %v1580 = vmul.f32 %v556, 0.1
        %v1581 = vmul.f32 %v557, 0.1
        %v1582 = vmul.f32 %v558, 0.1
        %v1583 = vmul.f32 %v559, 0.1
        %v1584 = vmul.f32 %v560, 0.1
        %v1585 = vmul.f32 %v561, 0.1
        %v1586 = vmul.f32 %v562, 0.1
        %v1587 = vmul.f32 %v563, 0.1
        %v1588 = vmul.f32 %v564, 0.1
        %v1589 = vmul.f32 %v565, 0.1
        %v1590 = vmul.f32 %v566, 0.1
        %v1591 = vmul.f32 %v567, 0.1
        %v1592 = vmul.f32 %v568, 0.1
        %v1593 = vmul.f32 %v569, 0.1
        %v1594 = vmul.f32 %v570, 0.1
        %v1595 = vmul.f32 %v571, 0.1
        %v1596 = vmul.f32 %v572, 0.1
        %v1597 = vmul.f32 %v573, 0.1
        %v1598 = vmul.f32 %v574, 0.1
        %v1599 = vmul.f32 %v575, 0.1
        %v1600 = vmul.f32 %v576, 0.1
        %v1601 = vmul.f32 %v577, 0.1
        %v1602 = vmul.f32 %v578, 0.1
        %v1603 = vmul.f32 %v579, 0.1
        %v1604 = vmul.f32 %v580, 0.1
        %v1605 = vmul.f32 %v581, 0.1
        %v1606 = vmul.f32 %v582, 0.1
        %v1607 = vmul.f32 %v583, 0.1
        %v1608 = vmul.f32 %v584, 0.1
        %v1609 = vmul.f32 %v585, 0.1
        %v1610 = vmul.f32 %v586, 0.1
        %v1611 = vmul.f32 %v587, 0.1
        %v1612 = vmul.f32 %v588, 0.1
        %v1613 = vmul.f32 %v589, 0.1
        %v1614 = vmul.f32 %v590, 0.1
        %v1615 = vmul.f32 %v591, 0.1
        %v1616 = vmul.f32 %v592, 0.1
        %v1617 = vmul.f32 %v593, 0.1
        %v1618 = vmul.f32 %v594, 0.1
        %v1619 = vmul.f32 %v595, 0.1
        %v1620 = vmul.f32 %v596, 0.1
        %v1621 = vmul.f32 %v597, 0.1
        %v1622 = vmul.f32 %v598, 0.1
        %v1623 = vmul.f32 %v599, 0.1
        %v1624 = vmul.f32 %v600, 0.1
        %v1625 = vmul.f32 %v601, 0.1
        %v1626 = vmul.f32 %v602, 0.1
        %v1627 = vmul.f32 %v603, 0.1
        %v1628 = vmul.f32 %v604, 0.1
        %v1629 = vmul.f32 %v605, 0.1
        %v1630 = vmul.f32 %v606, 0.1
        %v1631 = vmul.f32 %v607, 0.1
        %v1632 = vmul.f32 %v608, 0.1
        %v1633 = vmul.f32 %v609, 0.1
        %v1634 = vmul.f32 %v610, 0.1
        %v1635 = vmul.f32 %v611, 0.1
        %v1636 = vmul.f32 %v612, 0.1
        %v1637 = vmul.f32 %v613, 0.1
        %v1638 = vmul.f32 %v614, 0.1
        %v1639 = vmul.f32 %v615, 0.1
        %v1640 = vmul.f32 %v616, 0.1
        %v1641 = vmul.f32 %v617, 0.1
        %v1642 = vmul.f32 %v618, 0.1
        %v1643 = vmul.f32 %v619, 0.1
        %v1644 = vmul.f32 %v620, 0.1
        %v1645 = vmul.f32 %v621, 0.1
        %v1646 = vmul.f32 %v622, 0.1
        %v1647 = vmul.f32 %v623, 0.1
        %v1648 = vmul.f32 %v624, 0.1
        %v1649 = vmul.f32 %v625, 0.1
        %v1650 = vmul.f32 %v626, 0.1
        %v1651 = vmul.f32 %v627, 0.1
        %v1652 = vmul.f32 %v628, 0.1
        %v1653 = vmul.f32 %v629, 0.1
        %v1654 = vmul.f32 %v630, 0.1
        %v1655 = vmul.f32 %v631, 0.1
        %v1656 = vmul.f32 %v632, 0.1
        %v1657 = vmul.f32 %v633, 0.1
        %v1658 = vmul.f32 %v634, 0.1
        %v1659 = vmul.f32 %v635, 0.1
        %v1660 = vmul.f32 %v636, 0.1
        %v1661 = vmul.f32 %v637, 0.1
        %v1662 = vmul.f32 %v638, 0.1
        %v1663 = vmul.f32 %v639, 0.1
        %v1664 = vmul.f32 %v640, 0.1
        %v1665 = vmul.f32 %v641, 0.1
        %v1666 = vmul.f32 %v642, 0.1
        %v1667 = vmul.f32 %v643, 0.1
        %v1668 = vmul.f32 %v644, 0.1
        %v1669 = vmul.f32 %v645, 0.1
        %v1670 = vmul.f32 %v646, 0.1
        %v1671 = vmul.f32 %v647, 0.1
        %v1672 = vmul.f32 %v648, 0.1
        %v1673 = vmul.f32 %v649, 0.1
        %v1674 = vmul.f32 %v650, 0.1
        %v1675 = vmul.f32 %v651, 0.1
        %v1676 = vmul.f32 %v652, 0.1
        %v1677 = vmul.f32 %v653, 0.1
        %v1678 = vmul.f32 %v654, 0.1
        %v1679 = vmul.f32 %v655, 0.1
        %v1680 = vmul.f32 %v656, 0.1
        %v1681 = vmul.f32 %v657, 0.1
        %v1682 = vmul.f32 %v658, 0.1
        %v1683 = vmul.f32 %v659, 0.1
        %v1684 = vmul.f32 %v660, 0.1
        %v1685 = vmul.f32 %v661, 0.1
        %v1686 = vmul.f32 %v662, 0.1
        %v1687 = vmul.f32 %v663, 0.1
        %v1688 = vmul.f32 %v664, 0.1
        %v1689 = vmul.f32 %v665, 0.1
        %v1690 = vmul.f32 %v666, 0.1
        %v1691 = vsel %vm667, %v155, %v1179
        %v1692 = vsel %vm668, %v156, %v1180
        %v1693 = vsel %vm669, %v157, %v1181
        %v1694 = vsel %vm670, %v158, %v1182
        %v1695 = vsel %vm671, %v159, %v1183
        %v1696 = vsel %vm672, %v160, %v1184
        %v1697 = vsel %vm673, %v161, %v1185
        %v1698 = vsel %vm674, %v162, %v1186
        %v1699 = vsel %vm675, %v163, %v1187
        %v1700 = vsel %vm676, %v164, %v1188
        %v1701 = vsel %vm677, %v165, %v1189
        %v1702 = vsel %vm678, %v166, %v1190
        %v1703 = vsel %vm679, %v167, %v1191
        %v1704 = vsel %vm680, %v168, %v1192
        %v1705 = vsel %vm681, %v169, %v1193
        %v1706 = vsel %vm682, %v170, %v1194
        %v1707 = vsel %vm683, %v171, %v1195
        %v1708 = vsel %vm684, %v172, %v1196
        %v1709 = vsel %vm685, %v173, %v1197
        %v1710 = vsel %vm686, %v174, %v1198
        %v1711 = vsel %vm687, %v175, %v1199
        %v1712 = vsel %vm688, %v176, %v1200
        %v1713 = vsel %vm689, %v177, %v1201
        %v1714 = vsel %vm690, %v178, %v1202
        %v1715 = vsel %vm691, %v179, %v1203
        %v1716 = vsel %vm692, %v180, %v1204
        %v1717 = vsel %vm693, %v181, %v1205
        %v1718 = vsel %vm694, %v182, %v1206
        %v1719 = vsel %vm695, %v183, %v1207
        %v1720 = vsel %vm696, %v184, %v1208
        %v1721 = vsel %vm697, %v185, %v1209
        %v1722 = vsel %vm698, %v186, %v1210
        %v1723 = vsel %vm699, %v187, %v1211
        %v1724 = vsel %vm700, %v188, %v1212
        %v1725 = vsel %vm701, %v189, %v1213
        %v1726 = vsel %vm702, %v190, %v1214
        %v1727 = vsel %vm703, %v191, %v1215
        %v1728 = vsel %vm704, %v192, %v1216
        %v1729 = vsel %vm705, %v193, %v1217
        %v1730 = vsel %vm706, %v194, %v1218
        %v1731 = vsel %vm707, %v195, %v1219
        %v1732 = vsel %vm708, %v196, %v1220
        %v1733 = vsel %vm709, %v197, %v1221
        %v1734 = vsel %vm710, %v198, %v1222
        %v1735 = vsel %vm711, %v199, %v1223
        %v1736 = vsel %vm712, %v200, %v1224
        %v1737 = vsel %vm713, %v201, %v1225
        %v1738 = vsel %vm714, %v202, %v1226
        %v1739 = vsel %vm715, %v203, %v1227
        %v1740 = vsel %vm716, %v204, %v1228
        %v1741 = vsel %vm717, %v205, %v1229
        %v1742 = vsel %vm718, %v206, %v1230
        %v1743 = vsel %vm719, %v207, %v1231
        %v1744 = vsel %vm720, %v208, %v1232
        %v1745 = vsel %vm721, %v209, %v1233
        %v1746 = vsel %vm722, %v210, %v1234
        %v1747 = vsel %vm723, %v211, %v1235
        %v1748 = vsel %vm724, %v212, %v1236
        %v1749 = vsel %vm725, %v213, %v1237
        %v1750 = vsel %vm726, %v214, %v1238
        %v1751 = vsel %vm727, %v215, %v1239
        %v1752 = vsel %vm728, %v216, %v1240
        %v1753 = vsel %vm729, %v217, %v1241
        %v1754 = vsel %vm730, %v218, %v1242
        %v1755 = vsel %vm731, %v219, %v1243
        %v1756 = vsel %vm732, %v220, %v1244
        %v1757 = vsel %vm733, %v221, %v1245
        %v1758 = vsel %vm734, %v222, %v1246
        %v1759 = vsel %vm735, %v223, %v1247
        %v1760 = vsel %vm736, %v224, %v1248
        %v1761 = vsel %vm737, %v225, %v1249
        %v1762 = vsel %vm738, %v226, %v1250
        %v1763 = vsel %vm739, %v227, %v1251
        %v1764 = vsel %vm740, %v228, %v1252
        %v1765 = vsel %vm741, %v229, %v1253
        %v1766 = vsel %vm742, %v230, %v1254
        %v1767 = vsel %vm743, %v231, %v1255
        %v1768 = vsel %vm744, %v232, %v1256
        %v1769 = vsel %vm745, %v233, %v1257
        %v1770 = vsel %vm746, %v234, %v1258
        %v1771 = vsel %vm747, %v235, %v1259
        %v1772 = vsel %vm748, %v236, %v1260
        %v1773 = vsel %vm749, %v237, %v1261
        %v1774 = vsel %vm750, %v238, %v1262
        %v1775 = vsel %vm751, %v239, %v1263
        %v1776 = vsel %vm752, %v240, %v1264
        %v1777 = vsel %vm753, %v241, %v1265
        %v1778 = vsel %vm754, %v242, %v1266
        %v1779 = vsel %vm755, %v243, %v1267
        %v1780 = vsel %vm756, %v244, %v1268
        %v1781 = vsel %vm757, %v245, %v1269
        %v1782 = vsel %vm758, %v246, %v1270
        %v1783 = vsel %vm759, %v247, %v1271
        %v1784 = vsel %vm760, %v248, %v1272
        %v1785 = vsel %vm761, %v249, %v1273
        %v1786 = vsel %vm762, %v250, %v1274
        %v1787 = vsel %vm763, %v251, %v1275
        %v1788 = vsel %vm764, %v252, %v1276
        %v1789 = vsel %vm765, %v253, %v1277
        %v1790 = vsel %vm766, %v254, %v1278
        %v1791 = vsel %vm767, %v255, %v1279
        %v1792 = vsel %vm768, %v256, %v1280
        %v1793 = vsel %vm769, %v257, %v1281
        %v1794 = vsel %vm770, %v258, %v1282
        %v1795 = vsel %vm771, %v259, %v1283
        %v1796 = vsel %vm772, %v260, %v1284
        %v1797 = vsel %vm773, %v261, %v1285
        %v1798 = vsel %vm774, %v262, %v1286
        %v1799 = vsel %vm775, %v263, %v1287
        %v1800 = vsel %vm776, %v264, %v1288
        %v1801 = vsel %vm777, %v265, %v1289
        %v1802 = vsel %vm778, %v266, %v1290
        %v1803 = vsel %vm779, %v267, %v1291
        %v1804 = vsel %vm780, %v268, %v1292
        %v1805 = vsel %vm781, %v269, %v1293
        %v1806 = vsel %vm782, %v270, %v1294
        %v1807 = vsel %vm783, %v271, %v1295
        %v1808 = vsel %vm784, %v272, %v1296
        %v1809 = vsel %vm785, %v273, %v1297
        %v1810 = vsel %vm786, %v274, %v1298
        %v1811 = vsel %vm787, %v275, %v1299
        %v1812 = vsel %vm788, %v276, %v1300
        %v1813 = vsel %vm789, %v277, %v1301
        %v1814 = vsel %vm790, %v278, %v1302
        %v1815 = vsel %vm791, %v279, %v1303
        %v1816 = vsel %vm792, %v280, %v1304
        %v1817 = vsel %vm793, %v281, %v1305
        %v1818 = vsel %vm794, %v282, %v1306
        %v1819 = vsel %vm795, %v283, %v1307
        %v1820 = vsel %vm796, %v284, %v1308
        %v1821 = vsel %vm797, %v285, %v1309
        %v1822 = vsel %vm798, %v286, %v1310
        %v1823 = vsel %vm799, %v287, %v1311
        %v1824 = vsel %vm800, %v288, %v1312
        %v1825 = vsel %vm801, %v289, %v1313
        %v1826 = vsel %vm802, %v290, %v1314
        %v1827 = vsel %vm803, %v291, %v1315
        %v1828 = vsel %vm804, %v292, %v1316
        %v1829 = vsel %vm805, %v293, %v1317
        %v1830 = vsel %vm806, %v294, %v1318
        %v1831 = vsel %vm807, %v295, %v1319
        %v1832 = vsel %vm808, %v296, %v1320
        %v1833 = vsel %vm809, %v297, %v1321
        %v1834 = vsel %vm810, %v298, %v1322
        %v1835 = vsel %vm811, %v299, %v1323
        %v1836 = vsel %vm812, %v300, %v1324
        %v1837 = vsel %vm813, %v301, %v1325
        %v1838 = vsel %vm814, %v302, %v1326
        %v1839 = vsel %vm815, %v303, %v1327
        %v1840 = vsel %vm816, %v304, %v1328
        %v1841 = vsel %vm817, %v305, %v1329
        %v1842 = vsel %vm818, %v306, %v1330
        %v1843 = vsel %vm819, %v307, %v1331
        %v1844 = vsel %vm820, %v308, %v1332
        %v1845 = vsel %vm821, %v309, %v1333
        %v1846 = vsel %vm822, %v310, %v1334
        %v1847 = vsel %vm823, %v311, %v1335
        %v1848 = vsel %vm824, %v312, %v1336
        %v1849 = vsel %vm825, %v313, %v1337
        %v1850 = vsel %vm826, %v314, %v1338
        %v1851 = vsel %vm827, %v315, %v1339
        %v1852 = vsel %vm828, %v316, %v1340
        %v1853 = vsel %vm829, %v317, %v1341
        %v1854 = vsel %vm830, %v318, %v1342
        %v1855 = vsel %vm831, %v319, %v1343
        %v1856 = vsel %vm832, %v320, %v1344
        %v1857 = vsel %vm833, %v321, %v1345
        %v1858 = vsel %vm834, %v322, %v1346
        %v1859 = vsel %vm835, %v323, %v1347
        %v1860 = vsel %vm836, %v324, %v1348
        %v1861 = vsel %vm837, %v325, %v1349
        %v1862 = vsel %vm838, %v326, %v1350
        %v1863 = vsel %vm839, %v327, %v1351
        %v1864 = vsel %vm840, %v328, %v1352
        %v1865 = vsel %vm841, %v329, %v1353
        %v1866 = vsel %vm842, %v330, %v1354
        %v1867 = vsel %vm843, %v331, %v1355
        %v1868 = vsel %vm844, %v332, %v1356
        %v1869 = vsel %vm845, %v333, %v1357
        %v1870 = vsel %vm846, %v334, %v1358
        %v1871 = vsel %vm847, %v335, %v1359
        %v1872 = vsel %vm848, %v336, %v1360
        %v1873 = vsel %vm849, %v337, %v1361
        %v1874 = vsel %vm850, %v338, %v1362
        %v1875 = vsel %vm851, %v339, %v1363
        %v1876 = vsel %vm852, %v340, %v1364
        %v1877 = vsel %vm853, %v341, %v1365
        %v1878 = vsel %vm854, %v342, %v1366
        %v1879 = vsel %vm855, %v343, %v1367
        %v1880 = vsel %vm856, %v344, %v1368
        %v1881 = vsel %vm857, %v345, %v1369
        %v1882 = vsel %vm858, %v346, %v1370
        %v1883 = vsel %vm859, %v347, %v1371
        %v1884 = vsel %vm860, %v348, %v1372
        %v1885 = vsel %vm861, %v349, %v1373
        %v1886 = vsel %vm862, %v350, %v1374
        %v1887 = vsel %vm863, %v351, %v1375
        %v1888 = vsel %vm864, %v352, %v1376
        %v1889 = vsel %vm865, %v353, %v1377
        %v1890 = vsel %vm866, %v354, %v1378
        %v1891 = vsel %vm867, %v355, %v1379
        %v1892 = vsel %vm868, %v356, %v1380
        %v1893 = vsel %vm869, %v357, %v1381
        %v1894 = vsel %vm870, %v358, %v1382
        %v1895 = vsel %vm871, %v359, %v1383
        %v1896 = vsel %vm872, %v360, %v1384
        %v1897 = vsel %vm873, %v361, %v1385
        %v1898 = vsel %vm874, %v362, %v1386
        %v1899 = vsel %vm875, %v363, %v1387
        %v1900 = vsel %vm876, %v364, %v1388
        %v1901 = vsel %vm877, %v365, %v1389
        %v1902 = vsel %vm878, %v366, %v1390
        %v1903 = vsel %vm879, %v367, %v1391
        %v1904 = vsel %vm880, %v368, %v1392
        %v1905 = vsel %vm881, %v369, %v1393
        %v1906 = vsel %vm882, %v370, %v1394
        %v1907 = vsel %vm883, %v371, %v1395
        %v1908 = vsel %vm884, %v372, %v1396
        %v1909 = vsel %vm885, %v373, %v1397
        %v1910 = vsel %vm886, %v374, %v1398
        %v1911 = vsel %vm887, %v375, %v1399
        %v1912 = vsel %vm888, %v376, %v1400
        %v1913 = vsel %vm889, %v377, %v1401
        %v1914 = vsel %vm890, %v378, %v1402
        %v1915 = vsel %vm891, %v379, %v1403
        %v1916 = vsel %vm892, %v380, %v1404
        %v1917 = vsel %vm893, %v381, %v1405
        %v1918 = vsel %vm894, %v382, %v1406
        %v1919 = vsel %vm895, %v383, %v1407
        %v1920 = vsel %vm896, %v384, %v1408
        %v1921 = vsel %vm897, %v385, %v1409
        %v1922 = vsel %vm898, %v386, %v1410
        %v1923 = vsel %vm899, %v387, %v1411
        %v1924 = vsel %vm900, %v388, %v1412
        %v1925 = vsel %vm901, %v389, %v1413
        %v1926 = vsel %vm902, %v390, %v1414
        %v1927 = vsel %vm903, %v391, %v1415
        %v1928 = vsel %vm904, %v392, %v1416
        %v1929 = vsel %vm905, %v393, %v1417
        %v1930 = vsel %vm906, %v394, %v1418
        %v1931 = vsel %vm907, %v395, %v1419
        %v1932 = vsel %vm908, %v396, %v1420
        %v1933 = vsel %vm909, %v397, %v1421
        %v1934 = vsel %vm910, %v398, %v1422
        %v1935 = vsel %vm911, %v399, %v1423
        %v1936 = vsel %vm912, %v400, %v1424
        %v1937 = vsel %vm913, %v401, %v1425
        %v1938 = vsel %vm914, %v402, %v1426
        %v1939 = vsel %vm915, %v403, %v1427
        %v1940 = vsel %vm916, %v404, %v1428
        %v1941 = vsel %vm917, %v405, %v1429
        %v1942 = vsel %vm918, %v406, %v1430
        %v1943 = vsel %vm919, %v407, %v1431
        %v1944 = vsel %vm920, %v408, %v1432
        %v1945 = vsel %vm921, %v409, %v1433
        %v1946 = vsel %vm922, %v410, %v1434
        %v1947 = vsel %vm923, %v411, %v1435
        %v1948 = vsel %vm924, %v412, %v1436
        %v1949 = vsel %vm925, %v413, %v1437
        %v1950 = vsel %vm926, %v414, %v1438
        %v1951 = vsel %vm927, %v415, %v1439
        %v1952 = vsel %vm928, %v416, %v1440
        %v1953 = vsel %vm929, %v417, %v1441
        %v1954 = vsel %vm930, %v418, %v1442
        %v1955 = vsel %vm931, %v419, %v1443
        %v1956 = vsel %vm932, %v420, %v1444
        %v1957 = vsel %vm933, %v421, %v1445
        %v1958 = vsel %vm934, %v422, %v1446
        %v1959 = vsel %vm935, %v423, %v1447
        %v1960 = vsel %vm936, %v424, %v1448
        %v1961 = vsel %vm937, %v425, %v1449
        %v1962 = vsel %vm938, %v426, %v1450
        %v1963 = vsel %vm939, %v427, %v1451
        %v1964 = vsel %vm940, %v428, %v1452
        %v1965 = vsel %vm941, %v429, %v1453
        %v1966 = vsel %vm942, %v430, %v1454
        %v1967 = vsel %vm943, %v431, %v1455
        %v1968 = vsel %vm944, %v432, %v1456
        %v1969 = vsel %vm945, %v433, %v1457
        %v1970 = vsel %vm946, %v434, %v1458
        %v1971 = vsel %vm947, %v435, %v1459
        %v1972 = vsel %vm948, %v436, %v1460
        %v1973 = vsel %vm949, %v437, %v1461
        %v1974 = vsel %vm950, %v438, %v1462
        %v1975 = vsel %vm951, %v439, %v1463
        %v1976 = vsel %vm952, %v440, %v1464
        %v1977 = vsel %vm953, %v441, %v1465
        %v1978 = vsel %vm954, %v442, %v1466
        %v1979 = vsel %vm955, %v443, %v1467
        %v1980 = vsel %vm956, %v444, %v1468
        %v1981 = vsel %vm957, %v445, %v1469
        %v1982 = vsel %vm958, %v446, %v1470
        %v1983 = vsel %vm959, %v447, %v1471
        %v1984 = vsel %vm960, %v448, %v1472
        %v1985 = vsel %vm961, %v449, %v1473
        %v1986 = vsel %vm962, %v450, %v1474
        %v1987 = vsel %vm963, %v451, %v1475
        %v1988 = vsel %vm964, %v452, %v1476
        %v1989 = vsel %vm965, %v453, %v1477
        %v1990 = vsel %vm966, %v454, %v1478
        %v1991 = vsel %vm967, %v455, %v1479
        %v1992 = vsel %vm968, %v456, %v1480
        %v1993 = vsel %vm969, %v457, %v1481
        %v1994 = vsel %vm970, %v458, %v1482
        %v1995 = vsel %vm971, %v459, %v1483
        %v1996 = vsel %vm972, %v460, %v1484
        %v1997 = vsel %vm973, %v461, %v1485
        %v1998 = vsel %vm974, %v462, %v1486
        %v1999 = vsel %vm975, %v463, %v1487
        %v2000 = vsel %vm976, %v464, %v1488
        %v2001 = vsel %vm977, %v465, %v1489
        %v2002 = vsel %vm978, %v466, %v1490
        %v2003 = vsel %vm979, %v467, %v1491
        %v2004 = vsel %vm980, %v468, %v1492
        %v2005 = vsel %vm981, %v469, %v1493
        %v2006 = vsel %vm982, %v470, %v1494
        %v2007 = vsel %vm983, %v471, %v1495
        %v2008 = vsel %vm984, %v472, %v1496
        %v2009 = vsel %vm985, %v473, %v1497
        %v2010 = vsel %vm986, %v474, %v1498
        %v2011 = vsel %vm987, %v475, %v1499
        %v2012 = vsel %vm988, %v476, %v1500
        %v2013 = vsel %vm989, %v477, %v1501
        %v2014 = vsel %vm990, %v478, %v1502
        %v2015 = vsel %vm991, %v479, %v1503
        %v2016 = vsel %vm992, %v480, %v1504
        %v2017 = vsel %vm993, %v481, %v1505
        %v2018 = vsel %vm994, %v482, %v1506
        %v2019 = vsel %vm995, %v483, %v1507
        %v2020 = vsel %vm996, %v484, %v1508
        %v2021 = vsel %vm997, %v485, %v1509
        %v2022 = vsel %vm998, %v486, %v1510
        %v2023 = vsel %vm999, %v487, %v1511
        %v2024 = vsel %vm1000, %v488, %v1512
        %v2025 = vsel %vm1001, %v489, %v1513
        %v2026 = vsel %vm1002, %v490, %v1514
        %v2027 = vsel %vm1003, %v491, %v1515
        %v2028 = vsel %vm1004, %v492, %v1516
        %v2029 = vsel %vm1005, %v493, %v1517
        %v2030 = vsel %vm1006, %v494, %v1518
        %v2031 = vsel %vm1007, %v495, %v1519
        %v2032 = vsel %vm1008, %v496, %v1520
        %v2033 = vsel %vm1009, %v497, %v1521
        %v2034 = vsel %vm1010, %v498, %v1522
        %v2035 = vsel %vm1011, %v499, %v1523
        %v2036 = vsel %vm1012, %v500, %v1524
        %v2037 = vsel %vm1013, %v501, %v1525
        %v2038 = vsel %vm1014, %v502, %v1526
        %v2039 = vsel %vm1015, %v503, %v1527
        %v2040 = vsel %vm1016, %v504, %v1528
        %v2041 = vsel %vm1017, %v505, %v1529
        %v2042 = vsel %vm1018, %v506, %v1530
        %v2043 = vsel %vm1019, %v507, %v1531
        %v2044 = vsel %vm1020, %v508, %v1532
        %v2045 = vsel %vm1021, %v509, %v1533
        %v2046 = vsel %vm1022, %v510, %v1534
        %v2047 = vsel %vm1023, %v511, %v1535
        %v2048 = vsel %vm1024, %v512, %v1536
        %v2049 = vsel %vm1025, %v513, %v1537
        %v2050 = vsel %vm1026, %v514, %v1538
        %v2051 = vsel %vm1027, %v515, %v1539
        %v2052 = vsel %vm1028, %v516, %v1540
        %v2053 = vsel %vm1029, %v517, %v1541
        %v2054 = vsel %vm1030, %v518, %v1542
        %v2055 = vsel %vm1031, %v519, %v1543
        %v2056 = vsel %vm1032, %v520, %v1544
        %v2057 = vsel %vm1033, %v521, %v1545
        %v2058 = vsel %vm1034, %v522, %v1546
        %v2059 = vsel %vm1035, %v523, %v1547
        %v2060 = vsel %vm1036, %v524, %v1548
        %v2061 = vsel %vm1037, %v525, %v1549
        %v2062 = vsel %vm1038, %v526, %v1550
        %v2063 = vsel %vm1039, %v527, %v1551
        %v2064 = vsel %vm1040, %v528, %v1552
        %v2065 = vsel %vm1041, %v529, %v1553
        %v2066 = vsel %vm1042, %v530, %v1554
        %v2067 = vsel %vm1043, %v531, %v1555
        %v2068 = vsel %vm1044, %v532, %v1556
        %v2069 = vsel %vm1045, %v533, %v1557
        %v2070 = vsel %vm1046, %v534, %v1558
        %v2071 = vsel %vm1047, %v535, %v1559
        %v2072 = vsel %vm1048, %v536, %v1560
        %v2073 = vsel %vm1049, %v537, %v1561
        %v2074 = vsel %vm1050, %v538, %v1562
        %v2075 = vsel %vm1051, %v539, %v1563
        %v2076 = vsel %vm1052, %v540, %v1564
        %v2077 = vsel %vm1053, %v541, %v1565
        %v2078 = vsel %vm1054, %v542, %v1566
        %v2079 = vsel %vm1055, %v543, %v1567
        %v2080 = vsel %vm1056, %v544, %v1568
        %v2081 = vsel %vm1057, %v545, %v1569
        %v2082 = vsel %vm1058, %v546, %v1570
        %v2083 = vsel %vm1059, %v547, %v1571
        %v2084 = vsel %vm1060, %v548, %v1572
        %v2085 = vsel %vm1061, %v549, %v1573
        %v2086 = vsel %vm1062, %v550, %v1574
        %v2087 = vsel %vm1063, %v551, %v1575
        %v2088 = vsel %vm1064, %v552, %v1576
        %v2089 = vsel %vm1065, %v553, %v1577
        %v2090 = vsel %vm1066, %v554, %v1578
        %v2091 = vsel %vm1067, %v555, %v1579
        %v2092 = vsel %vm1068, %v556, %v1580
        %v2093 = vsel %vm1069, %v557, %v1581
        %v2094 = vsel %vm1070, %v558, %v1582
        %v2095 = vsel %vm1071, %v559, %v1583
        %v2096 = vsel %vm1072, %v560, %v1584
        %v2097 = vsel %vm1073, %v561, %v1585
        %v2098 = vsel %vm1074, %v562, %v1586
        %v2099 = vsel %vm1075, %v563, %v1587
        %v2100 = vsel %vm1076, %v564, %v1588
        %v2101 = vsel %vm1077, %v565, %v1589
        %v2102 = vsel %vm1078, %v566, %v1590
        %v2103 = vsel %vm1079, %v567, %v1591
        %v2104 = vsel %vm1080, %v568, %v1592
        %v2105 = vsel %vm1081, %v569, %v1593
        %v2106 = vsel %vm1082, %v570, %v1594
        %v2107 = vsel %vm1083, %v571, %v1595
        %v2108 = vsel %vm1084, %v572, %v1596
        %v2109 = vsel %vm1085, %v573, %v1597
        %v2110 = vsel %vm1086, %v574, %v1598
        %v2111 = vsel %vm1087, %v575, %v1599
        %v2112 = vsel %vm1088, %v576, %v1600
        %v2113 = vsel %vm1089, %v577, %v1601
        %v2114 = vsel %vm1090, %v578, %v1602
        %v2115 = vsel %vm1091, %v579, %v1603
        %v2116 = vsel %vm1092, %v580, %v1604
        %v2117 = vsel %vm1093, %v581, %v1605
        %v2118 = vsel %vm1094, %v582, %v1606
        %v2119 = vsel %vm1095, %v583, %v1607
        %v2120 = vsel %vm1096, %v584, %v1608
        %v2121 = vsel %vm1097, %v585, %v1609
        %v2122 = vsel %vm1098, %v586, %v1610
        %v2123 = vsel %vm1099, %v587, %v1611
        %v2124 = vsel %vm1100, %v588, %v1612
        %v2125 = vsel %vm1101, %v589, %v1613
        %v2126 = vsel %vm1102, %v590, %v1614
        %v2127 = vsel %vm1103, %v591, %v1615
        %v2128 = vsel %vm1104, %v592, %v1616
        %v2129 = vsel %vm1105, %v593, %v1617
        %v2130 = vsel %vm1106, %v594, %v1618
        %v2131 = vsel %vm1107, %v595, %v1619
        %v2132 = vsel %vm1108, %v596, %v1620
        %v2133 = vsel %vm1109, %v597, %v1621
        %v2134 = vsel %vm1110, %v598, %v1622
        %v2135 = vsel %vm1111, %v599, %v1623
        %v2136 = vsel %vm1112, %v600, %v1624
        %v2137 = vsel %vm1113, %v601, %v1625
        %v2138 = vsel %vm1114, %v602, %v1626
        %v2139 = vsel %vm1115, %v603, %v1627
        %v2140 = vsel %vm1116, %v604, %v1628
        %v2141 = vsel %vm1117, %v605, %v1629
        %v2142 = vsel %vm1118, %v606, %v1630
        %v2143 = vsel %vm1119, %v607, %v1631
        %v2144 = vsel %vm1120, %v608, %v1632
        %v2145 = vsel %vm1121, %v609, %v1633
        %v2146 = vsel %vm1122, %v610, %v1634
        %v2147 = vsel %vm1123, %v611, %v1635
        %v2148 = vsel %vm1124, %v612, %v1636
        %v2149 = vsel %vm1125, %v613, %v1637
        %v2150 = vsel %vm1126, %v614, %v1638
        %v2151 = vsel %vm1127, %v615, %v1639
        %v2152 = vsel %vm1128, %v616, %v1640
        %v2153 = vsel %vm1129, %v617, %v1641
        %v2154 = vsel %vm1130, %v618, %v1642
        %v2155 = vsel %vm1131, %v619, %v1643
        %v2156 = vsel %vm1132, %v620, %v1644
        %v2157 = vsel %vm1133, %v621, %v1645
        %v2158 = vsel %vm1134, %v622, %v1646
        %v2159 = vsel %vm1135, %v623, %v1647
        %v2160 = vsel %vm1136, %v624, %v1648
        %v2161 = vsel %vm1137, %v625, %v1649
        %v2162 = vsel %vm1138, %v626, %v1650
        %v2163 = vsel %vm1139, %v627, %v1651
        %v2164 = vsel %vm1140, %v628, %v1652
        %v2165 = vsel %vm1141, %v629, %v1653
        %v2166 = vsel %vm1142, %v630, %v1654
        %v2167 = vsel %vm1143, %v631, %v1655
        %v2168 = vsel %vm1144, %v632, %v1656
        %v2169 = vsel %vm1145, %v633, %v1657
        %v2170 = vsel %vm1146, %v634, %v1658
        %v2171 = vsel %vm1147, %v635, %v1659
        %v2172 = vsel %vm1148, %v636, %v1660
        %v2173 = vsel %vm1149, %v637, %v1661
        %v2174 = vsel %vm1150, %v638, %v1662
        %v2175 = vsel %vm1151, %v639, %v1663
        %v2176 = vsel %vm1152, %v640, %v1664
        %v2177 = vsel %vm1153, %v641, %v1665
        %v2178 = vsel %vm1154, %v642, %v1666
        %v2179 = vsel %vm1155, %v643, %v1667
        %v2180 = vsel %vm1156, %v644, %v1668
        %v2181 = vsel %vm1157, %v645, %v1669
        %v2182 = vsel %vm1158, %v646, %v1670
        %v2183 = vsel %vm1159, %v647, %v1671
        %v2184 = vsel %vm1160, %v648, %v1672
        %v2185 = vsel %vm1161, %v649, %v1673
        %v2186 = vsel %vm1162, %v650, %v1674
        %v2187 = vsel %vm1163, %v651, %v1675
        %v2188 = vsel %vm1164, %v652, %v1676
        %v2189 = vsel %vm1165, %v653, %v1677
        %v2190 = vsel %vm1166, %v654, %v1678
        %v2191 = vsel %vm1167, %v655, %v1679
        %v2192 = vsel %vm1168, %v656, %v1680
        %v2193 = vsel %vm1169, %v657, %v1681
        %v2194 = vsel %vm1170, %v658, %v1682
        %v2195 = vsel %vm1171, %v659, %v1683
        %v2196 = vsel %vm1172, %v660, %v1684
        %v2197 = vsel %vm1173, %v661, %v1685
        %v2198 = vsel %vm1174, %v662, %v1686
        %v2199 = vsel %vm1175, %v663, %v1687
        %v2200 = vsel %vm1176, %v664, %v1688
        %v2201 = vsel %vm1177, %v665, %v1689
        %v2202 = vsel %vm1178, %v666, %v1690
        %v2203 = vmul.f32 %v1691, 2.0
        %v2204 = vmul.f32 %v1692, 2.0
        %v2205 = vmul.f32 %v1693, 2.0
        %v2206 = vmul.f32 %v1694, 2.0
        %v2207 = vmul.f32 %v1695, 2.0
        %v2208 = vmul.f32 %v1696, 2.0
        %v2209 = vmul.f32 %v1697, 2.0
        %v2210 = vmul.f32 %v1698, 2.0
        %v2211 = vmul.f32 %v1699, 2.0
        %v2212 = vmul.f32 %v1700, 2.0
        %v2213 = vmul.f32 %v1701, 2.0
        %v2214 = vmul.f32 %v1702, 2.0
        %v2215 = vmul.f32 %v1703, 2.0
        %v2216 = vmul.f32 %v1704, 2.0
        %v2217 = vmul.f32 %v1705, 2.0
        %v2218 = vmul.f32 %v1706, 2.0
        %v2219 = vmul.f32 %v1707, 2.0
        %v2220 = vmul.f32 %v1708, 2.0
        %v2221 = vmul.f32 %v1709, 2.0
        %v2222 = vmul.f32 %v1710, 2.0
        %v2223 = vmul.f32 %v1711, 2.0
        %v2224 = vmul.f32 %v1712, 2.0
        %v2225 = vmul.f32 %v1713, 2.0
        %v2226 = vmul.f32 %v1714, 2.0
        %v2227 = vmul.f32 %v1715, 2.0
        %v2228 = vmul.f32 %v1716, 2.0
        %v2229 = vmul.f32 %v1717, 2.0
        %v2230 = vmul.f32 %v1718, 2.0
        %v2231 = vmul.f32 %v1719, 2.0
        %v2232 = vmul.f32 %v1720, 2.0
        %v2233 = vmul.f32 %v1721, 2.0
        %v2234 = vmul.f32 %v1722, 2.0
        %v2235 = vmul.f32 %v1723, 2.0
        %v2236 = vmul.f32 %v1724, 2.0
        %v2237 = vmul.f32 %v1725, 2.0
        %v2238 = vmul.f32 %v1726, 2.0
        %v2239 = vmul.f32 %v1727, 2.0
        %v2240 = vmul.f32 %v1728, 2.0
        %v2241 = vmul.f32 %v1729, 2.0
        %v2242 = vmul.f32 %v1730, 2.0
        %v2243 = vmul.f32 %v1731, 2.0
        %v2244 = vmul.f32 %v1732, 2.0
        %v2245 = vmul.f32 %v1733, 2.0
        %v2246 = vmul.f32 %v1734, 2.0
        %v2247 = vmul.f32 %v1735, 2.0
        %v2248 = vmul.f32 %v1736, 2.0
        %v2249 = vmul.f32 %v1737, 2.0
        %v2250 = vmul.f32 %v1738, 2.0
        %v2251 = vmul.f32 %v1739, 2.0
        %v2252 = vmul.f32 %v1740, 2.0
        %v2253 = vmul.f32 %v1741, 2.0
        %v2254 = vmul.f32 %v1742, 2.0
        %v2255 = vmul.f32 %v1743, 2.0
        %v2256 = vmul.f32 %v1744, 2.0
        %v2257 = vmul.f32 %v1745, 2.0
        %v2258 = vmul.f32 %v1746, 2.0
        %v2259 = vmul.f32 %v1747, 2.0
        %v2260 = vmul.f32 %v1748, 2.0
        %v2261 = vmul.f32 %v1749, 2.0
        %v2262 = vmul.f32 %v1750, 2.0
        %v2263 = vmul.f32 %v1751, 2.0
        %v2264 = vmul.f32 %v1752, 2.0
        %v2265 = vmul.f32 %v1753, 2.0
        %v2266 = vmul.f32 %v1754, 2.0
        %v2267 = vmul.f32 %v1755, 2.0
        %v2268 = vmul.f32 %v1756, 2.0
        %v2269 = vmul.f32 %v1757, 2.0
        %v2270 = vmul.f32 %v1758, 2.0
        %v2271 = vmul.f32 %v1759, 2.0
        %v2272 = vmul.f32 %v1760, 2.0
        %v2273 = vmul.f32 %v1761, 2.0
        %v2274 = vmul.f32 %v1762, 2.0
        %v2275 = vmul.f32 %v1763, 2.0
        %v2276 = vmul.f32 %v1764, 2.0
        %v2277 = vmul.f32 %v1765, 2.0
        %v2278 = vmul.f32 %v1766, 2.0
        %v2279 = vmul.f32 %v1767, 2.0
        %v2280 = vmul.f32 %v1768, 2.0
        %v2281 = vmul.f32 %v1769, 2.0
        %v2282 = vmul.f32 %v1770, 2.0
        %v2283 = vmul.f32 %v1771, 2.0
        %v2284 = vmul.f32 %v1772, 2.0
        %v2285 = vmul.f32 %v1773, 2.0
        %v2286 = vmul.f32 %v1774, 2.0
        %v2287 = vmul.f32 %v1775, 2.0
        %v2288 = vmul.f32 %v1776, 2.0
        %v2289 = vmul.f32 %v1777, 2.0
        %v2290 = vmul.f32 %v1778, 2.0
        %v2291 = vmul.f32 %v1779, 2.0
        %v2292 = vmul.f32 %v1780, 2.0
        %v2293 = vmul.f32 %v1781, 2.0
        %v2294 = vmul.f32 %v1782, 2.0
        %v2295 = vmul.f32 %v1783, 2.0
        %v2296 = vmul.f32 %v1784, 2.0
        %v2297 = vmul.f32 %v1785, 2.0
        %v2298 = vmul.f32 %v1786, 2.0
        %v2299 = vmul.f32 %v1787, 2.0
        %v2300 = vmul.f32 %v1788, 2.0
        %v2301 = vmul.f32 %v1789, 2.0
        %v2302 = vmul.f32 %v1790, 2.0
        %v2303 = vmul.f32 %v1791, 2.0
        %v2304 = vmul.f32 %v1792, 2.0
        %v2305 = vmul.f32 %v1793, 2.0
        %v2306 = vmul.f32 %v1794, 2.0
        %v2307 = vmul.f32 %v1795, 2.0
        %v2308 = vmul.f32 %v1796, 2.0
        %v2309 = vmul.f32 %v1797, 2.0
        %v2310 = vmul.f32 %v1798, 2.0
        %v2311 = vmul.f32 %v1799, 2.0
        %v2312 = vmul.f32 %v1800, 2.0
        %v2313 = vmul.f32 %v1801, 2.0
        %v2314 = vmul.f32 %v1802, 2.0
        %v2315 = vmul.f32 %v1803, 2.0
        %v2316 = vmul.f32 %v1804, 2.0
        %v2317 = vmul.f32 %v1805, 2.0
        %v2318 = vmul.f32 %v1806, 2.0
        %v2319 = vmul.f32 %v1807, 2.0
        %v2320 = vmul.f32 %v1808, 2.0
        %v2321 = vmul.f32 %v1809, 2.0
        %v2322 = vmul.f32 %v1810, 2.0
        %v2323 = vmul.f32 %v1811, 2.0
        %v2324 = vmul.f32 %v1812, 2.0
        %v2325 = vmul.f32 %v1813, 2.0
        %v2326 = vmul.f32 %v1814, 2.0
        %v2327 = vmul.f32 %v1815, 2.0
        %v2328 = vmul.f32 %v1816, 2.0
        %v2329 = vmul.f32 %v1817, 2.0
        %v2330 = vmul.f32 %v1818, 2.0
        %v2331 = vmul.f32 %v1819, 2.0
        %v2332 = vmul.f32 %v1820, 2.0
        %v2333 = vmul.f32 %v1821, 2.0
        %v2334 = vmul.f32 %v1822, 2.0
        %v2335 = vmul.f32 %v1823, 2.0
        %v2336 = vmul.f32 %v1824, 2.0
        %v2337 = vmul.f32 %v1825, 2.0
        %v2338 = vmul.f32 %v1826, 2.0
        %v2339 = vmul.f32 %v1827, 2.0
        %v2340 = vmul.f32 %v1828, 2.0
        %v2341 = vmul.f32 %v1829, 2.0
        %v2342 = vmul.f32 %v1830, 2.0
        %v2343 = vmul.f32 %v1831, 2.0
        %v2344 = vmul.f32 %v1832, 2.0
        %v2345 = vmul.f32 %v1833, 2.0
        %v2346 = vmul.f32 %v1834, 2.0
        %v2347 = vmul.f32 %v1835, 2.0
        %v2348 = vmul.f32 %v1836, 2.0
        %v2349 = vmul.f32 %v1837, 2.0
        %v2350 = vmul.f32 %v1838, 2.0
        %v2351 = vmul.f32 %v1839, 2.0
        %v2352 = vmul.f32 %v1840, 2.0
        %v2353 = vmul.f32 %v1841, 2.0
        %v2354 = vmul.f32 %v1842, 2.0
        %v2355 = vmul.f32 %v1843, 2.0
        %v2356 = vmul.f32 %v1844, 2.0
        %v2357 = vmul.f32 %v1845, 2.0
        %v2358 = vmul.f32 %v1846, 2.0
        %v2359 = vmul.f32 %v1847, 2.0
        %v2360 = vmul.f32 %v1848, 2.0
        %v2361 = vmul.f32 %v1849, 2.0
        %v2362 = vmul.f32 %v1850, 2.0
        %v2363 = vmul.f32 %v1851, 2.0
        %v2364 = vmul.f32 %v1852, 2.0
        %v2365 = vmul.f32 %v1853, 2.0
        %v2366 = vmul.f32 %v1854, 2.0
        %v2367 = vmul.f32 %v1855, 2.0
        %v2368 = vmul.f32 %v1856, 2.0
        %v2369 = vmul.f32 %v1857, 2.0
        %v2370 = vmul.f32 %v1858, 2.0
        %v2371 = vmul.f32 %v1859, 2.0
        %v2372 = vmul.f32 %v1860, 2.0
        %v2373 = vmul.f32 %v1861, 2.0
        %v2374 = vmul.f32 %v1862, 2.0
        %v2375 = vmul.f32 %v1863, 2.0
        %v2376 = vmul.f32 %v1864, 2.0
        %v2377 = vmul.f32 %v1865, 2.0
        %v2378 = vmul.f32 %v1866, 2.0
        %v2379 = vmul.f32 %v1867, 2.0
        %v2380 = vmul.f32 %v1868, 2.0
        %v2381 = vmul.f32 %v1869, 2.0
        %v2382 = vmul.f32 %v1870, 2.0
        %v2383 = vmul.f32 %v1871, 2.0
        %v2384 = vmul.f32 %v1872, 2.0
        %v2385 = vmul.f32 %v1873, 2.0
        %v2386 = vmul.f32 %v1874, 2.0
        %v2387 = vmul.f32 %v1875, 2.0
        %v2388 = vmul.f32 %v1876, 2.0
        %v2389 = vmul.f32 %v1877, 2.0
        %v2390 = vmul.f32 %v1878, 2.0
        %v2391 = vmul.f32 %v1879, 2.0
        %v2392 = vmul.f32 %v1880, 2.0
        %v2393 = vmul.f32 %v1881, 2.0
        %v2394 = vmul.f32 %v1882, 2.0
        %v2395 = vmul.f32 %v1883, 2.0
        %v2396 = vmul.f32 %v1884, 2.0
        %v2397 = vmul.f32 %v1885, 2.0
        %v2398 = vmul.f32 %v1886, 2.0
        %v2399 = vmul.f32 %v1887, 2.0
        %v2400 = vmul.f32 %v1888, 2.0
        %v2401 = vmul.f32 %v1889, 2.0
        %v2402 = vmul.f32 %v1890, 2.0
        %v2403 = vmul.f32 %v1891, 2.0
        %v2404 = vmul.f32 %v1892, 2.0
        %v2405 = vmul.f32 %v1893, 2.0
        %v2406 = vmul.f32 %v1894, 2.0
        %v2407 = vmul.f32 %v1895, 2.0
        %v2408 = vmul.f32 %v1896, 2.0
        %v2409 = vmul.f32 %v1897, 2.0
        %v2410 = vmul.f32 %v1898, 2.0
        %v2411 = vmul.f32 %v1899, 2.0
        %v2412 = vmul.f32 %v1900, 2.0
        %v2413 = vmul.f32 %v1901, 2.0
        %v2414 = vmul.f32 %v1902, 2.0
        %v2415 = vmul.f32 %v1903, 2.0
        %v2416 = vmul.f32 %v1904, 2.0
        %v2417 = vmul.f32 %v1905, 2.0
        %v2418 = vmul.f32 %v1906, 2.0
        %v2419 = vmul.f32 %v1907, 2.0
        %v2420 = vmul.f32 %v1908, 2.0
        %v2421 = vmul.f32 %v1909, 2.0
        %v2422 = vmul.f32 %v1910, 2.0
        %v2423 = vmul.f32 %v1911, 2.0
        %v2424 = vmul.f32 %v1912, 2.0
        %v2425 = vmul.f32 %v1913, 2.0
        %v2426 = vmul.f32 %v1914, 2.0
        %v2427 = vmul.f32 %v1915, 2.0
        %v2428 = vmul.f32 %v1916, 2.0
        %v2429 = vmul.f32 %v1917, 2.0
        %v2430 = vmul.f32 %v1918, 2.0
        %v2431 = vmul.f32 %v1919, 2.0
        %v2432 = vmul.f32 %v1920, 2.0
        %v2433 = vmul.f32 %v1921, 2.0
        %v2434 = vmul.f32 %v1922, 2.0
        %v2435 = vmul.f32 %v1923, 2.0
        %v2436 = vmul.f32 %v1924, 2.0
        %v2437 = vmul.f32 %v1925, 2.0
        %v2438 = vmul.f32 %v1926, 2.0
        %v2439 = vmul.f32 %v1927, 2.0
        %v2440 = vmul.f32 %v1928, 2.0
        %v2441 = vmul.f32 %v1929, 2.0
        %v2442 = vmul.f32 %v1930, 2.0
        %v2443 = vmul.f32 %v1931, 2.0
        %v2444 = vmul.f32 %v1932, 2.0
        %v2445 = vmul.f32 %v1933, 2.0
        %v2446 = vmul.f32 %v1934, 2.0
        %v2447 = vmul.f32 %v1935, 2.0
        %v2448 = vmul.f32 %v1936, 2.0
        %v2449 = vmul.f32 %v1937, 2.0
        %v2450 = vmul.f32 %v1938, 2.0
        %v2451 = vmul.f32 %v1939, 2.0
        %v2452 = vmul.f32 %v1940, 2.0
        %v2453 = vmul.f32 %v1941, 2.0
        %v2454 = vmul.f32 %v1942, 2.0
        %v2455 = vmul.f32 %v1943, 2.0
        %v2456 = vmul.f32 %v1944, 2.0
        %v2457 = vmul.f32 %v1945, 2.0
        %v2458 = vmul.f32 %v1946, 2.0
        %v2459 = vmul.f32 %v1947, 2.0
        %v2460 = vmul.f32 %v1948, 2.0
        %v2461 = vmul.f32 %v1949, 2.0
        %v2462 = vmul.f32 %v1950, 2.0
        %v2463 = vmul.f32 %v1951, 2.0
        %v2464 = vmul.f32 %v1952, 2.0
        %v2465 = vmul.f32 %v1953, 2.0
        %v2466 = vmul.f32 %v1954, 2.0
        %v2467 = vmul.f32 %v1955, 2.0
        %v2468 = vmul.f32 %v1956, 2.0
        %v2469 = vmul.f32 %v1957, 2.0
        %v2470 = vmul.f32 %v1958, 2.0
        %v2471 = vmul.f32 %v1959, 2.0
        %v2472 = vmul.f32 %v1960, 2.0
        %v2473 = vmul.f32 %v1961, 2.0
        %v2474 = vmul.f32 %v1962, 2.0
        %v2475 = vmul.f32 %v1963, 2.0
        %v2476 = vmul.f32 %v1964, 2.0
        %v2477 = vmul.f32 %v1965, 2.0
        %v2478 = vmul.f32 %v1966, 2.0
        %v2479 = vmul.f32 %v1967, 2.0
        %v2480 = vmul.f32 %v1968, 2.0
        %v2481 = vmul.f32 %v1969, 2.0
        %v2482 = vmul.f32 %v1970, 2.0
        %v2483 = vmul.f32 %v1971, 2.0
        %v2484 = vmul.f32 %v1972, 2.0
        %v2485 = vmul.f32 %v1973, 2.0
        %v2486 = vmul.f32 %v1974, 2.0
        %v2487 = vmul.f32 %v1975, 2.0
        %v2488 = vmul.f32 %v1976, 2.0
        %v2489 = vmul.f32 %v1977, 2.0
        %v2490 = vmul.f32 %v1978, 2.0
        %v2491 = vmul.f32 %v1979, 2.0
        %v2492 = vmul.f32 %v1980, 2.0
        %v2493 = vmul.f32 %v1981, 2.0
        %v2494 = vmul.f32 %v1982, 2.0
        %v2495 = vmul.f32 %v1983, 2.0
        %v2496 = vmul.f32 %v1984, 2.0
        %v2497 = vmul.f32 %v1985, 2.0
        %v2498 = vmul.f32 %v1986, 2.0
        %v2499 = vmul.f32 %v1987, 2.0
        %v2500 = vmul.f32 %v1988, 2.0
        %v2501 = vmul.f32 %v1989, 2.0
        %v2502 = vmul.f32 %v1990, 2.0
        %v2503 = vmul.f32 %v1991, 2.0
        %v2504 = vmul.f32 %v1992, 2.0
        %v2505 = vmul.f32 %v1993, 2.0
        %v2506 = vmul.f32 %v1994, 2.0
        %v2507 = vmul.f32 %v1995, 2.0
        %v2508 = vmul.f32 %v1996, 2.0
        %v2509 = vmul.f32 %v1997, 2.0
        %v2510 = vmul.f32 %v1998, 2.0
        %v2511 = vmul.f32 %v1999, 2.0
        %v2512 = vmul.f32 %v2000, 2.0
        %v2513 = vmul.f32 %v2001, 2.0
        %v2514 = vmul.f32 %v2002, 2.0
        %v2515 = vmul.f32 %v2003, 2.0
        %v2516 = vmul.f32 %v2004, 2.0
        %v2517 = vmul.f32 %v2005, 2.0
        %v2518 = vmul.f32 %v2006, 2.0
        %v2519 = vmul.f32 %v2007, 2.0
        %v2520 = vmul.f32 %v2008, 2.0
        %v2521 = vmul.f32 %v2009, 2.0
        %v2522 = vmul.f32 %v2010, 2.0
        %v2523 = vmul.f32 %v2011, 2.0
        %v2524 = vmul.f32 %v2012, 2.0
        %v2525 = vmul.f32 %v2013, 2.0
        %v2526 = vmul.f32 %v2014, 2.0
        %v2527 = vmul.f32 %v2015, 2.0
        %v2528 = vmul.f32 %v2016, 2.0
        %v2529 = vmul.f32 %v2017, 2.0
        %v2530 = vmul.f32 %v2018, 2.0
        %v2531 = vmul.f32 %v2019, 2.0
        %v2532 = vmul.f32 %v2020, 2.0
        %v2533 = vmul.f32 %v2021, 2.0
        %v2534 = vmul.f32 %v2022, 2.0
        %v2535 = vmul.f32 %v2023, 2.0
        %v2536 = vmul.f32 %v2024, 2.0
        %v2537 = vmul.f32 %v2025, 2.0
        %v2538 = vmul.f32 %v2026, 2.0
        %v2539 = vmul.f32 %v2027, 2.0
        %v2540 = vmul.f32 %v2028, 2.0
        %v2541 = vmul.f32 %v2029, 2.0
        %v2542 = vmul.f32 %v2030, 2.0
        %v2543 = vmul.f32 %v2031, 2.0
        %v2544 = vmul.f32 %v2032, 2.0
        %v2545 = vmul.f32 %v2033, 2.0
        %v2546 = vmul.f32 %v2034, 2.0
        %v2547 = vmul.f32 %v2035, 2.0
        %v2548 = vmul.f32 %v2036, 2.0
        %v2549 = vmul.f32 %v2037, 2.0
        %v2550 = vmul.f32 %v2038, 2.0
        %v2551 = vmul.f32 %v2039, 2.0
        %v2552 = vmul.f32 %v2040, 2.0
        %v2553 = vmul.f32 %v2041, 2.0
        %v2554 = vmul.f32 %v2042, 2.0
        %v2555 = vmul.f32 %v2043, 2.0
        %v2556 = vmul.f32 %v2044, 2.0
        %v2557 = vmul.f32 %v2045, 2.0
        %v2558 = vmul.f32 %v2046, 2.0
        %v2559 = vmul.f32 %v2047, 2.0
        %v2560 = vmul.f32 %v2048, 2.0
        %v2561 = vmul.f32 %v2049, 2.0
        %v2562 = vmul.f32 %v2050, 2.0
        %v2563 = vmul.f32 %v2051, 2.0
        %v2564 = vmul.f32 %v2052, 2.0
        %v2565 = vmul.f32 %v2053, 2.0
        %v2566 = vmul.f32 %v2054, 2.0
        %v2567 = vmul.f32 %v2055, 2.0
        %v2568 = vmul.f32 %v2056, 2.0
        %v2569 = vmul.f32 %v2057, 2.0
        %v2570 = vmul.f32 %v2058, 2.0
        %v2571 = vmul.f32 %v2059, 2.0
        %v2572 = vmul.f32 %v2060, 2.0
        %v2573 = vmul.f32 %v2061, 2.0
        %v2574 = vmul.f32 %v2062, 2.0
        %v2575 = vmul.f32 %v2063, 2.0
        %v2576 = vmul.f32 %v2064, 2.0
        %v2577 = vmul.f32 %v2065, 2.0
        %v2578 = vmul.f32 %v2066, 2.0
        %v2579 = vmul.f32 %v2067, 2.0
        %v2580 = vmul.f32 %v2068, 2.0
        %v2581 = vmul.f32 %v2069, 2.0
        %v2582 = vmul.f32 %v2070, 2.0
        %v2583 = vmul.f32 %v2071, 2.0
        %v2584 = vmul.f32 %v2072, 2.0
        %v2585 = vmul.f32 %v2073, 2.0
        %v2586 = vmul.f32 %v2074, 2.0
        %v2587 = vmul.f32 %v2075, 2.0
        %v2588 = vmul.f32 %v2076, 2.0
        %v2589 = vmul.f32 %v2077, 2.0
        %v2590 = vmul.f32 %v2078, 2.0
        %v2591 = vmul.f32 %v2079, 2.0
        %v2592 = vmul.f32 %v2080, 2.0
        %v2593 = vmul.f32 %v2081, 2.0
        %v2594 = vmul.f32 %v2082, 2.0
        %v2595 = vmul.f32 %v2083, 2.0
        %v2596 = vmul.f32 %v2084, 2.0
        %v2597 = vmul.f32 %v2085, 2.0
        %v2598 = vmul.f32 %v2086, 2.0
        %v2599 = vmul.f32 %v2087, 2.0
        %v2600 = vmul.f32 %v2088, 2.0
        %v2601 = vmul.f32 %v2089, 2.0
        %v2602 = vmul.f32 %v2090, 2.0
        %v2603 = vmul.f32 %v2091, 2.0
        %v2604 = vmul.f32 %v2092, 2.0
        %v2605 = vmul.f32 %v2093, 2.0
        %v2606 = vmul.f32 %v2094, 2.0
        %v2607 = vmul.f32 %v2095, 2.0
        %v2608 = vmul.f32 %v2096, 2.0
        %v2609 = vmul.f32 %v2097, 2.0
        %v2610 = vmul.f32 %v2098, 2.0
        %v2611 = vmul.f32 %v2099, 2.0
        %v2612 = vmul.f32 %v2100, 2.0
        %v2613 = vmul.f32 %v2101, 2.0
        %v2614 = vmul.f32 %v2102, 2.0
        %v2615 = vmul.f32 %v2103, 2.0
        %v2616 = vmul.f32 %v2104, 2.0
        %v2617 = vmul.f32 %v2105, 2.0
        %v2618 = vmul.f32 %v2106, 2.0
        %v2619 = vmul.f32 %v2107, 2.0
        %v2620 = vmul.f32 %v2108, 2.0
        %v2621 = vmul.f32 %v2109, 2.0
        %v2622 = vmul.f32 %v2110, 2.0
        %v2623 = vmul.f32 %v2111, 2.0
        %v2624 = vmul.f32 %v2112, 2.0
        %v2625 = vmul.f32 %v2113, 2.0
        %v2626 = vmul.f32 %v2114, 2.0
        %v2627 = vmul.f32 %v2115, 2.0
        %v2628 = vmul.f32 %v2116, 2.0
        %v2629 = vmul.f32 %v2117, 2.0
        %v2630 = vmul.f32 %v2118, 2.0
        %v2631 = vmul.f32 %v2119, 2.0
        %v2632 = vmul.f32 %v2120, 2.0
        %v2633 = vmul.f32 %v2121, 2.0
        %v2634 = vmul.f32 %v2122, 2.0
        %v2635 = vmul.f32 %v2123, 2.0
        %v2636 = vmul.f32 %v2124, 2.0
        %v2637 = vmul.f32 %v2125, 2.0
        %v2638 = vmul.f32 %v2126, 2.0
        %v2639 = vmul.f32 %v2127, 2.0
        %v2640 = vmul.f32 %v2128, 2.0
        %v2641 = vmul.f32 %v2129, 2.0
        %v2642 = vmul.f32 %v2130, 2.0
        %v2643 = vmul.f32 %v2131, 2.0
        %v2644 = vmul.f32 %v2132, 2.0
        %v2645 = vmul.f32 %v2133, 2.0
        %v2646 = vmul.f32 %v2134, 2.0
        %v2647 = vmul.f32 %v2135, 2.0
        %v2648 = vmul.f32 %v2136, 2.0
        %v2649 = vmul.f32 %v2137, 2.0
        %v2650 = vmul.f32 %v2138, 2.0
        %v2651 = vmul.f32 %v2139, 2.0
        %v2652 = vmul.f32 %v2140, 2.0
        %v2653 = vmul.f32 %v2141, 2.0
        %v2654 = vmul.f32 %v2142, 2.0
        %v2655 = vmul.f32 %v2143, 2.0
        %v2656 = vmul.f32 %v2144, 2.0
        %v2657 = vmul.f32 %v2145, 2.0
        %v2658 = vmul.f32 %v2146, 2.0
        %v2659 = vmul.f32 %v2147, 2.0
        %v2660 = vmul.f32 %v2148, 2.0
        %v2661 = vmul.f32 %v2149, 2.0
        %v2662 = vmul.f32 %v2150, 2.0
        %v2663 = vmul.f32 %v2151, 2.0
        %v2664 = vmul.f32 %v2152, 2.0
        %v2665 = vmul.f32 %v2153, 2.0
        %v2666 = vmul.f32 %v2154, 2.0
        %v2667 = vmul.f32 %v2155, 2.0
        %v2668 = vmul.f32 %v2156, 2.0
        %v2669 = vmul.f32 %v2157, 2.0
        %v2670 = vmul.f32 %v2158, 2.0
        %v2671 = vmul.f32 %v2159, 2.0
        %v2672 = vmul.f32 %v2160, 2.0
        %v2673 = vmul.f32 %v2161, 2.0
        %v2674 = vmul.f32 %v2162, 2.0
        %v2675 = vmul.f32 %v2163, 2.0
        %v2676 = vmul.f32 %v2164, 2.0
        %v2677 = vmul.f32 %v2165, 2.0
        %v2678 = vmul.f32 %v2166, 2.0
        %v2679 = vmul.f32 %v2167, 2.0
        %v2680 = vmul.f32 %v2168, 2.0
        %v2681 = vmul.f32 %v2169, 2.0
        %v2682 = vmul.f32 %v2170, 2.0
        %v2683 = vmul.f32 %v2171, 2.0
        %v2684 = vmul.f32 %v2172, 2.0
        %v2685 = vmul.f32 %v2173, 2.0
        %v2686 = vmul.f32 %v2174, 2.0
        %v2687 = vmul.f32 %v2175, 2.0
        %v2688 = vmul.f32 %v2176, 2.0
        %v2689 = vmul.f32 %v2177, 2.0
        %v2690 = vmul.f32 %v2178, 2.0
        %v2691 = vmul.f32 %v2179, 2.0
        %v2692 = vmul.f32 %v2180, 2.0
        %v2693 = vmul.f32 %v2181, 2.0
        %v2694 = vmul.f32 %v2182, 2.0
        %v2695 = vmul.f32 %v2183, 2.0
        %v2696 = vmul.f32 %v2184, 2.0
        %v2697 = vmul.f32 %v2185, 2.0
        %v2698 = vmul.f32 %v2186, 2.0
        %v2699 = vmul.f32 %v2187, 2.0
        %v2700 = vmul.f32 %v2188, 2.0
        %v2701 = vmul.f32 %v2189, 2.0
        %v2702 = vmul.f32 %v2190, 2.0
        %v2703 = vmul.f32 %v2191, 2.0
        %v2704 = vmul.f32 %v2192, 2.0
        %v2705 = vmul.f32 %v2193, 2.0
        %v2706 = vmul.f32 %v2194, 2.0
        %v2707 = vmul.f32 %v2195, 2.0
        %v2708 = vmul.f32 %v2196, 2.0
        %v2709 = vmul.f32 %v2197, 2.0
        %v2710 = vmul.f32 %v2198, 2.0
        %v2711 = vmul.f32 %v2199, 2.0
        %v2712 = vmul.f32 %v2200, 2.0
        %v2713 = vmul.f32 %v2201, 2.0
        %v2714 = vmul.f32 %v2202, 2.0
        %2715 = vst [vmem:[%s142] sm:$0xff] %v2203
        %2716 = vst [vmem:[%s142 + $0x8] sm:$0xff] %v2204
        %2717 = vst [vmem:[%s142 + $0x10] sm:$0xff] %v2205
        %2718 = vst [vmem:[%s142 + $0x18] sm:$0xff] %v2206
        %2719 = vst [vmem:[%s142 + $0x20] sm:$0xff] %v2207
        %2720 = vst [vmem:[%s142 + $0x28] sm:$0xff] %v2208
        %2721 = vst [vmem:[%s142 + $0x30] sm:$0xff] %v2209
        %2722 = vst [vmem:[%s142 + $0x38] sm:$0xff] %v2210
        %2723 = vst [vmem:[%s142 + $0x40] sm:$0xff] %v2211
        %2724 = vst [vmem:[%s142 + $0x48] sm:$0xff] %v2212
        %2725 = vst [vmem:[%s142 + $0x50] sm:$0xff] %v2213
        %2726 = vst [vmem:[%s142 + $0x58] sm:$0xff] %v2214
        %2727 = vst [vmem:[%s142 + $0x60] sm:$0xff] %v2215
        %2728 = vst [vmem:[%s142 + $0x68] sm:$0xff] %v2216
        %2729 = vst [vmem:[%s142 + $0x70] sm:$0xff] %v2217
        %2730 = vst [vmem:[%s142 + $0x78] sm:$0xff] %v2218
        %2731 = vst [vmem:[%s142 + $0x80] sm:$0xff] %v2219
        %2732 = vst [vmem:[%s142 + $0x88] sm:$0xff] %v2220
        %2733 = vst [vmem:[%s142 + $0x90] sm:$0xff] %v2221
        %2734 = vst [vmem:[%s142 + $0x98] sm:$0xff] %v2222
        %2735 = vst [vmem:[%s142 + $0xa0] sm:$0xff] %v2223
        %2736 = vst [vmem:[%s142 + $0xa8] sm:$0xff] %v2224
        %2737 = vst [vmem:[%s142 + $0xb0] sm:$0xff] %v2225
        %2738 = vst [vmem:[%s142 + $0xb8] sm:$0xff] %v2226
        %2739 = vst [vmem:[%s142 + $0xc0] sm:$0xff] %v2227
        %2740 = vst [vmem:[%s142 + $0xc8] sm:$0xff] %v2228
        %2741 = vst [vmem:[%s142 + $0xd0] sm:$0xff] %v2229
        %2742 = vst [vmem:[%s142 + $0xd8] sm:$0xff] %v2230
        %2743 = vst [vmem:[%s142 + $0xe0] sm:$0xff] %v2231
        %2744 = vst [vmem:[%s142 + $0xe8] sm:$0xff] %v2232
        %2745 = vst [vmem:[%s142 + $0xf0] sm:$0xff] %v2233
        %2746 = vst [vmem:[%s142 + $0xf8] sm:$0xff] %v2234
        %2747 = vst [vmem:[%s142 + $0x100] sm:$0xff] %v2235
        %2748 = vst [vmem:[%s142 + $0x108] sm:$0xff] %v2236
        %2749 = vst [vmem:[%s142 + $0x110] sm:$0xff] %v2237
        %2750 = vst [vmem:[%s142 + $0x118] sm:$0xff] %v2238
        %2751 = vst [vmem:[%s142 + $0x120] sm:$0xff] %v2239
        %2752 = vst [vmem:[%s142 + $0x128] sm:$0xff] %v2240
        %2753 = vst [vmem:[%s142 + $0x130] sm:$0xff] %v2241
        %2754 = vst [vmem:[%s142 + $0x138] sm:$0xff] %v2242
        %2755 = vst [vmem:[%s142 + $0x140] sm:$0xff] %v2243
        %2756 = vst [vmem:[%s142 + $0x148] sm:$0xff] %v2244
        %2757 = vst [vmem:[%s142 + $0x150] sm:$0xff] %v2245
        %2758 = vst [vmem:[%s142 + $0x158] sm:$0xff] %v2246
        %2759 = vst [vmem:[%s142 + $0x160] sm:$0xff] %v2247
        %2760 = vst [vmem:[%s142 + $0x168] sm:$0xff] %v2248
        %2761 = vst [vmem:[%s142 + $0x170] sm:$0xff] %v2249
        %2762 = vst [vmem:[%s142 + $0x178] sm:$0xff] %v2250
        %2763 = vst [vmem:[%s142 + $0x180] sm:$0xff] %v2251
        %2764 = vst [vmem:[%s142 + $0x188] sm:$0xff] %v2252
        %2765 = vst [vmem:[%s142 + $0x190] sm:$0xff] %v2253
        %2766 = vst [vmem:[%s142 + $0x198] sm:$0xff] %v2254
        %2767 = vst [vmem:[%s142 + $0x1a0] sm:$0xff] %v2255
        %2768 = vst [vmem:[%s142 + $0x1a8] sm:$0xff] %v2256
        %2769 = vst [vmem:[%s142 + $0x1b0] sm:$0xff] %v2257
        %2770 = vst [vmem:[%s142 + $0x1b8] sm:$0xff] %v2258
        %2771 = vst [vmem:[%s142 + $0x1c0] sm:$0xff] %v2259
        %2772 = vst [vmem:[%s142 + $0x1c8] sm:$0xff] %v2260
        %2773 = vst [vmem:[%s142 + $0x1d0] sm:$0xff] %v2261
        %2774 = vst [vmem:[%s142 + $0x1d8] sm:$0xff] %v2262
        %2775 = vst [vmem:[%s142 + $0x1e0] sm:$0xff] %v2263
        %2776 = vst [vmem:[%s142 + $0x1e8] sm:$0xff] %v2264
        %2777 = vst [vmem:[%s142 + $0x1f0] sm:$0xff] %v2265
        %2778 = vst [vmem:[%s142 + $0x1f8] sm:$0xff] %v2266
        %2779 = vst [vmem:[%s142 + $0x200] sm:$0xff] %v2267
        %2780 = vst [vmem:[%s142 + $0x208] sm:$0xff] %v2268
        %2781 = vst [vmem:[%s142 + $0x210] sm:$0xff] %v2269
        %2782 = vst [vmem:[%s142 + $0x218] sm:$0xff] %v2270
        %2783 = vst [vmem:[%s142 + $0x220] sm:$0xff] %v2271
        %2784 = vst [vmem:[%s142 + $0x228] sm:$0xff] %v2272
        %2785 = vst [vmem:[%s142 + $0x230] sm:$0xff] %v2273
        %2786 = vst [vmem:[%s142 + $0x238] sm:$0xff] %v2274
        %2787 = vst [vmem:[%s142 + $0x240] sm:$0xff] %v2275
        %2788 = vst [vmem:[%s142 + $0x248] sm:$0xff] %v2276
        %2789 = vst [vmem:[%s142 + $0x250] sm:$0xff] %v2277
        %2790 = vst [vmem:[%s142 + $0x258] sm:$0xff] %v2278
        %2791 = vst [vmem:[%s142 + $0x260] sm:$0xff] %v2279
        %2792 = vst [vmem:[%s142 + $0x268] sm:$0xff] %v2280
        %2793 = vst [vmem:[%s142 + $0x270] sm:$0xff] %v2281
        %2794 = vst [vmem:[%s142 + $0x278] sm:$0xff] %v2282
        %2795 = vst [vmem:[%s142 + $0x280] sm:$0xff] %v2283
        %2796 = vst [vmem:[%s142 + $0x288] sm:$0xff] %v2284
        %2797 = vst [vmem:[%s142 + $0x290] sm:$0xff] %v2285
        %2798 = vst [vmem:[%s142 + $0x298] sm:$0xff] %v2286
        %2799 = vst [vmem:[%s142 + $0x2a0] sm:$0xff] %v2287
        %2800 = vst [vmem:[%s142 + $0x2a8] sm:$0xff] %v2288
        %2801 = vst [vmem:[%s142 + $0x2b0] sm:$0xff] %v2289
        %2802 = vst [vmem:[%s142 + $0x2b8] sm:$0xff] %v2290
        %2803 = vst [vmem:[%s142 + $0x2c0] sm:$0xff] %v2291
        %2804 = vst [vmem:[%s142 + $0x2c8] sm:$0xff] %v2292
        %2805 = vst [vmem:[%s142 + $0x2d0] sm:$0xff] %v2293
        %2806 = vst [vmem:[%s142 + $0x2d8] sm:$0xff] %v2294
        %2807 = vst [vmem:[%s142 + $0x2e0] sm:$0xff] %v2295
        %2808 = vst [vmem:[%s142 + $0x2e8] sm:$0xff] %v2296
        %2809 = vst [vmem:[%s142 + $0x2f0] sm:$0xff] %v2297
        %2810 = vst [vmem:[%s142 + $0x2f8] sm:$0xff] %v2298
        %2811 = vst [vmem:[%s142 + $0x300] sm:$0xff] %v2299
        %2812 = vst [vmem:[%s142 + $0x308] sm:$0xff] %v2300
        %2813 = vst [vmem:[%s142 + $0x310] sm:$0xff] %v2301
        %2814 = vst [vmem:[%s142 + $0x318] sm:$0xff] %v2302
        %2815 = vst [vmem:[%s142 + $0x320] sm:$0xff] %v2303
        %2816 = vst [vmem:[%s142 + $0x328] sm:$0xff] %v2304
        %2817 = vst [vmem:[%s142 + $0x330] sm:$0xff] %v2305
        %2818 = vst [vmem:[%s142 + $0x338] sm:$0xff] %v2306
        %2819 = vst [vmem:[%s142 + $0x340] sm:$0xff] %v2307
        %2820 = vst [vmem:[%s142 + $0x348] sm:$0xff] %v2308
        %2821 = vst [vmem:[%s142 + $0x350] sm:$0xff] %v2309
        %2822 = vst [vmem:[%s142 + $0x358] sm:$0xff] %v2310
        %2823 = vst [vmem:[%s142 + $0x360] sm:$0xff] %v2311
        %2824 = vst [vmem:[%s142 + $0x368] sm:$0xff] %v2312
        %2825 = vst [vmem:[%s142 + $0x370] sm:$0xff] %v2313
        %2826 = vst [vmem:[%s142 + $0x378] sm:$0xff] %v2314
        %2827 = vst [vmem:[%s142 + $0x380] sm:$0xff] %v2315
        %2828 = vst [vmem:[%s142 + $0x388] sm:$0xff] %v2316
        %2829 = vst [vmem:[%s142 + $0x390] sm:$0xff] %v2317
        %2830 = vst [vmem:[%s142 + $0x398] sm:$0xff] %v2318
        %2831 = vst [vmem:[%s142 + $0x3a0] sm:$0xff] %v2319
        %2832 = vst [vmem:[%s142 + $0x3a8] sm:$0xff] %v2320
        %2833 = vst [vmem:[%s142 + $0x3b0] sm:$0xff] %v2321
        %2834 = vst [vmem:[%s142 + $0x3b8] sm:$0xff] %v2322
        %2835 = vst [vmem:[%s142 + $0x3c0] sm:$0xff] %v2323
        %2836 = vst [vmem:[%s142 + $0x3c8] sm:$0xff] %v2324
        %2837 = vst [vmem:[%s142 + $0x3d0] sm:$0xff] %v2325
        %2838 = vst [vmem:[%s142 + $0x3d8] sm:$0xff] %v2326
        %2839 = vst [vmem:[%s142 + $0x3e0] sm:$0xff] %v2327
        %2840 = vst [vmem:[%s142 + $0x3e8] sm:$0xff] %v2328
        %2841 = vst [vmem:[%s142 + $0x3f0] sm:$0xff] %v2329
        %2842 = vst [vmem:[%s142 + $0x3f8] sm:$0xff] %v2330
        %2843 = vst [vmem:[%s142 + $0x400] sm:$0xff] %v2331
        %2844 = vst [vmem:[%s142 + $0x408] sm:$0xff] %v2332
        %2845 = vst [vmem:[%s142 + $0x410] sm:$0xff] %v2333
        %2846 = vst [vmem:[%s142 + $0x418] sm:$0xff] %v2334
        %2847 = vst [vmem:[%s142 + $0x420] sm:$0xff] %v2335
        %2848 = vst [vmem:[%s142 + $0x428] sm:$0xff] %v2336
        %2849 = vst [vmem:[%s142 + $0x430] sm:$0xff] %v2337
        %2850 = vst [vmem:[%s142 + $0x438] sm:$0xff] %v2338
        %2851 = vst [vmem:[%s142 + $0x440] sm:$0xff] %v2339
        %2852 = vst [vmem:[%s142 + $0x448] sm:$0xff] %v2340
        %2853 = vst [vmem:[%s142 + $0x450] sm:$0xff] %v2341
        %2854 = vst [vmem:[%s142 + $0x458] sm:$0xff] %v2342
        %2855 = vst [vmem:[%s142 + $0x460] sm:$0xff] %v2343
        %2856 = vst [vmem:[%s142 + $0x468] sm:$0xff] %v2344
        %2857 = vst [vmem:[%s142 + $0x470] sm:$0xff] %v2345
        %2858 = vst [vmem:[%s142 + $0x478] sm:$0xff] %v2346
        %2859 = vst [vmem:[%s142 + $0x480] sm:$0xff] %v2347
        %2860 = vst [vmem:[%s142 + $0x488] sm:$0xff] %v2348
        %2861 = vst [vmem:[%s142 + $0x490] sm:$0xff] %v2349
        %2862 = vst [vmem:[%s142 + $0x498] sm:$0xff] %v2350
        %2863 = vst [vmem:[%s142 + $0x4a0] sm:$0xff] %v2351
        %2864 = vst [vmem:[%s142 + $0x4a8] sm:$0xff] %v2352
        %2865 = vst [vmem:[%s142 + $0x4b0] sm:$0xff] %v2353
        %2866 = vst [vmem:[%s142 + $0x4b8] sm:$0xff] %v2354
        %2867 = vst [vmem:[%s142 + $0x4c0] sm:$0xff] %v2355
        %2868 = vst [vmem:[%s142 + $0x4c8] sm:$0xff] %v2356
        %2869 = vst [vmem:[%s142 + $0x4d0] sm:$0xff] %v2357
        %2870 = vst [vmem:[%s142 + $0x4d8] sm:$0xff] %v2358
        %2871 = vst [vmem:[%s142 + $0x4e0] sm:$0xff] %v2359
        %2872 = vst [vmem:[%s142 + $0x4e8] sm:$0xff] %v2360
        %2873 = vst [vmem:[%s142 + $0x4f0] sm:$0xff] %v2361
        %2874 = vst [vmem:[%s142 + $0x4f8] sm:$0xff] %v2362
        %2875 = vst [vmem:[%s142 + $0x500] sm:$0xff] %v2363
        %2876 = vst [vmem:[%s142 + $0x508] sm:$0xff] %v2364
        %2877 = vst [vmem:[%s142 + $0x510] sm:$0xff] %v2365
        %2878 = vst [vmem:[%s142 + $0x518] sm:$0xff] %v2366
        %2879 = vst [vmem:[%s142 + $0x520] sm:$0xff] %v2367
        %2880 = vst [vmem:[%s142 + $0x528] sm:$0xff] %v2368
        %2881 = vst [vmem:[%s142 + $0x530] sm:$0xff] %v2369
        %2882 = vst [vmem:[%s142 + $0x538] sm:$0xff] %v2370
        %2883 = vst [vmem:[%s142 + $0x540] sm:$0xff] %v2371
        %2884 = vst [vmem:[%s142 + $0x548] sm:$0xff] %v2372
        %2885 = vst [vmem:[%s142 + $0x550] sm:$0xff] %v2373
        %2886 = vst [vmem:[%s142 + $0x558] sm:$0xff] %v2374
        %2887 = vst [vmem:[%s142 + $0x560] sm:$0xff] %v2375
        %2888 = vst [vmem:[%s142 + $0x568] sm:$0xff] %v2376
        %2889 = vst [vmem:[%s142 + $0x570] sm:$0xff] %v2377
        %2890 = vst [vmem:[%s142 + $0x578] sm:$0xff] %v2378
        %2891 = vst [vmem:[%s142 + $0x580] sm:$0xff] %v2379
        %2892 = vst [vmem:[%s142 + $0x588] sm:$0xff] %v2380
        %2893 = vst [vmem:[%s142 + $0x590] sm:$0xff] %v2381
        %2894 = vst [vmem:[%s142 + $0x598] sm:$0xff] %v2382
        %2895 = vst [vmem:[%s142 + $0x5a0] sm:$0xff] %v2383
        %2896 = vst [vmem:[%s142 + $0x5a8] sm:$0xff] %v2384
        %2897 = vst [vmem:[%s142 + $0x5b0] sm:$0xff] %v2385
        %2898 = vst [vmem:[%s142 + $0x5b8] sm:$0xff] %v2386
        %2899 = vst [vmem:[%s142 + $0x5c0] sm:$0xff] %v2387
        %2900 = vst [vmem:[%s142 + $0x5c8] sm:$0xff] %v2388
        %2901 = vst [vmem:[%s142 + $0x5d0] sm:$0xff] %v2389
        %2902 = vst [vmem:[%s142 + $0x5d8] sm:$0xff] %v2390
        %2903 = vst [vmem:[%s142 + $0x5e0] sm:$0xff] %v2391
        %2904 = vst [vmem:[%s142 + $0x5e8] sm:$0xff] %v2392
        %2905 = vst [vmem:[%s142 + $0x5f0] sm:$0xff] %v2393
        %2906 = vst [vmem:[%s142 + $0x5f8] sm:$0xff] %v2394
        %2907 = vst [vmem:[%s142 + $0x600] sm:$0xff] %v2395
        %2908 = vst [vmem:[%s142 + $0x608] sm:$0xff] %v2396
        %2909 = vst [vmem:[%s142 + $0x610] sm:$0xff] %v2397
        %2910 = vst [vmem:[%s142 + $0x618] sm:$0xff] %v2398
        %2911 = vst [vmem:[%s142 + $0x620] sm:$0xff] %v2399
        %2912 = vst [vmem:[%s142 + $0x628] sm:$0xff] %v2400
        %2913 = vst [vmem:[%s142 + $0x630] sm:$0xff] %v2401
        %2914 = vst [vmem:[%s142 + $0x638] sm:$0xff] %v2402
        %2915 = vst [vmem:[%s142 + $0x640] sm:$0xff] %v2403
        %2916 = vst [vmem:[%s142 + $0x648] sm:$0xff] %v2404
        %2917 = vst [vmem:[%s142 + $0x650] sm:$0xff] %v2405
        %2918 = vst [vmem:[%s142 + $0x658] sm:$0xff] %v2406
        %2919 = vst [vmem:[%s142 + $0x660] sm:$0xff] %v2407
        %2920 = vst [vmem:[%s142 + $0x668] sm:$0xff] %v2408
        %2921 = vst [vmem:[%s142 + $0x670] sm:$0xff] %v2409
        %2922 = vst [vmem:[%s142 + $0x678] sm:$0xff] %v2410
        %2923 = vst [vmem:[%s142 + $0x680] sm:$0xff] %v2411
        %2924 = vst [vmem:[%s142 + $0x688] sm:$0xff] %v2412
        %2925 = vst [vmem:[%s142 + $0x690] sm:$0xff] %v2413
        %2926 = vst [vmem:[%s142 + $0x698] sm:$0xff] %v2414
        %2927 = vst [vmem:[%s142 + $0x6a0] sm:$0xff] %v2415
        %2928 = vst [vmem:[%s142 + $0x6a8] sm:$0xff] %v2416
        %2929 = vst [vmem:[%s142 + $0x6b0] sm:$0xff] %v2417
        %2930 = vst [vmem:[%s142 + $0x6b8] sm:$0xff] %v2418
        %2931 = vst [vmem:[%s142 + $0x6c0] sm:$0xff] %v2419
        %2932 = vst [vmem:[%s142 + $0x6c8] sm:$0xff] %v2420
        %2933 = vst [vmem:[%s142 + $0x6d0] sm:$0xff] %v2421
        %2934 = vst [vmem:[%s142 + $0x6d8] sm:$0xff] %v2422
        %2935 = vst [vmem:[%s142 + $0x6e0] sm:$0xff] %v2423
        %2936 = vst [vmem:[%s142 + $0x6e8] sm:$0xff] %v2424
        %2937 = vst [vmem:[%s142 + $0x6f0] sm:$0xff] %v2425
        %2938 = vst [vmem:[%s142 + $0x6f8] sm:$0xff] %v2426
        %2939 = vst [vmem:[%s142 + $0x700] sm:$0xff] %v2427
        %2940 = vst [vmem:[%s142 + $0x708] sm:$0xff] %v2428
        %2941 = vst [vmem:[%s142 + $0x710] sm:$0xff] %v2429
        %2942 = vst [vmem:[%s142 + $0x718] sm:$0xff] %v2430
        %2943 = vst [vmem:[%s142 + $0x720] sm:$0xff] %v2431
        %2944 = vst [vmem:[%s142 + $0x728] sm:$0xff] %v2432
        %2945 = vst [vmem:[%s142 + $0x730] sm:$0xff] %v2433
        %2946 = vst [vmem:[%s142 + $0x738] sm:$0xff] %v2434
        %2947 = vst [vmem:[%s142 + $0x740] sm:$0xff] %v2435
        %2948 = vst [vmem:[%s142 + $0x748] sm:$0xff] %v2436
        %2949 = vst [vmem:[%s142 + $0x750] sm:$0xff] %v2437
        %2950 = vst [vmem:[%s142 + $0x758] sm:$0xff] %v2438
        %2951 = vst [vmem:[%s142 + $0x760] sm:$0xff] %v2439
        %2952 = vst [vmem:[%s142 + $0x768] sm:$0xff] %v2440
        %2953 = vst [vmem:[%s142 + $0x770] sm:$0xff] %v2441
        %2954 = vst [vmem:[%s142 + $0x778] sm:$0xff] %v2442
        %2955 = vst [vmem:[%s142 + $0x780] sm:$0xff] %v2443
        %2956 = vst [vmem:[%s142 + $0x788] sm:$0xff] %v2444
        %2957 = vst [vmem:[%s142 + $0x790] sm:$0xff] %v2445
        %2958 = vst [vmem:[%s142 + $0x798] sm:$0xff] %v2446
        %2959 = vst [vmem:[%s142 + $0x7a0] sm:$0xff] %v2447
        %2960 = vst [vmem:[%s142 + $0x7a8] sm:$0xff] %v2448
        %2961 = vst [vmem:[%s142 + $0x7b0] sm:$0xff] %v2449
        %2962 = vst [vmem:[%s142 + $0x7b8] sm:$0xff] %v2450
        %2963 = vst [vmem:[%s142 + $0x7c0] sm:$0xff] %v2451
        %2964 = vst [vmem:[%s142 + $0x7c8] sm:$0xff] %v2452
        %2965 = vst [vmem:[%s142 + $0x7d0] sm:$0xff] %v2453
        %2966 = vst [vmem:[%s142 + $0x7d8] sm:$0xff] %v2454
        %2967 = vst [vmem:[%s142 + $0x7e0] sm:$0xff] %v2455
        %2968 = vst [vmem:[%s142 + $0x7e8] sm:$0xff] %v2456
        %2969 = vst [vmem:[%s142 + $0x7f0] sm:$0xff] %v2457
        %2970 = vst [vmem:[%s142 + $0x7f8] sm:$0xff] %v2458
        %2971 = vst [vmem:[%s142 + $0x800] sm:$0xff] %v2459
        %2972 = vst [vmem:[%s142 + $0x808] sm:$0xff] %v2460
        %2973 = vst [vmem:[%s142 + $0x810] sm:$0xff] %v2461
        %2974 = vst [vmem:[%s142 + $0x818] sm:$0xff] %v2462
        %2975 = vst [vmem:[%s142 + $0x820] sm:$0xff] %v2463
        %2976 = vst [vmem:[%s142 + $0x828] sm:$0xff] %v2464
        %2977 = vst [vmem:[%s142 + $0x830] sm:$0xff] %v2465
        %2978 = vst [vmem:[%s142 + $0x838] sm:$0xff] %v2466
        %2979 = vst [vmem:[%s142 + $0x840] sm:$0xff] %v2467
        %2980 = vst [vmem:[%s142 + $0x848] sm:$0xff] %v2468
        %2981 = vst [vmem:[%s142 + $0x850] sm:$0xff] %v2469
        %2982 = vst [vmem:[%s142 + $0x858] sm:$0xff] %v2470
        %2983 = vst [vmem:[%s142 + $0x860] sm:$0xff] %v2471
        %2984 = vst [vmem:[%s142 + $0x868] sm:$0xff] %v2472
        %2985 = vst [vmem:[%s142 + $0x870] sm:$0xff] %v2473
        %2986 = vst [vmem:[%s142 + $0x878] sm:$0xff] %v2474
        %2987 = vst [vmem:[%s142 + $0x880] sm:$0xff] %v2475
        %2988 = vst [vmem:[%s142 + $0x888] sm:$0xff] %v2476
        %2989 = vst [vmem:[%s142 + $0x890] sm:$0xff] %v2477
        %2990 = vst [vmem:[%s142 + $0x898] sm:$0xff] %v2478
        %2991 = vst [vmem:[%s142 + $0x8a0] sm:$0xff] %v2479
        %2992 = vst [vmem:[%s142 + $0x8a8] sm:$0xff] %v2480
        %2993 = vst [vmem:[%s142 + $0x8b0] sm:$0xff] %v2481
        %2994 = vst [vmem:[%s142 + $0x8b8] sm:$0xff] %v2482
        %2995 = vst [vmem:[%s142 + $0x8c0] sm:$0xff] %v2483
        %2996 = vst [vmem:[%s142 + $0x8c8] sm:$0xff] %v2484
        %2997 = vst [vmem:[%s142 + $0x8d0] sm:$0xff] %v2485
        %2998 = vst [vmem:[%s142 + $0x8d8] sm:$0xff] %v2486
        %2999 = vst [vmem:[%s142 + $0x8e0] sm:$0xff] %v2487
        %3000 = vst [vmem:[%s142 + $0x8e8] sm:$0xff] %v2488
        %3001 = vst [vmem:[%s142 + $0x8f0] sm:$0xff] %v2489
        %3002 = vst [vmem:[%s142 + $0x8f8] sm:$0xff] %v2490
        %3003 = vst [vmem:[%s142 + $0x900] sm:$0xff] %v2491
        %3004 = vst [vmem:[%s142 + $0x908] sm:$0xff] %v2492
        %3005 = vst [vmem:[%s142 + $0x910] sm:$0xff] %v2493
        %3006 = vst [vmem:[%s142 + $0x918] sm:$0xff] %v2494
        %3007 = vst [vmem:[%s142 + $0x920] sm:$0xff] %v2495
        %3008 = vst [vmem:[%s142 + $0x928] sm:$0xff] %v2496
        %3009 = vst [vmem:[%s142 + $0x930] sm:$0xff] %v2497
        %3010 = vst [vmem:[%s142 + $0x938] sm:$0xff] %v2498
        %3011 = vst [vmem:[%s142 + $0x940] sm:$0xff] %v2499
        %3012 = vst [vmem:[%s142 + $0x948] sm:$0xff] %v2500
        %3013 = vst [vmem:[%s142 + $0x950] sm:$0xff] %v2501
        %3014 = vst [vmem:[%s142 + $0x958] sm:$0xff] %v2502
        %3015 = vst [vmem:[%s142 + $0x960] sm:$0xff] %v2503
        %3016 = vst [vmem:[%s142 + $0x968] sm:$0xff] %v2504
        %3017 = vst [vmem:[%s142 + $0x970] sm:$0xff] %v2505
        %3018 = vst [vmem:[%s142 + $0x978] sm:$0xff] %v2506
        %3019 = vst [vmem:[%s142 + $0x980] sm:$0xff] %v2507
        %3020 = vst [vmem:[%s142 + $0x988] sm:$0xff] %v2508
        %3021 = vst [vmem:[%s142 + $0x990] sm:$0xff] %v2509
        %3022 = vst [vmem:[%s142 + $0x998] sm:$0xff] %v2510
        %3023 = vst [vmem:[%s142 + $0x9a0] sm:$0xff] %v2511
        %3024 = vst [vmem:[%s142 + $0x9a8] sm:$0xff] %v2512
        %3025 = vst [vmem:[%s142 + $0x9b0] sm:$0xff] %v2513
        %3026 = vst [vmem:[%s142 + $0x9b8] sm:$0xff] %v2514
        %3027 = vst [vmem:[%s142 + $0x9c0] sm:$0xff] %v2515
        %3028 = vst [vmem:[%s142 + $0x9c8] sm:$0xff] %v2516
        %3029 = vst [vmem:[%s142 + $0x9d0] sm:$0xff] %v2517
        %3030 = vst [vmem:[%s142 + $0x9d8] sm:$0xff] %v2518
        %3031 = vst [vmem:[%s142 + $0x9e0] sm:$0xff] %v2519
        %3032 = vst [vmem:[%s142 + $0x9e8] sm:$0xff] %v2520
        %3033 = vst [vmem:[%s142 + $0x9f0] sm:$0xff] %v2521
        %3034 = vst [vmem:[%s142 + $0x9f8] sm:$0xff] %v2522
        %3035 = vst [vmem:[%s142 + $0xa00] sm:$0xff] %v2523
        %3036 = vst [vmem:[%s142 + $0xa08] sm:$0xff] %v2524
        %3037 = vst [vmem:[%s142 + $0xa10] sm:$0xff] %v2525
        %3038 = vst [vmem:[%s142 + $0xa18] sm:$0xff] %v2526
        %3039 = vst [vmem:[%s142 + $0xa20] sm:$0xff] %v2527
        %3040 = vst [vmem:[%s142 + $0xa28] sm:$0xff] %v2528
        %3041 = vst [vmem:[%s142 + $0xa30] sm:$0xff] %v2529
        %3042 = vst [vmem:[%s142 + $0xa38] sm:$0xff] %v2530
        %3043 = vst [vmem:[%s142 + $0xa40] sm:$0xff] %v2531
        %3044 = vst [vmem:[%s142 + $0xa48] sm:$0xff] %v2532
        %3045 = vst [vmem:[%s142 + $0xa50] sm:$0xff] %v2533
        %3046 = vst [vmem:[%s142 + $0xa58] sm:$0xff] %v2534
        %3047 = vst [vmem:[%s142 + $0xa60] sm:$0xff] %v2535
        %3048 = vst [vmem:[%s142 + $0xa68] sm:$0xff] %v2536
        %3049 = vst [vmem:[%s142 + $0xa70] sm:$0xff] %v2537
        %3050 = vst [vmem:[%s142 + $0xa78] sm:$0xff] %v2538
        %3051 = vst [vmem:[%s142 + $0xa80] sm:$0xff] %v2539
        %3052 = vst [vmem:[%s142 + $0xa88] sm:$0xff] %v2540
        %3053 = vst [vmem:[%s142 + $0xa90] sm:$0xff] %v2541
        %3054 = vst [vmem:[%s142 + $0xa98] sm:$0xff] %v2542
        %3055 = vst [vmem:[%s142 + $0xaa0] sm:$0xff] %v2543
        %3056 = vst [vmem:[%s142 + $0xaa8] sm:$0xff] %v2544
        %3057 = vst [vmem:[%s142 + $0xab0] sm:$0xff] %v2545
        %3058 = vst [vmem:[%s142 + $0xab8] sm:$0xff] %v2546
        %3059 = vst [vmem:[%s142 + $0xac0] sm:$0xff] %v2547
        %3060 = vst [vmem:[%s142 + $0xac8] sm:$0xff] %v2548
        %3061 = vst [vmem:[%s142 + $0xad0] sm:$0xff] %v2549
        %3062 = vst [vmem:[%s142 + $0xad8] sm:$0xff] %v2550
        %3063 = vst [vmem:[%s142 + $0xae0] sm:$0xff] %v2551
        %3064 = vst [vmem:[%s142 + $0xae8] sm:$0xff] %v2552
        %3065 = vst [vmem:[%s142 + $0xaf0] sm:$0xff] %v2553
        %3066 = vst [vmem:[%s142 + $0xaf8] sm:$0xff] %v2554
        %3067 = vst [vmem:[%s142 + $0xb00] sm:$0xff] %v2555
        %3068 = vst [vmem:[%s142 + $0xb08] sm:$0xff] %v2556
        %3069 = vst [vmem:[%s142 + $0xb10] sm:$0xff] %v2557
        %3070 = vst [vmem:[%s142 + $0xb18] sm:$0xff] %v2558
        %3071 = vst [vmem:[%s142 + $0xb20] sm:$0xff] %v2559
        %3072 = vst [vmem:[%s142 + $0xb28] sm:$0xff] %v2560
        %3073 = vst [vmem:[%s142 + $0xb30] sm:$0xff] %v2561
        %3074 = vst [vmem:[%s142 + $0xb38] sm:$0xff] %v2562
        %3075 = vst [vmem:[%s142 + $0xb40] sm:$0xff] %v2563
        %3076 = vst [vmem:[%s142 + $0xb48] sm:$0xff] %v2564
        %3077 = vst [vmem:[%s142 + $0xb50] sm:$0xff] %v2565
        %3078 = vst [vmem:[%s142 + $0xb58] sm:$0xff] %v2566
        %3079 = vst [vmem:[%s142 + $0xb60] sm:$0xff] %v2567
        %3080 = vst [vmem:[%s142 + $0xb68] sm:$0xff] %v2568
        %3081 = vst [vmem:[%s142 + $0xb70] sm:$0xff] %v2569
        %3082 = vst [vmem:[%s142 + $0xb78] sm:$0xff] %v2570
        %3083 = vst [vmem:[%s142 + $0xb80] sm:$0xff] %v2571
        %3084 = vst [vmem:[%s142 + $0xb88] sm:$0xff] %v2572
        %3085 = vst [vmem:[%s142 + $0xb90] sm:$0xff] %v2573
        %3086 = vst [vmem:[%s142 + $0xb98] sm:$0xff] %v2574
        %3087 = vst [vmem:[%s142 + $0xba0] sm:$0xff] %v2575
        %3088 = vst [vmem:[%s142 + $0xba8] sm:$0xff] %v2576
        %3089 = vst [vmem:[%s142 + $0xbb0] sm:$0xff] %v2577
        %3090 = vst [vmem:[%s142 + $0xbb8] sm:$0xff] %v2578
        %3091 = vst [vmem:[%s142 + $0xbc0] sm:$0xff] %v2579
        %3092 = vst [vmem:[%s142 + $0xbc8] sm:$0xff] %v2580
        %3093 = vst [vmem:[%s142 + $0xbd0] sm:$0xff] %v2581
        %3094 = vst [vmem:[%s142 + $0xbd8] sm:$0xff] %v2582
        %3095 = vst [vmem:[%s142 + $0xbe0] sm:$0xff] %v2583
        %3096 = vst [vmem:[%s142 + $0xbe8] sm:$0xff] %v2584
        %3097 = vst [vmem:[%s142 + $0xbf0] sm:$0xff] %v2585
        %3098 = vst [vmem:[%s142 + $0xbf8] sm:$0xff] %v2586
        %3099 = vst [vmem:[%s142 + $0xc00] sm:$0xff] %v2587
        %3100 = vst [vmem:[%s142 + $0xc08] sm:$0xff] %v2588
        %3101 = vst [vmem:[%s142 + $0xc10] sm:$0xff] %v2589
        %3102 = vst [vmem:[%s142 + $0xc18] sm:$0xff] %v2590
        %3103 = vst [vmem:[%s142 + $0xc20] sm:$0xff] %v2591
        %3104 = vst [vmem:[%s142 + $0xc28] sm:$0xff] %v2592
        %3105 = vst [vmem:[%s142 + $0xc30] sm:$0xff] %v2593
        %3106 = vst [vmem:[%s142 + $0xc38] sm:$0xff] %v2594
        %3107 = vst [vmem:[%s142 + $0xc40] sm:$0xff] %v2595
        %3108 = vst [vmem:[%s142 + $0xc48] sm:$0xff] %v2596
        %3109 = vst [vmem:[%s142 + $0xc50] sm:$0xff] %v2597
        %3110 = vst [vmem:[%s142 + $0xc58] sm:$0xff] %v2598
        %3111 = vst [vmem:[%s142 + $0xc60] sm:$0xff] %v2599
        %3112 = vst [vmem:[%s142 + $0xc68] sm:$0xff] %v2600
        %3113 = vst [vmem:[%s142 + $0xc70] sm:$0xff] %v2601
        %3114 = vst [vmem:[%s142 + $0xc78] sm:$0xff] %v2602
        %3115 = vst [vmem:[%s142 + $0xc80] sm:$0xff] %v2603
        %3116 = vst [vmem:[%s142 + $0xc88] sm:$0xff] %v2604
        %3117 = vst [vmem:[%s142 + $0xc90] sm:$0xff] %v2605
        %3118 = vst [vmem:[%s142 + $0xc98] sm:$0xff] %v2606
        %3119 = vst [vmem:[%s142 + $0xca0] sm:$0xff] %v2607
        %3120 = vst [vmem:[%s142 + $0xca8] sm:$0xff] %v2608
        %3121 = vst [vmem:[%s142 + $0xcb0] sm:$0xff] %v2609
        %3122 = vst [vmem:[%s142 + $0xcb8] sm:$0xff] %v2610
        %3123 = vst [vmem:[%s142 + $0xcc0] sm:$0xff] %v2611
        %3124 = vst [vmem:[%s142 + $0xcc8] sm:$0xff] %v2612
        %3125 = vst [vmem:[%s142 + $0xcd0] sm:$0xff] %v2613
        %3126 = vst [vmem:[%s142 + $0xcd8] sm:$0xff] %v2614
        %3127 = vst [vmem:[%s142 + $0xce0] sm:$0xff] %v2615
        %3128 = vst [vmem:[%s142 + $0xce8] sm:$0xff] %v2616
        %3129 = vst [vmem:[%s142 + $0xcf0] sm:$0xff] %v2617
        %3130 = vst [vmem:[%s142 + $0xcf8] sm:$0xff] %v2618
        %3131 = vst [vmem:[%s142 + $0xd00] sm:$0xff] %v2619
        %3132 = vst [vmem:[%s142 + $0xd08] sm:$0xff] %v2620
        %3133 = vst [vmem:[%s142 + $0xd10] sm:$0xff] %v2621
        %3134 = vst [vmem:[%s142 + $0xd18] sm:$0xff] %v2622
        %3135 = vst [vmem:[%s142 + $0xd20] sm:$0xff] %v2623
        %3136 = vst [vmem:[%s142 + $0xd28] sm:$0xff] %v2624
        %3137 = vst [vmem:[%s142 + $0xd30] sm:$0xff] %v2625
        %3138 = vst [vmem:[%s142 + $0xd38] sm:$0xff] %v2626
        %3139 = vst [vmem:[%s142 + $0xd40] sm:$0xff] %v2627
        %3140 = vst [vmem:[%s142 + $0xd48] sm:$0xff] %v2628
        %3141 = vst [vmem:[%s142 + $0xd50] sm:$0xff] %v2629
        %3142 = vst [vmem:[%s142 + $0xd58] sm:$0xff] %v2630
        %3143 = vst [vmem:[%s142 + $0xd60] sm:$0xff] %v2631
        %3144 = vst [vmem:[%s142 + $0xd68] sm:$0xff] %v2632
        %3145 = vst [vmem:[%s142 + $0xd70] sm:$0xff] %v2633
        %3146 = vst [vmem:[%s142 + $0xd78] sm:$0xff] %v2634
        %3147 = vst [vmem:[%s142 + $0xd80] sm:$0xff] %v2635
        %3148 = vst [vmem:[%s142 + $0xd88] sm:$0xff] %v2636
        %3149 = vst [vmem:[%s142 + $0xd90] sm:$0xff] %v2637
        %3150 = vst [vmem:[%s142 + $0xd98] sm:$0xff] %v2638
        %3151 = vst [vmem:[%s142 + $0xda0] sm:$0xff] %v2639
        %3152 = vst [vmem:[%s142 + $0xda8] sm:$0xff] %v2640
        %3153 = vst [vmem:[%s142 + $0xdb0] sm:$0xff] %v2641
        %3154 = vst [vmem:[%s142 + $0xdb8] sm:$0xff] %v2642
        %3155 = vst [vmem:[%s142 + $0xdc0] sm:$0xff] %v2643
        %3156 = vst [vmem:[%s142 + $0xdc8] sm:$0xff] %v2644
        %3157 = vst [vmem:[%s142 + $0xdd0] sm:$0xff] %v2645
        %3158 = vst [vmem:[%s142 + $0xdd8] sm:$0xff] %v2646
        %3159 = vst [vmem:[%s142 + $0xde0] sm:$0xff] %v2647
        %3160 = vst [vmem:[%s142 + $0xde8] sm:$0xff] %v2648
        %3161 = vst [vmem:[%s142 + $0xdf0] sm:$0xff] %v2649
        %3162 = vst [vmem:[%s142 + $0xdf8] sm:$0xff] %v2650
        %3163 = vst [vmem:[%s142 + $0xe00] sm:$0xff] %v2651
        %3164 = vst [vmem:[%s142 + $0xe08] sm:$0xff] %v2652
        %3165 = vst [vmem:[%s142 + $0xe10] sm:$0xff] %v2653
        %3166 = vst [vmem:[%s142 + $0xe18] sm:$0xff] %v2654
        %3167 = vst [vmem:[%s142 + $0xe20] sm:$0xff] %v2655
        %3168 = vst [vmem:[%s142 + $0xe28] sm:$0xff] %v2656
        %3169 = vst [vmem:[%s142 + $0xe30] sm:$0xff] %v2657
        %3170 = vst [vmem:[%s142 + $0xe38] sm:$0xff] %v2658
        %3171 = vst [vmem:[%s142 + $0xe40] sm:$0xff] %v2659
        %3172 = vst [vmem:[%s142 + $0xe48] sm:$0xff] %v2660
        %3173 = vst [vmem:[%s142 + $0xe50] sm:$0xff] %v2661
        %3174 = vst [vmem:[%s142 + $0xe58] sm:$0xff] %v2662
        %3175 = vst [vmem:[%s142 + $0xe60] sm:$0xff] %v2663
        %3176 = vst [vmem:[%s142 + $0xe68] sm:$0xff] %v2664
        %3177 = vst [vmem:[%s142 + $0xe70] sm:$0xff] %v2665
        %3178 = vst [vmem:[%s142 + $0xe78] sm:$0xff] %v2666
        %3179 = vst [vmem:[%s142 + $0xe80] sm:$0xff] %v2667
        %3180 = vst [vmem:[%s142 + $0xe88] sm:$0xff] %v2668
        %3181 = vst [vmem:[%s142 + $0xe90] sm:$0xff] %v2669
        %3182 = vst [vmem:[%s142 + $0xe98] sm:$0xff] %v2670
        %3183 = vst [vmem:[%s142 + $0xea0] sm:$0xff] %v2671
        %3184 = vst [vmem:[%s142 + $0xea8] sm:$0xff] %v2672
        %3185 = vst [vmem:[%s142 + $0xeb0] sm:$0xff] %v2673
        %3186 = vst [vmem:[%s142 + $0xeb8] sm:$0xff] %v2674
        %3187 = vst [vmem:[%s142 + $0xec0] sm:$0xff] %v2675
        %3188 = vst [vmem:[%s142 + $0xec8] sm:$0xff] %v2676
        %3189 = vst [vmem:[%s142 + $0xed0] sm:$0xff] %v2677
        %3190 = vst [vmem:[%s142 + $0xed8] sm:$0xff] %v2678
        %3191 = vst [vmem:[%s142 + $0xee0] sm:$0xff] %v2679
        %3192 = vst [vmem:[%s142 + $0xee8] sm:$0xff] %v2680
        %3193 = vst [vmem:[%s142 + $0xef0] sm:$0xff] %v2681
        %3194 = vst [vmem:[%s142 + $0xef8] sm:$0xff] %v2682
        %3195 = vst [vmem:[%s142 + $0xf00] sm:$0xff] %v2683
        %3196 = vst [vmem:[%s142 + $0xf08] sm:$0xff] %v2684
        %3197 = vst [vmem:[%s142 + $0xf10] sm:$0xff] %v2685
        %3198 = vst [vmem:[%s142 + $0xf18] sm:$0xff] %v2686
        %3199 = vst [vmem:[%s142 + $0xf20] sm:$0xff] %v2687
        %3200 = vst [vmem:[%s142 + $0xf28] sm:$0xff] %v2688
        %3201 = vst [vmem:[%s142 + $0xf30] sm:$0xff] %v2689
        %3202 = vst [vmem:[%s142 + $0xf38] sm:$0xff] %v2690
        %3203 = vst [vmem:[%s142 + $0xf40] sm:$0xff] %v2691
        %3204 = vst [vmem:[%s142 + $0xf48] sm:$0xff] %v2692
        %3205 = vst [vmem:[%s142 + $0xf50] sm:$0xff] %v2693
        %3206 = vst [vmem:[%s142 + $0xf58] sm:$0xff] %v2694
        %3207 = vst [vmem:[%s142 + $0xf60] sm:$0xff] %v2695
        %3208 = vst [vmem:[%s142 + $0xf68] sm:$0xff] %v2696
        %3209 = vst [vmem:[%s142 + $0xf70] sm:$0xff] %v2697
        %3210 = vst [vmem:[%s142 + $0xf78] sm:$0xff] %v2698
        %3211 = vst [vmem:[%s142 + $0xf80] sm:$0xff] %v2699
        %3212 = vst [vmem:[%s142 + $0xf88] sm:$0xff] %v2700
        %3213 = vst [vmem:[%s142 + $0xf90] sm:$0xff] %v2701
        %3214 = vst [vmem:[%s142 + $0xf98] sm:$0xff] %v2702
        %3215 = vst [vmem:[%s142 + $0xfa0] sm:$0xff] %v2703
        %3216 = vst [vmem:[%s142 + $0xfa8] sm:$0xff] %v2704
        %3217 = vst [vmem:[%s142 + $0xfb0] sm:$0xff] %v2705
        %3218 = vst [vmem:[%s142 + $0xfb8] sm:$0xff] %v2706
        %3219 = vst [vmem:[%s142 + $0xfc0] sm:$0xff] %v2707
        %3220 = vst [vmem:[%s142 + $0xfc8] sm:$0xff] %v2708
        %3221 = vst [vmem:[%s142 + $0xfd0] sm:$0xff] %v2709
        %3222 = vst [vmem:[%s142 + $0xfd8] sm:$0xff] %v2710
        %3223 = vst [vmem:[%s142 + $0xfe0] sm:$0xff] %v2711
        %3224 = vst [vmem:[%s142 + $0xfe8] sm:$0xff] %v2712
        %3225 = vst [vmem:[%s142 + $0xff0] sm:$0xff] %v2713
        %3226 = vst [vmem:[%s142 + $0xff8] sm:$0xff] %v2714
        %s3227 = sand.u32 %s52, 1
        %s3228 = scalar_lea.sflag [#allocation4], %s3227
        %s3229 = sand.u32 %s52, 1
        %s3230 = smul.addr %s3229, 4096
        %s3231 = scalar_lea.vmem [#allocation5], %s3230
        // Predicated region
        $region29: #{tpu_custom_call.1} parent=23 // pred_check
          %p3232 = pneg %p62
        $region30: #{tpu_custom_call.1} parent=23 // pred_check_branch
          %3234 = sbr.rel (%p3232) target = $region32
        $region31: #{tpu_custom_call.1} parent=23 // pred_region
          %s3235 = smul.u32 64, %s18
          %s3236 = ssub.s32 94, %s3235
          %p3237 = scmp.lt.s32.totalorder %s3236, 64
          %s3238 = scalar_select %p3237, %s3236, 64
          %s3239 = smul.u32 128, %s3238
          %s3240 = smul.u32 %s3239, 8
          %s3242 = ssub.s32 65536, %s3240
          %3243 = vsyncadd %s3228, %s3242
          %p3244 = scmp.ne.s32.totalorder 0, %s3240
          %s3245 = smul.addr %s3235, 8
          %s3246 = smul.addr %s3245, 128
          %s3247 = scalar_lea.hbm %s1, %s3246
          %s3248 = smul.u32 64, %s3238
          %s3249 = sshll.u32 %s3231, 4
          %s3250 = int_to_ptr.vmem [resolvable:$true] %s3249
          %s3251 = sshll.u32 %s3248, 4
          %3255 = dma.vmem_to_hbm [thread:$0]  (%p3244), %s3250, %s3251, %s3247, %s3228, 1024, 1024, 64
        $region32: #{tpu_custom_call.1} parent=23 // pred_fallthru
          _
      $region24: #{tpu_custom_call.1} parent=5 // pred_fallthru
        _
      %p3256 = scmp.le.s32.totalorder 2, %s13
      // Predicated region
      $region33: #{tpu_custom_call.1} parent=5 // pred_check
        %p3257 = pneg %p3256
      $region34: #{tpu_custom_call.1} parent=5 // pred_check_branch
        %3259 = sbr.rel (%p3257) target = $region36
      $region35: #{tpu_custom_call.1} parent=5 // pred_region
        %s3260 = ssub.s32 %s13, 2
        // Predicated region
        $region37: #{tpu_custom_call.1} parent=35 // pred_check
          %p3261 = pneg %p68
        $region38: #{tpu_custom_call.1} parent=35 // pred_check_branch
          %3263 = sbr.rel (%p3261) target = $region40
        $region39: #{tpu_custom_call.1} parent=35 // pred_region
          %s3264 = sand.u32 %s53, 1
          %s3265 = scalar_lea.sflag [#allocation4], %s3264
          %s3266 = sand.u32 %s53, 1
          %s3267 = smul.addr %s3266, 4096
          %s3268 = scalar_lea.vmem [#allocation5], %s3267
          %3269 = dma.done %s3265, 65536
        $region40: #{tpu_custom_call.1} parent=35 // pred_fallthru
          _
      $region36: #{tpu_custom_call.1} parent=5 // pred_fallthru
        _
    $region6: #{tpu_custom_call.1} parent=1 // loop_footer
      %s17 = sadd.s32 1, %s13
    $region7: #{tpu_custom_call.1} parent=1 // loop_footer_branch
      %12 = sbr.rel target = $region3
    $region8: #{tpu_custom_call.1} parent=1 // loop_exit
      _
    %3270 = vsyncpa [#allocation3], 1
    %s3271 = scalar_lea.sflag [#allocation3], 1
    %3272 = vsyncpa %s3271, 1
    %3273 = vsyncpa [#allocation4], 1
    %s3274 = scalar_lea.sflag [#allocation4], 1
    %3275 = vsyncpa %s3274, 1

</llo_original>
